<compile_context>
chip_gen: v5e
topology: v5e:2x2
jax: 0.10.0
libtpu: 0.0.40
codegen_flags: <defaults>
</compile_context>

<pallas_src>
import functools

import jax
import jax.numpy as jnp
from jax.experimental import pallas as pl
from jax.experimental.pallas import tpu as pltpu


def _round_up(x, m):
    return (x + m - 1) // m * m


def _pick_chunk(n, target):
    c = min(target, n)
    while n % c != 0:
        c -= 1
    return c


# ----------------------------------------------------------------------------
# Kernel 1: batched input projection  gates_in = x @ W_ih' + bias
# (BatchNorm folded into W_ih' / bias).  Tiled over rows, bf16 -> f32 acc.
# ----------------------------------------------------------------------------
def matmul_bias_kernel(x_ref, w_ref, b_ref, o_ref):
    acc = jnp.dot(x_ref[...], w_ref[...], preferred_element_type=jnp.float32)
    o_ref[...] = (acc + b_ref[...]).astype(o_ref.dtype)


def input_projection(x_flat, w, b):
    N, F = x_flat.shape
    G = w.shape[1]
    tile_n = min(512, _round_up(N, 8))
    grid = (pl.cdiv(N, tile_n),)
    return pl.pallas_call(
        matmul_bias_kernel,
        out_shape=jax.ShapeDtypeStruct((N, G), jnp.float32),
        grid_spec=pltpu.PrefetchScalarGridSpec(
            num_scalar_prefetch=0,
            grid=grid,
            in_specs=[
                pl.BlockSpec((tile_n, F), lambda i: (i, 0)),
                pl.BlockSpec((F, G), lambda i: (0, 0)),
                pl.BlockSpec((1, G), lambda i: (0, 0)),
            ],
            out_specs=pl.BlockSpec((tile_n, G), lambda i: (i, 0)),
        ),
        compiler_params=pltpu.CompilerParams(
            dimension_semantics=("parallel",)),
    )(x_flat, w, b)


# ----------------------------------------------------------------------------
# Kernel 2: sequential LSTM recurrence.  Only h @ W_hh is on the serial path;
# T_CHUNK timesteps per grid step; batch tiles on a "parallel" leading axis.
# ----------------------------------------------------------------------------
def lstm_recurrent_kernel(g_ref, whh_ref, o_ref, h_sc, c_sc):
    # g_ref:   (T_CHUNK, B_TILE, 4H)  f32, precomputed x@W_ih + bias
    # whh_ref: (H, 4H)                bf16
    # o_ref:   (T_CHUNK, B_TILE, H)   bf16
    @pl.when(pl.program_id(1) == 0)
    def _():
        h_sc[...] = jnp.zeros_like(h_sc)
        c_sc[...] = jnp.zeros_like(c_sc)

    H = h_sc.shape[-1]
    t_chunk = g_ref.shape[0]

    def step(s, carry):
        gates = g_ref[s] + jnp.dot(h_sc[...].astype(whh_ref.dtype),
                                   whh_ref[...],
                                   preferred_element_type=jnp.float32)
        i = jax.nn.sigmoid(gates[:, 0 * H:1 * H])
        f = jax.nn.sigmoid(gates[:, 1 * H:2 * H])
        g = jnp.tanh(gates[:, 2 * H:3 * H])
        o = jax.nn.sigmoid(gates[:, 3 * H:4 * H])
        c = f * c_sc[...] + i * g
        h = o * jnp.tanh(c)
        c_sc[...] = c
        h_sc[...] = h
        o_ref[s] = h.astype(o_ref.dtype)
        return carry

    jax.lax.fori_loop(0, t_chunk, step, 0, unroll=True)


def lstm_recurrence(gates_in, whh, *, t_chunk_target=16):
    T, B, G = gates_in.shape
    H = whh.shape[0]
    t_chunk = _pick_chunk(T, t_chunk_target)
    b_tile = B if (B <= 128 or B % 128 != 0) else 128
    grid = (B // b_tile, T // t_chunk)
    return pl.pallas_call(
        lstm_recurrent_kernel,
        out_shape=jax.ShapeDtypeStruct((T, B, H), jnp.bfloat16),
        grid_spec=pltpu.PrefetchScalarGridSpec(
            num_scalar_prefetch=0,
            grid=grid,
            in_specs=[
                pl.BlockSpec((t_chunk, b_tile, G), lambda bi, ci: (ci, bi, 0)),
                pl.BlockSpec((H, G), lambda bi, ci: (0, 0)),
            ],
            out_specs=pl.BlockSpec((t_chunk, b_tile, H),
                                   lambda bi, ci: (ci, bi, 0)),
            scratch_shapes=[
                pltpu.VMEM((b_tile, H), jnp.float32),   # h state
                pltpu.VMEM((b_tile, H), jnp.float32),   # c state
            ],
        ),
        compiler_params=pltpu.CompilerParams(
            dimension_semantics=("parallel", "arbitrary")),
    )(gates_in, whh)


# ----------------------------------------------------------------------------
# Kernel 3: SequenceWise(BN + Linear(bias=False)) + log_softmax.
# BN folded into weights/bias; class dim padded to 128 (lane-dense output).
# ----------------------------------------------------------------------------
def fc_logsoftmax_kernel(x_ref, w_ref, b_ref, o_ref, *, num_valid):
    logits = (jnp.dot(x_ref[...], w_ref[...],
                      preferred_element_type=jnp.float32) + b_ref[...])
    col = jax.lax.broadcasted_iota(jnp.int32, logits.shape, 1)
    logits = jnp.where(col < num_valid, logits, -1e30)   # mask pad classes
    m = jnp.max(logits, axis=-1, keepdims=True)
    z = logits - m
    lse = jnp.log(jnp.sum(jnp.exp(z), axis=-1, keepdims=True))
    o_ref[...] = (z - lse).astype(o_ref.dtype)


def fc_logsoftmax(x_flat, w_pad, b_pad, num_class):
    N, H = x_flat.shape
    Cp = w_pad.shape[1]
    tile_n = min(512, _round_up(N, 8))
    grid = (pl.cdiv(N, tile_n),)
    kernel = functools.partial(fc_logsoftmax_kernel, num_valid=num_class)
    return pl.pallas_call(
        kernel,
        out_shape=jax.ShapeDtypeStruct((N, Cp), jnp.float32),
        grid_spec=pltpu.PrefetchScalarGridSpec(
            num_scalar_prefetch=0,
            grid=grid,
            in_specs=[
                pl.BlockSpec((tile_n, H), lambda i: (i, 0)),
                pl.BlockSpec((H, Cp), lambda i: (0, 0)),
                pl.BlockSpec((1, Cp), lambda i: (0, 0)),
            ],
            out_specs=pl.BlockSpec((tile_n, Cp), lambda i: (i, 0)),
        ),
        compiler_params=pltpu.CompilerParams(
            dimension_semantics=("parallel",)),
    )(x_flat, w_pad, b_pad)


# ----------------------------------------------------------------------------
# Parameters: raw f32 (mirrors nn.Module tensors) + derived kernel params
# (BN folded, transposed, bf16 weights, padded class dim).
# ----------------------------------------------------------------------------
def _make_bn(key, feat):
    k1, k2, k3, k4 = jax.random.split(key, 4)
    return dict(
        gamma=jax.random.uniform(k1, (feat,), jnp.float32, 0.5, 1.5),
        beta=0.1 * jax.random.normal(k2, (feat,), jnp.float32),
        mean=0.1 * jax.random.normal(k3, (feat,), jnp.float32),
        var=jax.random.uniform(k4, (feat,), jnp.float32, 0.5, 1.5))


def make_raw_params(key, rnn_input_size, hidden, layers, num_class):
    raw = {"layers": [], "fc": {}}
    keys = jax.random.split(key, layers + 1)
    bound = 1.0 / jnp.sqrt(hidden)
    for l in range(layers):
        in_size = rnn_input_size if l == 0 else hidden
        k1, k2, k3 = jax.random.split(keys[l], 3)
        wih = jax.random.uniform(k1, (4 * hidden, in_size), jnp.float32,
                                 -bound, bound)
        whh = jax.random.uniform(k2, (4 * hidden, hidden), jnp.float32,
                                 -bound, bound)
        # First BatchRNN is constructed with batch_norm=False.
        bn = None if l == 0 else _make_bn(k3, in_size)
        raw["layers"].append(dict(wih=wih, whh=whh, bn=bn))
    kf1, kf2 = jax.random.split(keys[-1], 2)
    raw["fc"] = dict(bn=_make_bn(kf1, hidden),
                     w=jax.random.uniform(kf2, (num_class, hidden),
                                          jnp.float32, -bound, bound))
    return raw


def _bn_scale_shift(bn, feat):
    if bn is None:
        return jnp.ones((feat,), jnp.float32), jnp.zeros((feat,), jnp.float32)
    eps = 1e-5
    scale = bn["gamma"] / jnp.sqrt(bn["var"] + eps)
    shift = bn["beta"] - bn["mean"] * scale
    return scale, shift


def prepare_kernel_params(raw):
    kp = {"layers": []}
    for lp in raw["layers"]:
        in_size = lp["wih"].shape[1]
        scale, shift = _bn_scale_shift(lp["bn"], in_size)
        wih_t = lp["wih"].T                          # (in, 4H)
        wih_eff = wih_t * scale[:, None]             # fold BN scale into W_ih
        bias_eff = (shift @ wih_t).reshape(1, -1)    # constant gate bias
        kp["layers"].append(dict(
            wih=wih_eff.astype(jnp.bfloat16),
            bias=bias_eff.astype(jnp.float32),
            whh=lp["whh"].T.astype(jnp.bfloat16)))
    H = raw["fc"]["w"].shape[1]
    C = raw["fc"]["w"].shape[0]
    scale, shift = _bn_scale_shift(raw["fc"]["bn"], H)
    w_t = raw["fc"]["w"].T                           # (H, C)
    w_eff = w_t * scale[:, None]
    b_eff = (shift @ w_t).reshape(1, -1)
    c_pad = _round_up(max(C, 128), 128)              # lane-dense output
    w_pad = jnp.zeros((H, c_pad), jnp.float32).at[:, :C].set(w_eff)
    b_pad = jnp.zeros((1, c_pad), jnp.float32).at[:, :C].set(b_eff)
    kp["fc"] = dict(w=w_pad.astype(jnp.bfloat16), b=b_pad)
    return kp


# ----------------------------------------------------------------------------
# Full forward
# ----------------------------------------------------------------------------
@functools.partial(jax.jit, static_argnames=("num_class",))
def rnn_model_forward(x, kparams, *, num_class):
    T, B, _ = x.shape
    b_pad = _round_up(B, 8)                 # sublane-full batch
    if b_pad != B:
        x = jnp.pad(x, ((0, 0), (0, b_pad - B), (0, 0)))
    h = x.astype(jnp.bfloat16)
    for lp in kparams["layers"]:
        n = T * b_pad
        g_in = input_projection(h.reshape(n, h.shape[-1]), lp["wih"],
                                lp["bias"])
        h = lstm_recurrence(g_in.reshape(T, b_pad, -1), lp["whh"])
    # TODO(synk): per-layer (T,B,H) activations round-trip through HBM; for
    # large models they could stay VMEM-resident by chaining layers in one
    # pallas_call.
    n = T * b_pad
    out = fc_logsoftmax(h.reshape(n, h.shape[-1]), kparams["fc"]["w"],
                        kparams["fc"]["b"], num_class)
    return out.reshape(T, b_pad, -1)[:, :B, :num_class]


# ----------------------------------------------------------------------------
# Pure-JAX f32 reference (uses the raw, unfolded parameters)
# ----------------------------------------------------------------------------
def rnn_model_reference(x, raw):
    eps = 1e-5
    h = x
    for lp in raw["layers"]:
        if lp["bn"] is not None:
            bn = lp["bn"]
            h = ((h - bn["mean"]) / jnp.sqrt(bn["var"] + eps)
                 * bn["gamma"] + bn["beta"])
        wih_t, whh_t = lp["wih"].T, lp["whh"].T
        _, B, _ = h.shape
        H = whh_t.shape[0]

        def step(carry, x_t, wih_t=wih_t, whh_t=whh_t):
            hh, cc = carry
            gates = x_t @ wih_t + hh @ whh_t
            i, f, g, o = jnp.split(gates, 4, axis=-1)
            i, f, o = jax.nn.sigmoid(i), jax.nn.sigmoid(f), jax.nn.sigmoid(o)
            g = jnp.tanh(g)
            cc = f * cc + i * g
            hh = o * jnp.tanh(cc)
            return (hh, cc), hh

        init = (jnp.zeros((B, H), jnp.float32), jnp.zeros((B, H), jnp.float32))
        _, h = jax.lax.scan(step, init, h)
    bn = raw["fc"]["bn"]
    T, B, H = h.shape
    flat = h.reshape(T * B, H)
    flat = (flat - bn["mean"]) / jnp.sqrt(bn["var"] + eps) * bn["gamma"] + bn["beta"]
    logits = flat @ raw["fc"]["w"].T
    return jax.nn.log_softmax(logits, axis=-1).reshape(T, B, -1)


if __name__ == "__main__":
    # Small shapes consistent with the module's forward.
    T, B = 8, 2                 # seq_len, batch (nn.LSTM seq-first layout)
    F_IN = 88                   # rnn_input_size (module default)
    HID = 128                   # hidden size (small, lane-aligned multiple of 128)
    LAYERS = 4
    NUM_CLASS = 2

    key = jax.random.PRNGKey(0)
    kx, kp = jax.random.split(key)
    x = jax.random.normal(kx, (T, B, F_IN), jnp.float32)
    raw = make_raw_params(kp, F_IN, HID, LAYERS, NUM_CLASS)
    kparams = prepare_kernel_params(raw)

    out = rnn_model_forward(x, kparams, num_class=NUM_CLASS)
    out = jax.block_until_ready(out)

    ref = rnn_model_reference(x, raw)
    assert out.shape == (T, B, NUM_CLASS)
    err = float(jnp.max(jnp.abs(out - ref)))
    assert err < 3e-2, f"mismatch vs reference: {err}"

    print("KERNEL_OK")
</pallas_src>

<mosaic_0001>
module attributes {stable_mosaic.version = 11 : i64} {
  func.func @matmul_bias_kernel(%arg0: i32, %arg1: memref<64x88xbf16, #tpu.memory_space<vmem>>, %arg2: memref<88x512xbf16, #tpu.memory_space<vmem>>, %arg3: memref<1x512xf32, #tpu.memory_space<vmem>>, %arg4: memref<64x512xf32, #tpu.memory_space<vmem>>) attributes {dimension_semantics = [#tpu.dimension_semantics<parallel>], iteration_bounds = array<i64: 1>, scalar_prefetch = 0 : i64, scratch_operands = 0 : i64, tpu.core_type = #tpu.core_type<tc>, window_params = [{transform_indices = @transform_0, window_bounds = array<i64: 64, 88>}, {pipeline_mode = #tpu.pipeline_mode<synchronous>, transform_indices = @transform_1, window_bounds = array<i64: 88, 512>}, {pipeline_mode = #tpu.pipeline_mode<synchronous>, transform_indices = @transform_2, window_bounds = array<i64: 1, 512>}, {transform_indices = @transform_3, window_bounds = array<i64: 64, 512>}]} {
    %c0 = arith.constant 0 : index
    %c0_0 = arith.constant 0 : index
    %0 = vector.load %arg1[%c0, %c0_0] : memref<64x88xbf16, #tpu.memory_space<vmem>>, vector<64x88xbf16>
    %c0_1 = arith.constant 0 : index
    %c0_2 = arith.constant 0 : index
    %1 = vector.load %arg2[%c0_1, %c0_2] : memref<88x512xbf16, #tpu.memory_space<vmem>>, vector<88x512xbf16>
    %cst = arith.constant dense<0.000000e+00> : vector<64x512xf32>
    %2 = tpu.matmul %0, %1, %cst {dimension_numbers = #tpu.dot_dimension_numbers<[1], [0], [0], [1], [0, 0, 1, 1], [], []>} : vector<64x88xbf16>, vector<88x512xbf16>, vector<64x512xf32> -> vector<64x512xf32>
    %c0_3 = arith.constant 0 : index
    %c0_4 = arith.constant 0 : index
    %3 = vector.load %arg3[%c0_3, %c0_4] : memref<1x512xf32, #tpu.memory_space<vmem>>, vector<1x512xf32>
    %4 = vector.broadcast %3 : vector<1x512xf32> to vector<64x512xf32>
    %5 = arith.addf %2, %4 : vector<64x512xf32>
    %c0_5 = arith.constant 0 : index
    %c0_6 = arith.constant 0 : index
    %6 = vector.load %arg4[%c0_5, %c0_6] : memref<64x512xf32, #tpu.memory_space<vmem>>, vector<64x512xf32>
    tpu.vector_store %arg4[%c0_5, %c0_6], %5 {strides = array<i32>} : memref<64x512xf32, #tpu.memory_space<vmem>>, vector<64x512xf32>,
    return
  }
  func.func @transform_0(%arg0: i32) -> (i32, i32) {
    %c0_i32 = arith.constant 0 : i32
    %c0_i32_0 = arith.constant 0 : i32
    return %arg0, %c0_i32 : i32, i32
  }
  func.func @transform_1(%arg0: i32) -> (i32, i32) {
    %c0_i32 = arith.constant 0 : i32
    %c0_i32_0 = arith.constant 0 : i32
    %c0_i32_1 = arith.constant 0 : i32
    return %c0_i32, %c0_i32_0 : i32, i32
  }
  func.func @transform_2(%arg0: i32) -> (i32, i32) {
    %c0_i32 = arith.constant 0 : i32
    %c0_i32_0 = arith.constant 0 : i32
    %c0_i32_1 = arith.constant 0 : i32
    return %c0_i32, %c0_i32_0 : i32, i32
  }
  func.func @transform_3(%arg0: i32) -> (i32, i32) {
    %c0_i32 = arith.constant 0 : i32
    %c0_i32_0 = arith.constant 0 : i32
    return %arg0, %c0_i32 : i32, i32
  }
}

module attributes {stable_mosaic.version = 11 : i64} {
  func.func @lstm_recurrent_kernel(%arg0: i32, %arg1: i32, %arg2: memref<8x8x512xf32, #tpu.memory_space<vmem>>, %arg3: memref<128x512xbf16, #tpu.memory_space<vmem>>, %arg4: memref<8x8x128xbf16, #tpu.memory_space<vmem>>, %arg5: memref<8x128xf32, #tpu.memory_space<vmem>>, %arg6: memref<8x128xf32, #tpu.memory_space<vmem>>) attributes {dimension_semantics = [#tpu.dimension_semantics<parallel>, #tpu.dimension_semantics<arbitrary>], iteration_bounds = array<i64: 1, 1>, scalar_prefetch = 0 : i64, scratch_operands = 2 : i64, tpu.core_type = #tpu.core_type<tc>, window_params = [{transform_indices = @transform_0, window_bounds = array<i64: 8, 8, 512>}, {pipeline_mode = #tpu.pipeline_mode<synchronous>, transform_indices = @transform_1, window_bounds = array<i64: 128, 512>}, {transform_indices = @transform_2, window_bounds = array<i64: 8, 8, 128>}]} {
    %c0_i32 = arith.constant 0 : i32
    %0 = arith.cmpi eq, %arg1, %c0_i32 : i32
    %1 = arith.extui %0 : i1 to i32
    %c0_i32_0 = arith.constant 0 : i32
    %2 = arith.cmpi ne, %1, %c0_i32_0 : i32
    scf.if %2 {
      %cst_144 = arith.constant 0.000000e+00 : f32
      %331 = vector.broadcast %cst_144 : f32 to vector<8x128xf32>
      %c0_145 = arith.constant 0 : index
      %c0_146 = arith.constant 0 : index
      %332 = vector.load %arg5[%c0_145, %c0_146] : memref<8x128xf32, #tpu.memory_space<vmem>>, vector<8x128xf32>
      tpu.vector_store %arg5[%c0_145, %c0_146], %331 {strides = array<i32>} : memref<8x128xf32, #tpu.memory_space<vmem>>, vector<8x128xf32>,
      %cst_147 = arith.constant 0.000000e+00 : f32
      %333 = vector.broadcast %cst_147 : f32 to vector<8x128xf32>
      %c0_148 = arith.constant 0 : index
      %c0_149 = arith.constant 0 : index
      %334 = vector.load %arg6[%c0_148, %c0_149] : memref<8x128xf32, #tpu.memory_space<vmem>>, vector<8x128xf32>
      tpu.vector_store %arg6[%c0_148, %c0_149], %333 {strides = array<i32>} : memref<8x128xf32, #tpu.memory_space<vmem>>, vector<8x128xf32>,
    } else {
    }
    %c0_i32_1 = arith.constant 0 : i32
    %3 = arith.index_cast %c0_i32_1 : i32 to index
    %c0 = arith.constant 0 : index
    %c0_2 = arith.constant 0 : index
    %4 = vector.load %arg2[%3, %c0, %c0_2] : memref<8x8x512xf32, #tpu.memory_space<vmem>>, vector<1x8x512xf32>
    %5 = vector.shape_cast %4 : vector<1x8x512xf32> to vector<8x512xf32>
    %c0_3 = arith.constant 0 : index
    %c0_4 = arith.constant 0 : index
    %6 = vector.load %arg5[%c0_3, %c0_4] : memref<8x128xf32, #tpu.memory_space<vmem>>, vector<8x128xf32>
    %7 = arith.truncf %6 : vector<8x128xf32> to vector<8x128xbf16>
    %c0_5 = arith.constant 0 : index
    %c0_6 = arith.constant 0 : index
    %8 = vector.load %arg3[%c0_5, %c0_6] : memref<128x512xbf16, #tpu.memory_space<vmem>>, vector<128x512xbf16>
    %cst = arith.constant dense<0.000000e+00> : vector<8x512xf32>
    %9 = tpu.matmul %7, %8, %cst {dimension_numbers = #tpu.dot_dimension_numbers<[1], [0], [0], [1], [0, 0, 1, 1], [], []>} : vector<8x128xbf16>, vector<128x512xbf16>, vector<8x512xf32> -> vector<8x512xf32>
    %10 = arith.addf %5, %9 : vector<8x512xf32>
    %11 = vector.extract_strided_slice %10 {offsets = [0, 0], sizes = [8, 128], strides = [1, 1]} : vector<8x512xf32> to vector<8x128xf32>
    %12 = arith.negf %11 : vector<8x128xf32>
    %13 = math.exp %12 : vector<8x128xf32>
    %cst_7 = arith.constant 1.000000e+00 : f32
    %14 = vector.broadcast %cst_7 : f32 to vector<8x128xf32>
    %15 = arith.addf %14, %13 : vector<8x128xf32>
    %16 = arith.divf %14, %15 : vector<8x128xf32>
    %17 = vector.extract_strided_slice %10 {offsets = [0, 128], sizes = [8, 128], strides = [1, 1]} : vector<8x512xf32> to vector<8x128xf32>
    %18 = arith.negf %17 : vector<8x128xf32>
    %19 = math.exp %18 : vector<8x128xf32>
    %cst_8 = arith.constant 1.000000e+00 : f32
    %20 = vector.broadcast %cst_8 : f32 to vector<8x128xf32>
    %21 = arith.addf %20, %19 : vector<8x128xf32>
    %22 = arith.divf %20, %21 : vector<8x128xf32>
    %23 = vector.extract_strided_slice %10 {offsets = [0, 256], sizes = [8, 128], strides = [1, 1]} : vector<8x512xf32> to vector<8x128xf32>
    %24 = math.tanh %23 : vector<8x128xf32>
    %25 = vector.extract_strided_slice %10 {offsets = [0, 384], sizes = [8, 128], strides = [1, 1]} : vector<8x512xf32> to vector<8x128xf32>
    %26 = arith.negf %25 : vector<8x128xf32>
    %27 = math.exp %26 : vector<8x128xf32>
    %cst_9 = arith.constant 1.000000e+00 : f32
    %28 = vector.broadcast %cst_9 : f32 to vector<8x128xf32>
    %29 = arith.addf %28, %27 : vector<8x128xf32>
    %30 = arith.divf %28, %29 : vector<8x128xf32>
    %c0_10 = arith.constant 0 : index
    %c0_11 = arith.constant 0 : index
    %31 = vector.load %arg6[%c0_10, %c0_11] : memref<8x128xf32, #tpu.memory_space<vmem>>, vector<8x128xf32>
    %32 = arith.mulf %22, %31 : vector<8x128xf32>
    %33 = arith.mulf %16, %24 : vector<8x128xf32>
    %34 = arith.addf %32, %33 : vector<8x128xf32>
    %35 = math.tanh %34 : vector<8x128xf32>
    %36 = arith.mulf %30, %35 : vector<8x128xf32>
    %c0_12 = arith.constant 0 : index
    %c0_13 = arith.constant 0 : index
    %37 = vector.load %arg6[%c0_12, %c0_13] : memref<8x128xf32, #tpu.memory_space<vmem>>, vector<8x128xf32>
    tpu.vector_store %arg6[%c0_12, %c0_13], %34 {strides = array<i32>} : memref<8x128xf32, #tpu.memory_space<vmem>>, vector<8x128xf32>,
    %c0_14 = arith.constant 0 : index
    %c0_15 = arith.constant 0 : index
    %38 = vector.load %arg5[%c0_14, %c0_15] : memref<8x128xf32, #tpu.memory_space<vmem>>, vector<8x128xf32>
    tpu.vector_store %arg5[%c0_14, %c0_15], %36 {strides = array<i32>} : memref<8x128xf32, #tpu.memory_space<vmem>>, vector<8x128xf32>,
    %39 = arith.truncf %36 : vector<8x128xf32> to vector<8x128xbf16>
    %40 = arith.index_cast %c0_i32_1 : i32 to index
    %c0_16 = arith.constant 0 : index
    %c0_17 = arith.constant 0 : index
    %41 = vector.load %arg4[%40, %c0_16, %c0_17] : memref<8x8x128xbf16, #tpu.memory_space<vmem>>, vector<1x8x128xbf16>
    %42 = vector.shape_cast %41 : vector<1x8x128xbf16> to vector<8x128xbf16>
    %43 = vector.shape_cast %39 : vector<8x128xbf16> to vector<1x8x128xbf16>
    tpu.vector_store %arg4[%40, %c0_16, %c0_17], %43 {strides = array<i32>} : memref<8x8x128xbf16, #tpu.memory_space<vmem>>, vector<1x8x128xbf16>,
    %c1_i32 = arith.constant 1 : i32
    %44 = arith.index_cast %c1_i32 : i32 to index
    %c0_18 = arith.constant 0 : index
    %c0_19 = arith.constant 0 : index
    %45 = vector.load %arg2[%44, %c0_18, %c0_19] : memref<8x8x512xf32, #tpu.memory_space<vmem>>, vector<1x8x512xf32>
    %46 = vector.shape_cast %45 : vector<1x8x512xf32> to vector<8x512xf32>
    %c0_20 = arith.constant 0 : index
    %c0_21 = arith.constant 0 : index
    %47 = vector.load %arg5[%c0_20, %c0_21] : memref<8x128xf32, #tpu.memory_space<vmem>>, vector<8x128xf32>
    %48 = arith.truncf %47 : vector<8x128xf32> to vector<8x128xbf16>
    %c0_22 = arith.constant 0 : index
    %c0_23 = arith.constant 0 : index
    %49 = vector.load %arg3[%c0_22, %c0_23] : memref<128x512xbf16, #tpu.memory_space<vmem>>, vector<128x512xbf16>
    %cst_24 = arith.constant dense<0.000000e+00> : vector<8x512xf32>
    %50 = tpu.matmul %48, %49, %cst_24 {dimension_numbers = #tpu.dot_dimension_numbers<[1], [0], [0], [1], [0, 0, 1, 1], [], []>} : vector<8x128xbf16>, vector<128x512xbf16>, vector<8x512xf32> -> vector<8x512xf32>
    %51 = arith.addf %46, %50 : vector<8x512xf32>
    %52 = vector.extract_strided_slice %51 {offsets = [0, 0], sizes = [8, 128], strides = [1, 1]} : vector<8x512xf32> to vector<8x128xf32>
    %53 = arith.negf %52 : vector<8x128xf32>
    %54 = math.exp %53 : vector<8x128xf32>
    %cst_25 = arith.constant 1.000000e+00 : f32
    %55 = vector.broadcast %cst_25 : f32 to vector<8x128xf32>
    %56 = arith.addf %55, %54 : vector<8x128xf32>
    %57 = arith.divf %55, %56 : vector<8x128xf32>
    %58 = vector.extract_strided_slice %51 {offsets = [0, 128], sizes = [8, 128], strides = [1, 1]} : vector<8x512xf32> to vector<8x128xf32>
    %59 = arith.negf %58 : vector<8x128xf32>
    %60 = math.exp %59 : vector<8x128xf32>
    %cst_26 = arith.constant 1.000000e+00 : f32
    %61 = vector.broadcast %cst_26 : f32 to vector<8x128xf32>
    %62 = arith.addf %61, %60 : vector<8x128xf32>
    %63 = arith.divf %61, %62 : vector<8x128xf32>
    %64 = vector.extract_strided_slice %51 {offsets = [0, 256], sizes = [8, 128], strides = [1, 1]} : vector<8x512xf32> to vector<8x128xf32>
    %65 = math.tanh %64 : vector<8x128xf32>
    %66 = vector.extract_strided_slice %51 {offsets = [0, 384], sizes = [8, 128], strides = [1, 1]} : vector<8x512xf32> to vector<8x128xf32>
    %67 = arith.negf %66 : vector<8x128xf32>
    %68 = math.exp %67 : vector<8x128xf32>
    %cst_27 = arith.constant 1.000000e+00 : f32
    %69 = vector.broadcast %cst_27 : f32 to vector<8x128xf32>
    %70 = arith.addf %69, %68 : vector<8x128xf32>
    %71 = arith.divf %69, %70 : vector<8x128xf32>
    %c0_28 = arith.constant 0 : index
    %c0_29 = arith.constant 0 : index
    %72 = vector.load %arg6[%c0_28, %c0_29] : memref<8x128xf32, #tpu.memory_space<vmem>>, vector<8x128xf32>
    %73 = arith.mulf %63, %72 : vector<8x128xf32>
    %74 = arith.mulf %57, %65 : vector<8x128xf32>
    %75 = arith.addf %73, %74 : vector<8x128xf32>
    %76 = math.tanh %75 : vector<8x128xf32>
    %77 = arith.mulf %71, %76 : vector<8x128xf32>
    %c0_30 = arith.constant 0 : index
    %c0_31 = arith.constant 0 : index
    %78 = vector.load %arg6[%c0_30, %c0_31] : memref<8x128xf32, #tpu.memory_space<vmem>>, vector<8x128xf32>
    tpu.vector_store %arg6[%c0_30, %c0_31], %75 {strides = array<i32>} : memref<8x128xf32, #tpu.memory_space<vmem>>, vector<8x128xf32>,
    %c0_32 = arith.constant 0 : index
    %c0_33 = arith.constant 0 : index
    %79 = vector.load %arg5[%c0_32, %c0_33] : memref<8x128xf32, #tpu.memory_space<vmem>>, vector<8x128xf32>
    tpu.vector_store %arg5[%c0_32, %c0_33], %77 {strides = array<i32>} : memref<8x128xf32, #tpu.memory_space<vmem>>, vector<8x128xf32>,
    %80 = arith.truncf %77 : vector<8x128xf32> to vector<8x128xbf16>
    %81 = arith.index_cast %c1_i32 : i32 to index
    %c0_34 = arith.constant 0 : index
    %c0_35 = arith.constant 0 : index
    %82 = vector.load %arg4[%81, %c0_34, %c0_35] : memref<8x8x128xbf16, #tpu.memory_space<vmem>>, vector<1x8x128xbf16>
    %83 = vector.shape_cast %82 : vector<1x8x128xbf16> to vector<8x128xbf16>
    %84 = vector.shape_cast %80 : vector<8x128xbf16> to vector<1x8x128xbf16>
    tpu.vector_store %arg4[%81, %c0_34, %c0_35], %84 {strides = array<i32>} : memref<8x8x128xbf16, #tpu.memory_space<vmem>>, vector<1x8x128xbf16>,
    %c2_i32 = arith.constant 2 : i32
    %85 = arith.index_cast %c2_i32 : i32 to index
    %c0_36 = arith.constant 0 : index
    %c0_37 = arith.constant 0 : index
    %86 = vector.load %arg2[%85, %c0_36, %c0_37] : memref<8x8x512xf32, #tpu.memory_space<vmem>>, vector<1x8x512xf32>
    %87 = vector.shape_cast %86 : vector<1x8x512xf32> to vector<8x512xf32>
    %c0_38 = arith.constant 0 : index
    %c0_39 = arith.constant 0 : index
    %88 = vector.load %arg5[%c0_38, %c0_39] : memref<8x128xf32, #tpu.memory_space<vmem>>, vector<8x128xf32>
    %89 = arith.truncf %88 : vector<8x128xf32> to vector<8x128xbf16>
    %c0_40 = arith.constant 0 : index
    %c0_41 = arith.constant 0 : index
    %90 = vector.load %arg3[%c0_40, %c0_41] : memref<128x512xbf16, #tpu.memory_space<vmem>>, vector<128x512xbf16>
    %cst_42 = arith.constant dense<0.000000e+00> : vector<8x512xf32>
    %91 = tpu.matmul %89, %90, %cst_42 {dimension_numbers = #tpu.dot_dimension_numbers<[1], [0], [0], [1], [0, 0, 1, 1], [], []>} : vector<8x128xbf16>, vector<128x512xbf16>, vector<8x512xf32> -> vector<8x512xf32>
    %92 = arith.addf %87, %91 : vector<8x512xf32>
    %93 = vector.extract_strided_slice %92 {offsets = [0, 0], sizes = [8, 128], strides = [1, 1]} : vector<8x512xf32> to vector<8x128xf32>
    %94 = arith.negf %93 : vector<8x128xf32>
    %95 = math.exp %94 : vector<8x128xf32>
    %cst_43 = arith.constant 1.000000e+00 : f32
    %96 = vector.broadcast %cst_43 : f32 to vector<8x128xf32>
    %97 = arith.addf %96, %95 : vector<8x128xf32>
    %98 = arith.divf %96, %97 : vector<8x128xf32>
    %99 = vector.extract_strided_slice %92 {offsets = [0, 128], sizes = [8, 128], strides = [1, 1]} : vector<8x512xf32> to vector<8x128xf32>
    %100 = arith.negf %99 : vector<8x128xf32>
    %101 = math.exp %100 : vector<8x128xf32>
    %cst_44 = arith.constant 1.000000e+00 : f32
    %102 = vector.broadcast %cst_44 : f32 to vector<8x128xf32>
    %103 = arith.addf %102, %101 : vector<8x128xf32>
    %104 = arith.divf %102, %103 : vector<8x128xf32>
    %105 = vector.extract_strided_slice %92 {offsets = [0, 256], sizes = [8, 128], strides = [1, 1]} : vector<8x512xf32> to vector<8x128xf32>
    %106 = math.tanh %105 : vector<8x128xf32>
    %107 = vector.extract_strided_slice %92 {offsets = [0, 384], sizes = [8, 128], strides = [1, 1]} : vector<8x512xf32> to vector<8x128xf32>
    %108 = arith.negf %107 : vector<8x128xf32>
    %109 = math.exp %108 : vector<8x128xf32>
    %cst_45 = arith.constant 1.000000e+00 : f32
    %110 = vector.broadcast %cst_45 : f32 to vector<8x128xf32>
    %111 = arith.addf %110, %109 : vector<8x128xf32>
    %112 = arith.divf %110, %111 : vector<8x128xf32>
    %c0_46 = arith.constant 0 : index
    %c0_47 = arith.constant 0 : index
    %113 = vector.load %arg6[%c0_46, %c0_47] : memref<8x128xf32, #tpu.memory_space<vmem>>, vector<8x128xf32>
    %114 = arith.mulf %104, %113 : vector<8x128xf32>
    %115 = arith.mulf %98, %106 : vector<8x128xf32>
    %116 = arith.addf %114, %115 : vector<8x128xf32>
    %117 = math.tanh %116 : vector<8x128xf32>
    %118 = arith.mulf %112, %117 : vector<8x128xf32>
    %c0_48 = arith.constant 0 : index
    %c0_49 = arith.constant 0 : index
    %119 = vector.load %arg6[%c0_48, %c0_49] : memref<8x128xf32, #tpu.memory_space<vmem>>, vector<8x128xf32>
    tpu.vector_store %arg6[%c0_48, %c0_49], %116 {strides = array<i32>} : memref<8x128xf32, #tpu.memory_space<vmem>>, vector<8x128xf32>,
    %c0_50 = arith.constant 0 : index
    %c0_51 = arith.constant 0 : index
    %120 = vector.load %arg5[%c0_50, %c0_51] : memref<8x128xf32, #tpu.memory_space<vmem>>, vector<8x128xf32>
    tpu.vector_store %arg5[%c0_50, %c0_51], %118 {strides = array<i32>} : memref<8x128xf32, #tpu.memory_space<vmem>>, vector<8x128xf32>,
    %121 = arith.truncf %118 : vector<8x128xf32> to vector<8x128xbf16>
    %122 = arith.index_cast %c2_i32 : i32 to index
    %c0_52 = arith.constant 0 : index
    %c0_53 = arith.constant 0 : index
    %123 = vector.load %arg4[%122, %c0_52, %c0_53] : memref<8x8x128xbf16, #tpu.memory_space<vmem>>, vector<1x8x128xbf16>
    %124 = vector.shape_cast %123 : vector<1x8x128xbf16> to vector<8x128xbf16>
    %125 = vector.shape_cast %121 : vector<8x128xbf16> to vector<1x8x128xbf16>
    tpu.vector_store %arg4[%122, %c0_52, %c0_53], %125 {strides = array<i32>} : memref<8x8x128xbf16, #tpu.memory_space<vmem>>, vector<1x8x128xbf16>,
    %c3_i32 = arith.constant 3 : i32
    %126 = arith.index_cast %c3_i32 : i32 to index
    %c0_54 = arith.constant 0 : index
    %c0_55 = arith.constant 0 : index
    %127 = vector.load %arg2[%126, %c0_54, %c0_55] : memref<8x8x512xf32, #tpu.memory_space<vmem>>, vector<1x8x512xf32>
    %128 = vector.shape_cast %127 : vector<1x8x512xf32> to vector<8x512xf32>
    %c0_56 = arith.constant 0 : index
    %c0_57 = arith.constant 0 : index
    %129 = vector.load %arg5[%c0_56, %c0_57] : memref<8x128xf32, #tpu.memory_space<vmem>>, vector<8x128xf32>
    %130 = arith.truncf %129 : vector<8x128xf32> to vector<8x128xbf16>
    %c0_58 = arith.constant 0 : index
    %c0_59 = arith.constant 0 : index
    %131 = vector.load %arg3[%c0_58, %c0_59] : memref<128x512xbf16, #tpu.memory_space<vmem>>, vector<128x512xbf16>
    %cst_60 = arith.constant dense<0.000000e+00> : vector<8x512xf32>
    %132 = tpu.matmul %130, %131, %cst_60 {dimension_numbers = #tpu.dot_dimension_numbers<[1], [0], [0], [1], [0, 0, 1, 1], [], []>} : vector<8x128xbf16>, vector<128x512xbf16>, vector<8x512xf32> -> vector<8x512xf32>
    %133 = arith.addf %128, %132 : vector<8x512xf32>
    %134 = vector.extract_strided_slice %133 {offsets = [0, 0], sizes = [8, 128], strides = [1, 1]} : vector<8x512xf32> to vector<8x128xf32>
    %135 = arith.negf %134 : vector<8x128xf32>
    %136 = math.exp %135 : vector<8x128xf32>
    %cst_61 = arith.constant 1.000000e+00 : f32
    %137 = vector.broadcast %cst_61 : f32 to vector<8x128xf32>
    %138 = arith.addf %137, %136 : vector<8x128xf32>
    %139 = arith.divf %137, %138 : vector<8x128xf32>
    %140 = vector.extract_strided_slice %133 {offsets = [0, 128], sizes = [8, 128], strides = [1, 1]} : vector<8x512xf32> to vector<8x128xf32>
    %141 = arith.negf %140 : vector<8x128xf32>
    %142 = math.exp %141 : vector<8x128xf32>
    %cst_62 = arith.constant 1.000000e+00 : f32
    %143 = vector.broadcast %cst_62 : f32 to vector<8x128xf32>
    %144 = arith.addf %143, %142 : vector<8x128xf32>
    %145 = arith.divf %143, %144 : vector<8x128xf32>
    %146 = vector.extract_strided_slice %133 {offsets = [0, 256], sizes = [8, 128], strides = [1, 1]} : vector<8x512xf32> to vector<8x128xf32>
    %147 = math.tanh %146 : vector<8x128xf32>
    %148 = vector.extract_strided_slice %133 {offsets = [0, 384], sizes = [8, 128], strides = [1, 1]} : vector<8x512xf32> to vector<8x128xf32>
    %149 = arith.negf %148 : vector<8x128xf32>
    %150 = math.exp %149 : vector<8x128xf32>
    %cst_63 = arith.constant 1.000000e+00 : f32
    %151 = vector.broadcast %cst_63 : f32 to vector<8x128xf32>
    %152 = arith.addf %151, %150 : vector<8x128xf32>
    %153 = arith.divf %151, %152 : vector<8x128xf32>
    %c0_64 = arith.constant 0 : index
    %c0_65 = arith.constant 0 : index
    %154 = vector.load %arg6[%c0_64, %c0_65] : memref<8x128xf32, #tpu.memory_space<vmem>>, vector<8x128xf32>
    %155 = arith.mulf %145, %154 : vector<8x128xf32>
    %156 = arith.mulf %139, %147 : vector<8x128xf32>
    %157 = arith.addf %155, %156 : vector<8x128xf32>
    %158 = math.tanh %157 : vector<8x128xf32>
    %159 = arith.mulf %153, %158 : vector<8x128xf32>
    %c0_66 = arith.constant 0 : index
    %c0_67 = arith.constant 0 : index
    %160 = vector.load %arg6[%c0_66, %c0_67] : memref<8x128xf32, #tpu.memory_space<vmem>>, vector<8x128xf32>
    tpu.vector_store %arg6[%c0_66, %c0_67], %157 {strides = array<i32>} : memref<8x128xf32, #tpu.memory_space<vmem>>, vector<8x128xf32>,
    %c0_68 = arith.constant 0 : index
    %c0_69 = arith.constant 0 : index
    %161 = vector.load %arg5[%c0_68, %c0_69] : memref<8x128xf32, #tpu.memory_space<vmem>>, vector<8x128xf32>
    tpu.vector_store %arg5[%c0_68, %c0_69], %159 {strides = array<i32>} : memref<8x128xf32, #tpu.memory_space<vmem>>, vector<8x128xf32>,
    %162 = arith.truncf %159 : vector<8x128xf32> to vector<8x128xbf16>
    %163 = arith.index_cast %c3_i32 : i32 to index
    %c0_70 = arith.constant 0 : index
    %c0_71 = arith.constant 0 : index
    %164 = vector.load %arg4[%163, %c0_70, %c0_71] : memref<8x8x128xbf16, #tpu.memory_space<vmem>>, vector<1x8x128xbf16>
    %165 = vector.shape_cast %164 : vector<1x8x128xbf16> to vector<8x128xbf16>
    %166 = vector.shape_cast %162 : vector<8x128xbf16> to vector<1x8x128xbf16>
    tpu.vector_store %arg4[%163, %c0_70, %c0_71], %166 {strides = array<i32>} : memref<8x8x128xbf16, #tpu.memory_space<vmem>>, vector<1x8x128xbf16>,
    %c4_i32 = arith.constant 4 : i32
    %167 = arith.index_cast %c4_i32 : i32 to index
    %c0_72 = arith.constant 0 : index
    %c0_73 = arith.constant 0 : index
    %168 = vector.load %arg2[%167, %c0_72, %c0_73] : memref<8x8x512xf32, #tpu.memory_space<vmem>>, vector<1x8x512xf32>
    %169 = vector.shape_cast %168 : vector<1x8x512xf32> to vector<8x512xf32>
    %c0_74 = arith.constant 0 : index
    %c0_75 = arith.constant 0 : index
    %170 = vector.load %arg5[%c0_74, %c0_75] : memref<8x128xf32, #tpu.memory_space<vmem>>, vector<8x128xf32>
    %171 = arith.truncf %170 : vector<8x128xf32> to vector<8x128xbf16>
    %c0_76 = arith.constant 0 : index
    %c0_77 = arith.constant 0 : index
    %172 = vector.load %arg3[%c0_76, %c0_77] : memref<128x512xbf16, #tpu.memory_space<vmem>>, vector<128x512xbf16>
    %cst_78 = arith.constant dense<0.000000e+00> : vector<8x512xf32>
    %173 = tpu.matmul %171, %172, %cst_78 {dimension_numbers = #tpu.dot_dimension_numbers<[1], [0], [0], [1], [0, 0, 1, 1], [], []>} : vector<8x128xbf16>, vector<128x512xbf16>, vector<8x512xf32> -> vector<8x512xf32>
    %174 = arith.addf %169, %173 : vector<8x512xf32>
    %175 = vector.extract_strided_slice %174 {offsets = [0, 0], sizes = [8, 128], strides = [1, 1]} : vector<8x512xf32> to vector<8x128xf32>
    %176 = arith.negf %175 : vector<8x128xf32>
    %177 = math.exp %176 : vector<8x128xf32>
    %cst_79 = arith.constant 1.000000e+00 : f32
    %178 = vector.broadcast %cst_79 : f32 to vector<8x128xf32>
    %179 = arith.addf %178, %177 : vector<8x128xf32>
    %180 = arith.divf %178, %179 : vector<8x128xf32>
    %181 = vector.extract_strided_slice %174 {offsets = [0, 128], sizes = [8, 128], strides = [1, 1]} : vector<8x512xf32> to vector<8x128xf32>
    %182 = arith.negf %181 : vector<8x128xf32>
    %183 = math.exp %182 : vector<8x128xf32>
    %cst_80 = arith.constant 1.000000e+00 : f32
    %184 = vector.broadcast %cst_80 : f32 to vector<8x128xf32>
    %185 = arith.addf %184, %183 : vector<8x128xf32>
    %186 = arith.divf %184, %185 : vector<8x128xf32>
    %187 = vector.extract_strided_slice %174 {offsets = [0, 256], sizes = [8, 128], strides = [1, 1]} : vector<8x512xf32> to vector<8x128xf32>
    %188 = math.tanh %187 : vector<8x128xf32>
    %189 = vector.extract_strided_slice %174 {offsets = [0, 384], sizes = [8, 128], strides = [1, 1]} : vector<8x512xf32> to vector<8x128xf32>
    %190 = arith.negf %189 : vector<8x128xf32>
    %191 = math.exp %190 : vector<8x128xf32>
    %cst_81 = arith.constant 1.000000e+00 : f32
    %192 = vector.broadcast %cst_81 : f32 to vector<8x128xf32>
    %193 = arith.addf %192, %191 : vector<8x128xf32>
    %194 = arith.divf %192, %193 : vector<8x128xf32>
    %c0_82 = arith.constant 0 : index
    %c0_83 = arith.constant 0 : index
    %195 = vector.load %arg6[%c0_82, %c0_83] : memref<8x128xf32, #tpu.memory_space<vmem>>, vector<8x128xf32>
    %196 = arith.mulf %186, %195 : vector<8x128xf32>
    %197 = arith.mulf %180, %188 : vector<8x128xf32>
    %198 = arith.addf %196, %197 : vector<8x128xf32>
    %199 = math.tanh %198 : vector<8x128xf32>
    %200 = arith.mulf %194, %199 : vector<8x128xf32>
    %c0_84 = arith.constant 0 : index
    %c0_85 = arith.constant 0 : index
    %201 = vector.load %arg6[%c0_84, %c0_85] : memref<8x128xf32, #tpu.memory_space<vmem>>, vector<8x128xf32>
    tpu.vector_store %arg6[%c0_84, %c0_85], %198 {strides = array<i32>} : memref<8x128xf32, #tpu.memory_space<vmem>>, vector<8x128xf32>,
    %c0_86 = arith.constant 0 : index
    %c0_87 = arith.constant 0 : index
    %202 = vector.load %arg5[%c0_86, %c0_87] : memref<8x128xf32, #tpu.memory_space<vmem>>, vector<8x128xf32>
    tpu.vector_store %arg5[%c0_86, %c0_87], %200 {strides = array<i32>} : memref<8x128xf32, #tpu.memory_space<vmem>>, vector<8x128xf32>,
    %203 = arith.truncf %200 : vector<8x128xf32> to vector<8x128xbf16>
    %204 = arith.index_cast %c4_i32 : i32 to index
    %c0_88 = arith.constant 0 : index
    %c0_89 = arith.constant 0 : index
    %205 = vector.load %arg4[%204, %c0_88, %c0_89] : memref<8x8x128xbf16, #tpu.memory_space<vmem>>, vector<1x8x128xbf16>
    %206 = vector.shape_cast %205 : vector<1x8x128xbf16> to vector<8x128xbf16>
    %207 = vector.shape_cast %203 : vector<8x128xbf16> to vector<1x8x128xbf16>
    tpu.vector_store %arg4[%204, %c0_88, %c0_89], %207 {strides = array<i32>} : memref<8x8x128xbf16, #tpu.memory_space<vmem>>, vector<1x8x128xbf16>,
    %c5_i32 = arith.constant 5 : i32
    %208 = arith.index_cast %c5_i32 : i32 to index
    %c0_90 = arith.constant 0 : index
    %c0_91 = arith.constant 0 : index
    %209 = vector.load %arg2[%208, %c0_90, %c0_91] : memref<8x8x512xf32, #tpu.memory_space<vmem>>, vector<1x8x512xf32>
    %210 = vector.shape_cast %209 : vector<1x8x512xf32> to vector<8x512xf32>
    %c0_92 = arith.constant 0 : index
    %c0_93 = arith.constant 0 : index
    %211 = vector.load %arg5[%c0_92, %c0_93] : memref<8x128xf32, #tpu.memory_space<vmem>>, vector<8x128xf32>
    %212 = arith.truncf %211 : vector<8x128xf32> to vector<8x128xbf16>
    %c0_94 = arith.constant 0 : index
    %c0_95 = arith.constant 0 : index
    %213 = vector.load %arg3[%c0_94, %c0_95] : memref<128x512xbf16, #tpu.memory_space<vmem>>, vector<128x512xbf16>
    %cst_96 = arith.constant dense<0.000000e+00> : vector<8x512xf32>
    %214 = tpu.matmul %212, %213, %cst_96 {dimension_numbers = #tpu.dot_dimension_numbers<[1], [0], [0], [1], [0, 0, 1, 1], [], []>} : vector<8x128xbf16>, vector<128x512xbf16>, vector<8x512xf32> -> vector<8x512xf32>
    %215 = arith.addf %210, %214 : vector<8x512xf32>
    %216 = vector.extract_strided_slice %215 {offsets = [0, 0], sizes = [8, 128], strides = [1, 1]} : vector<8x512xf32> to vector<8x128xf32>
    %217 = arith.negf %216 : vector<8x128xf32>
    %218 = math.exp %217 : vector<8x128xf32>
    %cst_97 = arith.constant 1.000000e+00 : f32
    %219 = vector.broadcast %cst_97 : f32 to vector<8x128xf32>
    %220 = arith.addf %219, %218 : vector<8x128xf32>
    %221 = arith.divf %219, %220 : vector<8x128xf32>
    %222 = vector.extract_strided_slice %215 {offsets = [0, 128], sizes = [8, 128], strides = [1, 1]} : vector<8x512xf32> to vector<8x128xf32>
    %223 = arith.negf %222 : vector<8x128xf32>
    %224 = math.exp %223 : vector<8x128xf32>
    %cst_98 = arith.constant 1.000000e+00 : f32
    %225 = vector.broadcast %cst_98 : f32 to vector<8x128xf32>
    %226 = arith.addf %225, %224 : vector<8x128xf32>
    %227 = arith.divf %225, %226 : vector<8x128xf32>
    %228 = vector.extract_strided_slice %215 {offsets = [0, 256], sizes = [8, 128], strides = [1, 1]} : vector<8x512xf32> to vector<8x128xf32>
    %229 = math.tanh %228 : vector<8x128xf32>
    %230 = vector.extract_strided_slice %215 {offsets = [0, 384], sizes = [8, 128], strides = [1, 1]} : vector<8x512xf32> to vector<8x128xf32>
    %231 = arith.negf %230 : vector<8x128xf32>
    %232 = math.exp %231 : vector<8x128xf32>
    %cst_99 = arith.constant 1.000000e+00 : f32
    %233 = vector.broadcast %cst_99 : f32 to vector<8x128xf32>
    %234 = arith.addf %233, %232 : vector<8x128xf32>
    %235 = arith.divf %233, %234 : vector<8x128xf32>
    %c0_100 = arith.constant 0 : index
    %c0_101 = arith.constant 0 : index
    %236 = vector.load %arg6[%c0_100, %c0_101] : memref<8x128xf32, #tpu.memory_space<vmem>>, vector<8x128xf32>
    %237 = arith.mulf %227, %236 : vector<8x128xf32>
    %238 = arith.mulf %221, %229 : vector<8x128xf32>
    %239 = arith.addf %237, %238 : vector<8x128xf32>
    %240 = math.tanh %239 : vector<8x128xf32>
    %241 = arith.mulf %235, %240 : vector<8x128xf32>
    %c0_102 = arith.constant 0 : index
    %c0_103 = arith.constant 0 : index
    %242 = vector.load %arg6[%c0_102, %c0_103] : memref<8x128xf32, #tpu.memory_space<vmem>>, vector<8x128xf32>
    tpu.vector_store %arg6[%c0_102, %c0_103], %239 {strides = array<i32>} : memref<8x128xf32, #tpu.memory_space<vmem>>, vector<8x128xf32>,
    %c0_104 = arith.constant 0 : index
    %c0_105 = arith.constant 0 : index
    %243 = vector.load %arg5[%c0_104, %c0_105] : memref<8x128xf32, #tpu.memory_space<vmem>>, vector<8x128xf32>
    tpu.vector_store %arg5[%c0_104, %c0_105], %241 {strides = array<i32>} : memref<8x128xf32, #tpu.memory_space<vmem>>, vector<8x128xf32>,
    %244 = arith.truncf %241 : vector<8x128xf32> to vector<8x128xbf16>
    %245 = arith.index_cast %c5_i32 : i32 to index
    %c0_106 = arith.constant 0 : index
    %c0_107 = arith.constant 0 : index
    %246 = vector.load %arg4[%245, %c0_106, %c0_107] : memref<8x8x128xbf16, #tpu.memory_space<vmem>>, vector<1x8x128xbf16>
    %247 = vector.shape_cast %246 : vector<1x8x128xbf16> to vector<8x128xbf16>
    %248 = vector.shape_cast %244 : vector<8x128xbf16> to vector<1x8x128xbf16>
    tpu.vector_store %arg4[%245, %c0_106, %c0_107], %248 {strides = array<i32>} : memref<8x8x128xbf16, #tpu.memory_space<vmem>>, vector<1x8x128xbf16>,
    %c6_i32 = arith.constant 6 : i32
    %249 = arith.index_cast %c6_i32 : i32 to index
    %c0_108 = arith.constant 0 : index
    %c0_109 = arith.constant 0 : index
    %250 = vector.load %arg2[%249, %c0_108, %c0_109] : memref<8x8x512xf32, #tpu.memory_space<vmem>>, vector<1x8x512xf32>
    %251 = vector.shape_cast %250 : vector<1x8x512xf32> to vector<8x512xf32>
    %c0_110 = arith.constant 0 : index
    %c0_111 = arith.constant 0 : index
    %252 = vector.load %arg5[%c0_110, %c0_111] : memref<8x128xf32, #tpu.memory_space<vmem>>, vector<8x128xf32>
    %253 = arith.truncf %252 : vector<8x128xf32> to vector<8x128xbf16>
    %c0_112 = arith.constant 0 : index
    %c0_113 = arith.constant 0 : index
    %254 = vector.load %arg3[%c0_112, %c0_113] : memref<128x512xbf16, #tpu.memory_space<vmem>>, vector<128x512xbf16>
    %cst_114 = arith.constant dense<0.000000e+00> : vector<8x512xf32>
    %255 = tpu.matmul %253, %254, %cst_114 {dimension_numbers = #tpu.dot_dimension_numbers<[1], [0], [0], [1], [0, 0, 1, 1], [], []>} : vector<8x128xbf16>, vector<128x512xbf16>, vector<8x512xf32> -> vector<8x512xf32>
    %256 = arith.addf %251, %255 : vector<8x512xf32>
    %257 = vector.extract_strided_slice %256 {offsets = [0, 0], sizes = [8, 128], strides = [1, 1]} : vector<8x512xf32> to vector<8x128xf32>
    %258 = arith.negf %257 : vector<8x128xf32>
    %259 = math.exp %258 : vector<8x128xf32>
    %cst_115 = arith.constant 1.000000e+00 : f32
    %260 = vector.broadcast %cst_115 : f32 to vector<8x128xf32>
    %261 = arith.addf %260, %259 : vector<8x128xf32>
    %262 = arith.divf %260, %261 : vector<8x128xf32>
    %263 = vector.extract_strided_slice %256 {offsets = [0, 128], sizes = [8, 128], strides = [1, 1]} : vector<8x512xf32> to vector<8x128xf32>
    %264 = arith.negf %263 : vector<8x128xf32>
    %265 = math.exp %264 : vector<8x128xf32>
    %cst_116 = arith.constant 1.000000e+00 : f32
    %266 = vector.broadcast %cst_116 : f32 to vector<8x128xf32>
    %267 = arith.addf %266, %265 : vector<8x128xf32>
    %268 = arith.divf %266, %267 : vector<8x128xf32>
    %269 = vector.extract_strided_slice %256 {offsets = [0, 256], sizes = [8, 128], strides = [1, 1]} : vector<8x512xf32> to vector<8x128xf32>
    %270 = math.tanh %269 : vector<8x128xf32>
    %271 = vector.extract_strided_slice %256 {offsets = [0, 384], sizes = [8, 128], strides = [1, 1]} : vector<8x512xf32> to vector<8x128xf32>
    %272 = arith.negf %271 : vector<8x128xf32>
    %273 = math.exp %272 : vector<8x128xf32>
    %cst_117 = arith.constant 1.000000e+00 : f32
    %274 = vector.broadcast %cst_117 : f32 to vector<8x128xf32>
    %275 = arith.addf %274, %273 : vector<8x128xf32>
    %276 = arith.divf %274, %275 : vector<8x128xf32>
    %c0_118 = arith.constant 0 : index
    %c0_119 = arith.constant 0 : index
    %277 = vector.load %arg6[%c0_118, %c0_119] : memref<8x128xf32, #tpu.memory_space<vmem>>, vector<8x128xf32>
    %278 = arith.mulf %268, %277 : vector<8x128xf32>
    %279 = arith.mulf %262, %270 : vector<8x128xf32>
    %280 = arith.addf %278, %279 : vector<8x128xf32>
    %281 = math.tanh %280 : vector<8x128xf32>
    %282 = arith.mulf %276, %281 : vector<8x128xf32>
    %c0_120 = arith.constant 0 : index
    %c0_121 = arith.constant 0 : index
    %283 = vector.load %arg6[%c0_120, %c0_121] : memref<8x128xf32, #tpu.memory_space<vmem>>, vector<8x128xf32>
    tpu.vector_store %arg6[%c0_120, %c0_121], %280 {strides = array<i32>} : memref<8x128xf32, #tpu.memory_space<vmem>>, vector<8x128xf32>,
    %c0_122 = arith.constant 0 : index
    %c0_123 = arith.constant 0 : index
    %284 = vector.load %arg5[%c0_122, %c0_123] : memref<8x128xf32, #tpu.memory_space<vmem>>, vector<8x128xf32>
    tpu.vector_store %arg5[%c0_122, %c0_123], %282 {strides = array<i32>} : memref<8x128xf32, #tpu.memory_space<vmem>>, vector<8x128xf32>,
    %285 = arith.truncf %282 : vector<8x128xf32> to vector<8x128xbf16>
    %286 = arith.index_cast %c6_i32 : i32 to index
    %c0_124 = arith.constant 0 : index
    %c0_125 = arith.constant 0 : index
    %287 = vector.load %arg4[%286, %c0_124, %c0_125] : memref<8x8x128xbf16, #tpu.memory_space<vmem>>, vector<1x8x128xbf16>
    %288 = vector.shape_cast %287 : vector<1x8x128xbf16> to vector<8x128xbf16>
    %289 = vector.shape_cast %285 : vector<8x128xbf16> to vector<1x8x128xbf16>
    tpu.vector_store %arg4[%286, %c0_124, %c0_125], %289 {strides = array<i32>} : memref<8x8x128xbf16, #tpu.memory_space<vmem>>, vector<1x8x128xbf16>,
    %c7_i32 = arith.constant 7 : i32
    %290 = arith.index_cast %c7_i32 : i32 to index
    %c0_126 = arith.constant 0 : index
    %c0_127 = arith.constant 0 : index
    %291 = vector.load %arg2[%290, %c0_126, %c0_127] : memref<8x8x512xf32, #tpu.memory_space<vmem>>, vector<1x8x512xf32>
    %292 = vector.shape_cast %291 : vector<1x8x512xf32> to vector<8x512xf32>
    %c0_128 = arith.constant 0 : index
    %c0_129 = arith.constant 0 : index
    %293 = vector.load %arg5[%c0_128, %c0_129] : memref<8x128xf32, #tpu.memory_space<vmem>>, vector<8x128xf32>
    %294 = arith.truncf %293 : vector<8x128xf32> to vector<8x128xbf16>
    %c0_130 = arith.constant 0 : index
    %c0_131 = arith.constant 0 : index
    %295 = vector.load %arg3[%c0_130, %c0_131] : memref<128x512xbf16, #tpu.memory_space<vmem>>, vector<128x512xbf16>
    %cst_132 = arith.constant dense<0.000000e+00> : vector<8x512xf32>
    %296 = tpu.matmul %294, %295, %cst_132 {dimension_numbers = #tpu.dot_dimension_numbers<[1], [0], [0], [1], [0, 0, 1, 1], [], []>} : vector<8x128xbf16>, vector<128x512xbf16>, vector<8x512xf32> -> vector<8x512xf32>
    %297 = arith.addf %292, %296 : vector<8x512xf32>
    %298 = vector.extract_strided_slice %297 {offsets = [0, 0], sizes = [8, 128], strides = [1, 1]} : vector<8x512xf32> to vector<8x128xf32>
    %299 = arith.negf %298 : vector<8x128xf32>
    %300 = math.exp %299 : vector<8x128xf32>
    %cst_133 = arith.constant 1.000000e+00 : f32
    %301 = vector.broadcast %cst_133 : f32 to vector<8x128xf32>
    %302 = arith.addf %301, %300 : vector<8x128xf32>
    %303 = arith.divf %301, %302 : vector<8x128xf32>
    %304 = vector.extract_strided_slice %297 {offsets = [0, 128], sizes = [8, 128], strides = [1, 1]} : vector<8x512xf32> to vector<8x128xf32>
    %305 = arith.negf %304 : vector<8x128xf32>
    %306 = math.exp %305 : vector<8x128xf32>
    %cst_134 = arith.constant 1.000000e+00 : f32
    %307 = vector.broadcast %cst_134 : f32 to vector<8x128xf32>
    %308 = arith.addf %307, %306 : vector<8x128xf32>
    %309 = arith.divf %307, %308 : vector<8x128xf32>
    %310 = vector.extract_strided_slice %297 {offsets = [0, 256], sizes = [8, 128], strides = [1, 1]} : vector<8x512xf32> to vector<8x128xf32>
    %311 = math.tanh %310 : vector<8x128xf32>
    %312 = vector.extract_strided_slice %297 {offsets = [0, 384], sizes = [8, 128], strides = [1, 1]} : vector<8x512xf32> to vector<8x128xf32>
    %313 = arith.negf %312 : vector<8x128xf32>
    %314 = math.exp %313 : vector<8x128xf32>
    %cst_135 = arith.constant 1.000000e+00 : f32
    %315 = vector.broadcast %cst_135 : f32 to vector<8x128xf32>
    %316 = arith.addf %315, %314 : vector<8x128xf32>
    %317 = arith.divf %315, %316 : vector<8x128xf32>
    %c0_136 = arith.constant 0 : index
    %c0_137 = arith.constant 0 : index
    %318 = vector.load %arg6[%c0_136, %c0_137] : memref<8x128xf32, #tpu.memory_space<vmem>>, vector<8x128xf32>
    %319 = arith.mulf %309, %318 : vector<8x128xf32>
    %320 = arith.mulf %303, %311 : vector<8x128xf32>
    %321 = arith.addf %319, %320 : vector<8x128xf32>
    %322 = math.tanh %321 : vector<8x128xf32>
    %323 = arith.mulf %317, %322 : vector<8x128xf32>
    %c0_138 = arith.constant 0 : index
    %c0_139 = arith.constant 0 : index
    %324 = vector.load %arg6[%c0_138, %c0_139] : memref<8x128xf32, #tpu.memory_space<vmem>>, vector<8x128xf32>
    tpu.vector_store %arg6[%c0_138, %c0_139], %321 {strides = array<i32>} : memref<8x128xf32, #tpu.memory_space<vmem>>, vector<8x128xf32>,
    %c0_140 = arith.constant 0 : index
    %c0_141 = arith.constant 0 : index
    %325 = vector.load %arg5[%c0_140, %c0_141] : memref<8x128xf32, #tpu.memory_space<vmem>>, vector<8x128xf32>
    tpu.vector_store %arg5[%c0_140, %c0_141], %323 {strides = array<i32>} : memref<8x128xf32, #tpu.memory_space<vmem>>, vector<8x128xf32>,
    %326 = arith.truncf %323 : vector<8x128xf32> to vector<8x128xbf16>
    %327 = arith.index_cast %c7_i32 : i32 to index
    %c0_142 = arith.constant 0 : index
    %c0_143 = arith.constant 0 : index
    %328 = vector.load %arg4[%327, %c0_142, %c0_143] : memref<8x8x128xbf16, #tpu.memory_space<vmem>>, vector<1x8x128xbf16>
    %329 = vector.shape_cast %328 : vector<1x8x128xbf16> to vector<8x128xbf16>
    %330 = vector.shape_cast %326 : vector<8x128xbf16> to vector<1x8x128xbf16>
    tpu.vector_store %arg4[%327, %c0_142, %c0_143], %330 {strides = array<i32>} : memref<8x8x128xbf16, #tpu.memory_space<vmem>>, vector<1x8x128xbf16>,
    %c8_i32 = arith.constant 8 : i32
    return
  }
  func.func @transform_0(%arg0: i32, %arg1: i32) -> (i32, i32, i32) {
    %c0_i32 = arith.constant 0 : i32
    %c0_i32_0 = arith.constant 0 : i32
    return %arg1, %arg0, %c0_i32 : i32, i32, i32
  }
  func.func @transform_1(%arg0: i32, %arg1: i32) -> (i32, i32) {
    %c0_i32 = arith.constant 0 : i32
    %c0_i32_0 = arith.constant 0 : i32
    %c0_i32_1 = arith.constant 0 : i32
    return %c0_i32, %c0_i32_0 : i32, i32
  }
  func.func @transform_2(%arg0: i32, %arg1: i32) -> (i32, i32, i32) {
    %c0_i32 = arith.constant 0 : i32
    %c0_i32_0 = arith.constant 0 : i32
    return %arg1, %arg0, %c0_i32 : i32, i32, i32
  }
}

module attributes {stable_mosaic.version = 11 : i64} {
  func.func @matmul_bias_kernel(%arg0: i32, %arg1: memref<64x128xbf16, #tpu.memory_space<vmem>>, %arg2: memref<128x512xbf16, #tpu.memory_space<vmem>>, %arg3: memref<1x512xf32, #tpu.memory_space<vmem>>, %arg4: memref<64x512xf32, #tpu.memory_space<vmem>>) attributes {dimension_semantics = [#tpu.dimension_semantics<parallel>], iteration_bounds = array<i64: 1>, scalar_prefetch = 0 : i64, scratch_operands = 0 : i64, tpu.core_type = #tpu.core_type<tc>, window_params = [{transform_indices = @transform_0, window_bounds = array<i64: 64, 128>}, {pipeline_mode = #tpu.pipeline_mode<synchronous>, transform_indices = @transform_1, window_bounds = array<i64: 128, 512>}, {pipeline_mode = #tpu.pipeline_mode<synchronous>, transform_indices = @transform_2, window_bounds = array<i64: 1, 512>}, {transform_indices = @transform_3, window_bounds = array<i64: 64, 512>}]} {
    %c0 = arith.constant 0 : index
    %c0_0 = arith.constant 0 : index
    %0 = vector.load %arg1[%c0, %c0_0] : memref<64x128xbf16, #tpu.memory_space<vmem>>, vector<64x128xbf16>
    %c0_1 = arith.constant 0 : index
    %c0_2 = arith.constant 0 : index
    %1 = vector.load %arg2[%c0_1, %c0_2] : memref<128x512xbf16, #tpu.memory_space<vmem>>, vector<128x512xbf16>
    %cst = arith.constant dense<0.000000e+00> : vector<64x512xf32>
    %2 = tpu.matmul %0, %1, %cst {dimension_numbers = #tpu.dot_dimension_numbers<[1], [0], [0], [1], [0, 0, 1, 1], [], []>} : vector<64x128xbf16>, vector<128x512xbf16>, vector<64x512xf32> -> vector<64x512xf32>
    %c0_3 = arith.constant 0 : index
    %c0_4 = arith.constant 0 : index
    %3 = vector.load %arg3[%c0_3, %c0_4] : memref<1x512xf32, #tpu.memory_space<vmem>>, vector<1x512xf32>
    %4 = vector.broadcast %3 : vector<1x512xf32> to vector<64x512xf32>
    %5 = arith.addf %2, %4 : vector<64x512xf32>
    %c0_5 = arith.constant 0 : index
    %c0_6 = arith.constant 0 : index
    %6 = vector.load %arg4[%c0_5, %c0_6] : memref<64x512xf32, #tpu.memory_space<vmem>>, vector<64x512xf32>
    tpu.vector_store %arg4[%c0_5, %c0_6], %5 {strides = array<i32>} : memref<64x512xf32, #tpu.memory_space<vmem>>, vector<64x512xf32>,
    return
  }
  func.func @transform_0(%arg0: i32) -> (i32, i32) {
    %c0_i32 = arith.constant 0 : i32
    %c0_i32_0 = arith.constant 0 : i32
    return %arg0, %c0_i32 : i32, i32
  }
  func.func @transform_1(%arg0: i32) -> (i32, i32) {
    %c0_i32 = arith.constant 0 : i32
    %c0_i32_0 = arith.constant 0 : i32
    %c0_i32_1 = arith.constant 0 : i32
    return %c0_i32, %c0_i32_0 : i32, i32
  }
  func.func @transform_2(%arg0: i32) -> (i32, i32) {
    %c0_i32 = arith.constant 0 : i32
    %c0_i32_0 = arith.constant 0 : i32
    %c0_i32_1 = arith.constant 0 : i32
    return %c0_i32, %c0_i32_0 : i32, i32
  }
  func.func @transform_3(%arg0: i32) -> (i32, i32) {
    %c0_i32 = arith.constant 0 : i32
    %c0_i32_0 = arith.constant 0 : i32
    return %arg0, %c0_i32 : i32, i32
  }
}

module attributes {stable_mosaic.version = 11 : i64} {
  func.func @fc_logsoftmax_kernel(%arg0: i32, %arg1: memref<64x128xbf16, #tpu.memory_space<vmem>>, %arg2: memref<128x128xbf16, #tpu.memory_space<vmem>>, %arg3: memref<1x128xf32, #tpu.memory_space<vmem>>, %arg4: memref<64x128xf32, #tpu.memory_space<vmem>>) attributes {dimension_semantics = [#tpu.dimension_semantics<parallel>], iteration_bounds = array<i64: 1>, scalar_prefetch = 0 : i64, scratch_operands = 0 : i64, tpu.core_type = #tpu.core_type<tc>, window_params = [{transform_indices = @transform_0, window_bounds = array<i64: 64, 128>}, {pipeline_mode = #tpu.pipeline_mode<synchronous>, transform_indices = @transform_1, window_bounds = array<i64: 128, 128>}, {pipeline_mode = #tpu.pipeline_mode<synchronous>, transform_indices = @transform_2, window_bounds = array<i64: 1, 128>}, {transform_indices = @transform_3, window_bounds = array<i64: 64, 128>}]} {
    %c0 = arith.constant 0 : index
    %c0_0 = arith.constant 0 : index
    %0 = vector.load %arg1[%c0, %c0_0] : memref<64x128xbf16, #tpu.memory_space<vmem>>, vector<64x128xbf16>
    %c0_1 = arith.constant 0 : index
    %c0_2 = arith.constant 0 : index
    %1 = vector.load %arg2[%c0_1, %c0_2] : memref<128x128xbf16, #tpu.memory_space<vmem>>, vector<128x128xbf16>
    %cst = arith.constant dense<0.000000e+00> : vector<64x128xf32>
    %2 = tpu.matmul %0, %1, %cst {dimension_numbers = #tpu.dot_dimension_numbers<[1], [0], [0], [1], [0, 0, 1, 1], [], []>} : vector<64x128xbf16>, vector<128x128xbf16>, vector<64x128xf32> -> vector<64x128xf32>
    %c0_3 = arith.constant 0 : index
    %c0_4 = arith.constant 0 : index
    %3 = vector.load %arg3[%c0_3, %c0_4] : memref<1x128xf32, #tpu.memory_space<vmem>>, vector<1x128xf32>
    %4 = vector.broadcast %3 : vector<1x128xf32> to vector<64x128xf32>
    %5 = arith.addf %2, %4 : vector<64x128xf32>
    %6 = tpu.iota {dimensions = array<i32: 1>} : vector<64x128xi32>
    %c2_i32 = arith.constant 2 : i32
    %7 = vector.broadcast %c2_i32 : i32 to vector<64x128xi32>
    %8 = arith.cmpi slt, %6, %7 : vector<64x128xi32>
    %cst_5 = arith.constant -1.000000e+30 : f32
    %9 = vector.broadcast %cst_5 : f32 to vector<64x128xf32>
    %10 = arith.select %8, %5, %9 : vector<64x128xi1>, vector<64x128xf32>
    %cst_6 = arith.constant dense<0xFF800000> : vector<64xf32>
    %11 = vector.multi_reduction <maximumf>, %10, %cst_6 [1] : vector<64x128xf32> to vector<64xf32>
    %12 = vector.shape_cast %11 : vector<64xf32> to vector<64x1xf32>
    %13 = vector.broadcast %12 : vector<64x1xf32> to vector<64x128xf32>
    %14 = arith.subf %10, %13 : vector<64x128xf32>
    %15 = math.exp %14 : vector<64x128xf32>
    %cst_7 = arith.constant dense<0.000000e+00> : vector<64xf32>
    %16 = vector.multi_reduction <add>, %15, %cst_7 [1] : vector<64x128xf32> to vector<64xf32>
    %17 = vector.shape_cast %16 : vector<64xf32> to vector<64x1xf32>
    %18 = math.log %17 : vector<64x1xf32>
    %19 = vector.broadcast %18 : vector<64x1xf32> to vector<64x128xf32>
    %20 = arith.subf %14, %19 : vector<64x128xf32>
    %c0_8 = arith.constant 0 : index
    %c0_9 = arith.constant 0 : index
    %21 = vector.load %arg4[%c0_8, %c0_9] : memref<64x128xf32, #tpu.memory_space<vmem>>, vector<64x128xf32>
    tpu.vector_store %arg4[%c0_8, %c0_9], %20 {strides = array<i32>} : memref<64x128xf32, #tpu.memory_space<vmem>>, vector<64x128xf32>,
    return
  }
  func.func @transform_0(%arg0: i32) -> (i32, i32) {
    %c0_i32 = arith.constant 0 : i32
    %c0_i32_0 = arith.constant 0 : i32
    return %arg0, %c0_i32 : i32, i32
  }
  func.func @transform_1(%arg0: i32) -> (i32, i32) {
    %c0_i32 = arith.constant 0 : i32
    %c0_i32_0 = arith.constant 0 : i32
    %c0_i32_1 = arith.constant 0 : i32
    return %c0_i32, %c0_i32_0 : i32, i32
  }
  func.func @transform_2(%arg0: i32) -> (i32, i32) {
    %c0_i32 = arith.constant 0 : i32
    %c0_i32_0 = arith.constant 0 : i32
    %c0_i32_1 = arith.constant 0 : i32
    return %c0_i32, %c0_i32_0 : i32, i32
  }
  func.func @transform_3(%arg0: i32) -> (i32, i32) {
    %c0_i32 = arith.constant 0 : i32
    %c0_i32_0 = arith.constant 0 : i32
    return %arg0, %c0_i32 : i32, i32
  }
}

</mosaic_0001>

<llo_original>
// kernel: rnn_model_forward.17
$region0: #{rnn_model_forward.17}
  #allocation0 [shape = 'u32[]', space=smem, size = 0x4, offset = 0x4, fixed_abs, tag = 'smem constant byte address 0x4 - core index']
  #allocation1 [shape = 'u32[72,128]{1,0:T(1,128)}', space=vmem, size = 0x9000, scoped, tag = 'internal scratch']
  %s0 = inlined_call_operand.vmem [shape: bf16[64,128], index: 0, kind: input, shape index: {}]
  %s1 = inlined_call_operand.vmem [shape: bf16[128,128], index: 1, kind: input, shape index: {}]
  %s2 = inlined_call_operand.vmem [shape: f32[1,128], index: 2, kind: input, shape index: {}]
  %s3 = inlined_call_operand.vmem [shape: f32[64,128], index: 3, kind: output, shape index: {}]
  %s4 = sld [smem:[#allocation0]]
  $region22: #{rnn_model_forward.17} parent=0
    _
  %s6 = ssub.s32 1, %s4
  %s7 = scalar_select 0, %s6, %s4
  // Predicated region
  $region2: #{rnn_model_forward.17} parent=0 // pred_check
    _
  $region3: #{rnn_model_forward.17} parent=0 // pred_check_branch
    %9 = sbr.rel (0) target = $region5
  $region4: #{rnn_model_forward.17} parent=0 // pred_region
    _
  $region5: #{rnn_model_forward.17} parent=0 // pred_fallthru
    _
  // Predicated region
  $region6: #{rnn_model_forward.17} parent=0 // pred_check
    _
  $region7: #{rnn_model_forward.17} parent=0 // pred_check_branch
    %11 = sbr.rel (0) target = $region9
  $region8: #{rnn_model_forward.17} parent=0 // pred_region
    _
  $region9: #{rnn_model_forward.17} parent=0 // pred_fallthru
    _
  // Predicated region
  $region10: #{rnn_model_forward.17} parent=0 // pred_check
    _
  $region11: #{rnn_model_forward.17} parent=0 // pred_check_branch
    %13 = sbr.rel (0) target = $region13
  $region12: #{rnn_model_forward.17} parent=0 // pred_region
    _
  $region13: #{rnn_model_forward.17} parent=0 // pred_fallthru
    _
  %v14 = vld [vmem:[%s0] sm:$0xf]
  %v15 = vld [vmem:[%s0 + $0x4] sm:$0xf]
  %v16 = vld [vmem:[%s0 + $0x8] sm:$0xf]
  %v17 = vld [vmem:[%s0 + $0xc] sm:$0xf]
  %v18 = vld [vmem:[%s0 + $0x10] sm:$0xf]
  %v19 = vld [vmem:[%s0 + $0x14] sm:$0xf]
  %v20 = vld [vmem:[%s0 + $0x18] sm:$0xf]
  %v21 = vld [vmem:[%s0 + $0x1c] sm:$0xf]
  %v22 = vld [vmem:[%s1] sm:$0xf]
  %v23 = vld [vmem:[%s1 + $0x4] sm:$0xf]
  %v24 = vld [vmem:[%s1 + $0x8] sm:$0xf]
  %v25 = vld [vmem:[%s1 + $0xc] sm:$0xf]
  %v26 = vld [vmem:[%s1 + $0x10] sm:$0xf]
  %v27 = vld [vmem:[%s1 + $0x14] sm:$0xf]
  %v28 = vld [vmem:[%s1 + $0x18] sm:$0xf]
  %v29 = vld [vmem:[%s1 + $0x1c] sm:$0xf]
  %v30 = vld [vmem:[%s1 + $0x20] sm:$0xf]
  %v31 = vld [vmem:[%s1 + $0x24] sm:$0xf]
  %v32 = vld [vmem:[%s1 + $0x28] sm:$0xf]
  %v33 = vld [vmem:[%s1 + $0x2c] sm:$0xf]
  %v34 = vld [vmem:[%s1 + $0x30] sm:$0xf]
  %v35 = vld [vmem:[%s1 + $0x34] sm:$0xf]
  %v36 = vld [vmem:[%s1 + $0x38] sm:$0xf]
  %v37 = vld [vmem:[%s1 + $0x3c] sm:$0xf]
  %v38 = vld [vmem:[%s2] sm:$0x1]
  %v40 = vperm.slane %v38, 0
  %v50 = vunpack.c.l.b16 %v14
  %v51 = vunpack.c.l.b16 %v15
  %v52 = vunpack.c.l.b16 %v16
  %v53 = vunpack.c.l.b16 %v17
  %v54 = vunpack.c.l.b16 %v18
  %v55 = vunpack.c.l.b16 %v19
  %v56 = vunpack.c.l.b16 %v20
  %v57 = vunpack.c.l.b16 %v21
  %v58 = vpack.c.b16 %v51, %v50
  %v59 = vpack.c.b16 %v53, %v52
  %v60 = vpack.c.b16 %v55, %v54
  %v61 = vpack.c.b16 %v57, %v56
  %v82 = vunpack.c.l.b16 %v22
  %v83 = vunpack.c.l.b16 %v23
  %v84 = vunpack.c.l.b16 %v24
  %v85 = vunpack.c.l.b16 %v25
  %v86 = vunpack.c.l.b16 %v26
  %v87 = vunpack.c.l.b16 %v27
  %v88 = vunpack.c.l.b16 %v28
  %v89 = vunpack.c.l.b16 %v29
  %v90 = vunpack.c.l.b16 %v30
  %v91 = vunpack.c.l.b16 %v31
  %v92 = vunpack.c.l.b16 %v32
  %v93 = vunpack.c.l.b16 %v33
  %v94 = vunpack.c.l.b16 %v34
  %v95 = vunpack.c.l.b16 %v35
  %v96 = vunpack.c.l.b16 %v36
  %v97 = vunpack.c.l.b16 %v37
  %v98 = vpack.c.b16 %v83, %v82
  %v99 = vpack.c.b16 %v85, %v84
  %v100 = vpack.c.b16 %v87, %v86
  %v101 = vpack.c.b16 %v89, %v88
  %v102 = vpack.c.b16 %v91, %v90
  %v103 = vpack.c.b16 %v93, %v92
  %v104 = vpack.c.b16 %v95, %v94
  %v105 = vpack.c.b16 %v97, %v96
  %114 = vmatpush.bf16.msra.mxu0 %v105
  %115 = vmatpush.bf16.msra.mxu0 %v104
  %116 = vmatpush.bf16.msra.mxu0 %v103
  %117 = vmatpush.bf16.msra.mxu0 %v102
  %118 = vmatpush.bf16.msra.mxu0 %v101
  %119 = vmatpush.bf16.msra.mxu0 %v100
  %120 = vmatpush.bf16.msra.mxu0 %v99
  %121 = vmatpush.bf16.msra.mxu0 %v98
  %122 = vmatmul.bf16.gmra.mxu0 %v58
  %v123 = vpop.f32.mrf.mxu0
  %v124 = vadd.f32 %v40, %v123
  %v125 = vpop.f32.mrf.mxu0
  %v126 = vadd.f32 %v40, %v125
  %127 = vmatmul.bf16.gmra.mxu0 %v59
  %v128 = vpop.f32.mrf.mxu0
  %v129 = vadd.f32 %v40, %v128
  %v130 = vpop.f32.mrf.mxu0
  %v131 = vadd.f32 %v40, %v130
  %132 = vmatmul.bf16.gmra.mxu0 %v60
  %v133 = vpop.f32.mrf.mxu0
  %v134 = vadd.f32 %v40, %v133
  %v135 = vpop.f32.mrf.mxu0
  %v136 = vadd.f32 %v40, %v135
  %137 = vmatmul.bf16.gmra.mxu0 %v61
  %v138 = vpop.f32.mrf.mxu0
  %v139 = vadd.f32 %v40, %v138
  %v140 = vpop.f32.mrf.mxu0
  %v141 = vadd.f32 %v40, %v140
  %142 = vdwg.mxu0
  %v143 = vlaneseq
  %v144 = vand.u32 %v143, 127
  %vm145 = vcmp.lt.s32.totalorder %v144, 2
  %v146 = vsel %vm145, %v124, -1e+30
  %v147 = vsel %vm145, %v126, -1e+30
  %v148 = vsel %vm145, %v129, -1e+30
  %v149 = vsel %vm145, %v131, -1e+30
  %v150 = vsel %vm145, %v134, -1e+30
  %v151 = vsel %vm145, %v136, -1e+30
  %v152 = vsel %vm145, %v139, -1e+30
  %v153 = vsel %vm145, %v141, -1e+30
  %154 = vmax.xlane.f32.xlu0 %v146
  %v155 = vpop.xlane.xlu0 %154
  %156 = vmax.xlane.f32.xlu0 %v147
  %v157 = vpop.xlane.xlu0 %156
  %158 = vmax.xlane.f32.xlu0 %v148
  %v159 = vpop.xlane.xlu0 %158
  %160 = vmax.xlane.f32.xlu0 %v149
  %v161 = vpop.xlane.xlu0 %160
  %162 = vmax.xlane.f32.xlu0 %v150
  %v163 = vpop.xlane.xlu0 %162
  %164 = vmax.xlane.f32.xlu0 %v151
  %v165 = vpop.xlane.xlu0 %164
  %166 = vmax.xlane.f32.xlu0 %v152
  %v167 = vpop.xlane.xlu0 %166
  %168 = vmax.xlane.f32.xlu0 %v153
  %v169 = vpop.xlane.xlu0 %168
  %v170 = vsub.f32 %v146, %v155
  %v171 = vsub.f32 %v147, %v157
  %v172 = vsub.f32 %v148, %v159
  %v173 = vsub.f32 %v149, %v161
  %v174 = vsub.f32 %v150, %v163
  %v175 = vsub.f32 %v151, %v165
  %v176 = vsub.f32 %v152, %v167
  %v177 = vsub.f32 %v153, %v169
  %v178 = vmul.f32 %v170, 1.442695
  %v179 = vpow.pop %v178
  %v180 = vmul.f32 %v171, 1.442695
  %v181 = vpow.pop %v180
  %v182 = vmul.f32 %v172, 1.442695
  %v183 = vpow.pop %v182
  %v184 = vmul.f32 %v173, 1.442695
  %v185 = vpow.pop %v184
  %v186 = vmul.f32 %v174, 1.442695
  %v187 = vpow.pop %v186
  %v188 = vmul.f32 %v175, 1.442695
  %v189 = vpow.pop %v188
  %v190 = vmul.f32 %v176, 1.442695
  %v191 = vpow.pop %v190
  %v192 = vmul.f32 %v177, 1.442695
  %v193 = vpow.pop %v192
  %194 = vadd.xlane.f32.xlu0 %v179
  %v195 = vpop.xlane.xlu0 %194
  %196 = vadd.xlane.f32.xlu0 %v181
  %v197 = vpop.xlane.xlu0 %196
  %198 = vadd.xlane.f32.xlu0 %v183
  %v199 = vpop.xlane.xlu0 %198
  %200 = vadd.xlane.f32.xlu0 %v185
  %v201 = vpop.xlane.xlu0 %200
  %202 = vadd.xlane.f32.xlu0 %v187
  %v203 = vpop.xlane.xlu0 %202
  %204 = vadd.xlane.f32.xlu0 %v189
  %v205 = vpop.xlane.xlu0 %204
  %206 = vadd.xlane.f32.xlu0 %v191
  %v207 = vpop.xlane.xlu0 %206
  %208 = vadd.xlane.f32.xlu0 %v193
  %v209 = vpop.xlane.xlu0 %208
  %v210 = vlog2.pop %v195
  %v211 = vmul.f32 %v210, 0.6931472
  %v212 = vlog2.pop %v197
  %v213 = vmul.f32 %v212, 0.6931472
  %v214 = vlog2.pop %v199
  %v215 = vmul.f32 %v214, 0.6931472
  %v216 = vlog2.pop %v201
  %v217 = vmul.f32 %v216, 0.6931472
  %v218 = vlog2.pop %v203
  %v219 = vmul.f32 %v218, 0.6931472
  %v220 = vlog2.pop %v205
  %v221 = vmul.f32 %v220, 0.6931472
  %v222 = vlog2.pop %v207
  %v223 = vmul.f32 %v222, 0.6931472
  %v224 = vlog2.pop %v209
  %v225 = vmul.f32 %v224, 0.6931472
  %v226 = vsub.f32 %v170, %v211
  %v227 = vsub.f32 %v171, %v213
  %v228 = vsub.f32 %v172, %v215
  %v229 = vsub.f32 %v173, %v217
  %v230 = vsub.f32 %v174, %v219
  %v231 = vsub.f32 %v175, %v221
  %v232 = vsub.f32 %v176, %v223
  %v233 = vsub.f32 %v177, %v225
  %234 = vst [vmem:[%s3] sm:$0xff] %v226
  %235 = vst [vmem:[%s3 + $0x8] sm:$0xff] %v227
  %236 = vst [vmem:[%s3 + $0x10] sm:$0xff] %v228
  %237 = vst [vmem:[%s3 + $0x18] sm:$0xff] %v229
  %238 = vst [vmem:[%s3 + $0x20] sm:$0xff] %v230
  %239 = vst [vmem:[%s3 + $0x28] sm:$0xff] %v231
  %240 = vst [vmem:[%s3 + $0x30] sm:$0xff] %v232
  %241 = vst [vmem:[%s3 + $0x38] sm:$0xff] %v233
  // Predicated region
  $region14: #{rnn_model_forward.17} parent=0 // pred_check
    _
  $region15: #{rnn_model_forward.17} parent=0 // pred_check_branch
    %243 = sbr.rel (0) target = $region17
  $region16: #{rnn_model_forward.17} parent=0 // pred_region
    _
  $region17: #{rnn_model_forward.17} parent=0 // pred_fallthru
    _
  // Predicated region
  $region18: #{rnn_model_forward.17} parent=0 // pred_check
    _
  $region19: #{rnn_model_forward.17} parent=0 // pred_check_branch
    %245 = sbr.rel (0) target = $region21
  $region20: #{rnn_model_forward.17} parent=0 // pred_region
    _
  $region21: #{rnn_model_forward.17} parent=0 // pred_fallthru
    _

// kernel: rnn_model_forward.11
$region0: #{rnn_model_forward.11}
  #allocation0 [shape = 'u32[]', space=smem, size = 0x4, offset = 0x4, fixed_abs, tag = 'smem constant byte address 0x4 - core index']
  #allocation1 [shape = 'u32[72,128]{1,0:T(1,128)}', space=vmem, size = 0x9000, scoped, tag = 'internal scratch']
  %s0 = inlined_call_operand.vmem [shape: bf16[64,128], index: 0, kind: input, shape index: {}]
  %s1 = inlined_call_operand.hbm [shape: bf16[128,512], index: 1, kind: input, shape index: {}]
  %s2 = inlined_call_operand.vmem [shape: f32[1,512], index: 2, kind: input, shape index: {}]
  %s3 = inlined_call_operand.vmem [shape: f32[64,512], index: 3, kind: output, shape index: {}]
  %s4 = sld [smem:[#allocation0]]
  $region26: #{rnn_model_forward.11} parent=0
    _
  %s6 = ssub.s32 1, %s4
  %s7 = scalar_select 0, %s6, %s4
  $region1: #{rnn_model_forward.11} parent=0
    #allocation2 [shape = 'u8[131072]{0}', space=vmem, size = 0x20000, scoped, tag = 'input window, operand 1, single buffered']
    #allocation3 [shape = 's32[1]{0}', space=sflag, size = 0x4, scoped, tag = 'scoped memory for rnn_model_forward.11']
    %8 = vsyncpa [#allocation3], 0
    // Predicated region
    $region2: #{rnn_model_forward.11} parent=1 // pred_check
      _
    $region3: #{rnn_model_forward.11} parent=1 // pred_check_branch
      %10 = sbr.rel (0) target = $region5
    $region4: #{rnn_model_forward.11} parent=1 // pred_region
      _
    $region5: #{rnn_model_forward.11} parent=1 // pred_fallthru
      _
    // Predicated region
    $region6: #{rnn_model_forward.11} parent=1 // pred_check
      _
    $region7: #{rnn_model_forward.11} parent=1 // pred_check_branch
      %12 = sbr.rel (0) target = $region9
    $region8: #{rnn_model_forward.11} parent=1 // pred_region
      %14 = vsyncadd [#allocation3], 0
      %s15 = sshll.u32 %s1, 4
      %s16 = int_to_ptr.hbm [resolvable:$true] %s15
      %s17 = sshll.u32 [#allocation2], 4
      %s18 = int_to_ptr.vmem [resolvable:$true] %s17
      %23 = dma.hbm_to_vmem [thread:$0]  %s16, 4096, %s18, [#allocation3], 256, 256, 16
    $region9: #{rnn_model_forward.11} parent=1 // pred_fallthru
      _
    // Predicated region
    $region10: #{rnn_model_forward.11} parent=1 // pred_check
      _
    $region11: #{rnn_model_forward.11} parent=1 // pred_check_branch
      %25 = sbr.rel (0) target = $region13
    $region12: #{rnn_model_forward.11} parent=1 // pred_region
      _
    $region13: #{rnn_model_forward.11} parent=1 // pred_fallthru
      _
    // Predicated region
    $region14: #{rnn_model_forward.11} parent=1 // pred_check
      _
    $region15: #{rnn_model_forward.11} parent=1 // pred_check_branch
      %27 = sbr.rel (0) target = $region17
    $region16: #{rnn_model_forward.11} parent=1 // pred_region
      %29 = dma.done [#allocation3], 4096
    $region17: #{rnn_model_forward.11} parent=1 // pred_fallthru
      _
    %v30 = vld [vmem:[%s0] sm:$0xf]
    %v31 = vld [vmem:[%s0 + $0x4] sm:$0xf]
    %v32 = vld [vmem:[%s0 + $0x8] sm:$0xf]
    %v33 = vld [vmem:[%s0 + $0xc] sm:$0xf]
    %v34 = vld [vmem:[%s0 + $0x10] sm:$0xf]
    %v35 = vld [vmem:[%s0 + $0x14] sm:$0xf]
    %v36 = vld [vmem:[%s0 + $0x18] sm:$0xf]
    %v37 = vld [vmem:[%s0 + $0x1c] sm:$0xf]
    %v38 = vld [vmem:[#allocation2] sm:$0xff]
    %v39 = vld [vmem:[#allocation2 + $0x8] sm:$0xff]
    %v40 = vld [vmem:[#allocation2 + $0x10] sm:$0xff]
    %v41 = vld [vmem:[#allocation2 + $0x18] sm:$0xff]
    %v42 = vld [vmem:[#allocation2 + $0x20] sm:$0xff]
    %v43 = vld [vmem:[#allocation2 + $0x28] sm:$0xff]
    %v44 = vld [vmem:[#allocation2 + $0x30] sm:$0xff]
    %v45 = vld [vmem:[#allocation2 + $0x38] sm:$0xff]
    %v46 = vld [vmem:[#allocation2 + $0x40] sm:$0xff]
    %v47 = vld [vmem:[#allocation2 + $0x48] sm:$0xff]
    %v48 = vld [vmem:[#allocation2 + $0x50] sm:$0xff]
    %v49 = vld [vmem:[#allocation2 + $0x58] sm:$0xff]
    %v50 = vld [vmem:[#allocation2 + $0x60] sm:$0xff]
    %v51 = vld [vmem:[#allocation2 + $0x68] sm:$0xff]
    %v52 = vld [vmem:[#allocation2 + $0x70] sm:$0xff]
    %v53 = vld [vmem:[#allocation2 + $0x78] sm:$0xff]
    %v54 = vld [vmem:[#allocation2 + $0x80] sm:$0xff]
    %v55 = vld [vmem:[#allocation2 + $0x88] sm:$0xff]
    %v56 = vld [vmem:[#allocation2 + $0x90] sm:$0xff]
    %v57 = vld [vmem:[#allocation2 + $0x98] sm:$0xff]
    %v58 = vld [vmem:[#allocation2 + $0xa0] sm:$0xff]
    %v59 = vld [vmem:[#allocation2 + $0xa8] sm:$0xff]
    %v60 = vld [vmem:[#allocation2 + $0xb0] sm:$0xff]
    %v61 = vld [vmem:[#allocation2 + $0xb8] sm:$0xff]
    %v62 = vld [vmem:[#allocation2 + $0xc0] sm:$0xff]
    %v63 = vld [vmem:[#allocation2 + $0xc8] sm:$0xff]
    %v64 = vld [vmem:[#allocation2 + $0xd0] sm:$0xff]
    %v65 = vld [vmem:[#allocation2 + $0xd8] sm:$0xff]
    %v66 = vld [vmem:[#allocation2 + $0xe0] sm:$0xff]
    %v67 = vld [vmem:[#allocation2 + $0xe8] sm:$0xff]
    %v68 = vld [vmem:[#allocation2 + $0xf0] sm:$0xff]
    %v69 = vld [vmem:[#allocation2 + $0xf8] sm:$0xff]
    %v70 = vld [vmem:[%s2] sm:$0xf]
    %v72 = vperm.slane %v70, 0
    %v73 = vperm.slane %v70, 1
    %v74 = vperm.slane %v70, 2
    %v75 = vperm.slane %v70, 3
    %v88 = vunpack.c.l.b16 %v30
    %v89 = vunpack.c.l.b16 %v31
    %v90 = vunpack.c.l.b16 %v32
    %v91 = vunpack.c.l.b16 %v33
    %v92 = vunpack.c.l.b16 %v34
    %v93 = vunpack.c.l.b16 %v35
    %v94 = vunpack.c.l.b16 %v36
    %v95 = vunpack.c.l.b16 %v37
    %v96 = vpack.c.b16 %v89, %v88
    %v97 = vpack.c.b16 %v91, %v90
    %v98 = vpack.c.b16 %v93, %v92
    %v99 = vpack.c.b16 %v95, %v94
    %v136 = vunpack.c.l.b16 %v38
    %v137 = vunpack.c.h.b16 %v38
    %v138 = vunpack.c.l.b16 %v39
    %v139 = vunpack.c.h.b16 %v39
    %v140 = vunpack.c.l.b16 %v40
    %v141 = vunpack.c.h.b16 %v40
    %v142 = vunpack.c.l.b16 %v41
    %v143 = vunpack.c.h.b16 %v41
    %v144 = vunpack.c.l.b16 %v42
    %v145 = vunpack.c.h.b16 %v42
    %v146 = vunpack.c.l.b16 %v43
    %v147 = vunpack.c.h.b16 %v43
    %v148 = vunpack.c.l.b16 %v44
    %v149 = vunpack.c.h.b16 %v44
    %v150 = vunpack.c.l.b16 %v45
    %v151 = vunpack.c.h.b16 %v45
    %v152 = vunpack.c.l.b16 %v46
    %v153 = vunpack.c.h.b16 %v46
    %v154 = vunpack.c.l.b16 %v47
    %v155 = vunpack.c.h.b16 %v47
    %v156 = vunpack.c.l.b16 %v48
    %v157 = vunpack.c.h.b16 %v48
    %v158 = vunpack.c.l.b16 %v49
    %v159 = vunpack.c.h.b16 %v49
    %v160 = vunpack.c.l.b16 %v50
    %v161 = vunpack.c.h.b16 %v50
    %v162 = vunpack.c.l.b16 %v51
    %v163 = vunpack.c.h.b16 %v51
    %v164 = vunpack.c.l.b16 %v52
    %v165 = vunpack.c.h.b16 %v52
    %v166 = vunpack.c.l.b16 %v53
    %v167 = vunpack.c.h.b16 %v53
    %v168 = vunpack.c.l.b16 %v54
    %v169 = vunpack.c.h.b16 %v54
    %v170 = vunpack.c.l.b16 %v55
    %v171 = vunpack.c.h.b16 %v55
    %v172 = vunpack.c.l.b16 %v56
    %v173 = vunpack.c.h.b16 %v56
    %v174 = vunpack.c.l.b16 %v57
    %v175 = vunpack.c.h.b16 %v57
    %v176 = vunpack.c.l.b16 %v58
    %v177 = vunpack.c.h.b16 %v58
    %v178 = vunpack.c.l.b16 %v59
    %v179 = vunpack.c.h.b16 %v59
    %v180 = vunpack.c.l.b16 %v60
    %v181 = vunpack.c.h.b16 %v60
    %v182 = vunpack.c.l.b16 %v61
    %v183 = vunpack.c.h.b16 %v61
    %v184 = vunpack.c.l.b16 %v62
    %v185 = vunpack.c.h.b16 %v62
    %v186 = vunpack.c.l.b16 %v63
    %v187 = vunpack.c.h.b16 %v63
    %v188 = vunpack.c.l.b16 %v64
    %v189 = vunpack.c.h.b16 %v64
    %v190 = vunpack.c.l.b16 %v65
    %v191 = vunpack.c.h.b16 %v65
    %v192 = vunpack.c.l.b16 %v66
    %v193 = vunpack.c.h.b16 %v66
    %v194 = vunpack.c.l.b16 %v67
    %v195 = vunpack.c.h.b16 %v67
    %v196 = vunpack.c.l.b16 %v68
    %v197 = vunpack.c.h.b16 %v68
    %v198 = vunpack.c.l.b16 %v69
    %v199 = vunpack.c.h.b16 %v69
    %v200 = vpack.c.b16 %v140, %v136
    %v201 = vpack.c.b16 %v141, %v137
    %v202 = vpack.c.b16 %v142, %v138
    %v203 = vpack.c.b16 %v143, %v139
    %v204 = vpack.c.b16 %v148, %v144
    %v205 = vpack.c.b16 %v149, %v145
    %v206 = vpack.c.b16 %v150, %v146
    %v207 = vpack.c.b16 %v151, %v147
    %v208 = vpack.c.b16 %v156, %v152
    %v209 = vpack.c.b16 %v157, %v153
    %v210 = vpack.c.b16 %v158, %v154
    %v211 = vpack.c.b16 %v159, %v155
    %v212 = vpack.c.b16 %v164, %v160
    %v213 = vpack.c.b16 %v165, %v161
    %v214 = vpack.c.b16 %v166, %v162
    %v215 = vpack.c.b16 %v167, %v163
    %v216 = vpack.c.b16 %v172, %v168
    %v217 = vpack.c.b16 %v173, %v169
    %v218 = vpack.c.b16 %v174, %v170
    %v219 = vpack.c.b16 %v175, %v171
    %v220 = vpack.c.b16 %v180, %v176
    %v221 = vpack.c.b16 %v181, %v177
    %v222 = vpack.c.b16 %v182, %v178
    %v223 = vpack.c.b16 %v183, %v179
    %v224 = vpack.c.b16 %v188, %v184
    %v225 = vpack.c.b16 %v189, %v185
    %v226 = vpack.c.b16 %v190, %v186
    %v227 = vpack.c.b16 %v191, %v187
    %v228 = vpack.c.b16 %v196, %v192
    %v229 = vpack.c.b16 %v197, %v193
    %v230 = vpack.c.b16 %v198, %v194
    %v231 = vpack.c.b16 %v199, %v195
    %264 = vmatpush.bf16.msra.mxu0 %v228
    %265 = vmatpush.bf16.msra.mxu0 %v224
    %266 = vmatpush.bf16.msra.mxu0 %v220
    %267 = vmatpush.bf16.msra.mxu0 %v216
    %268 = vmatpush.bf16.msra.mxu0 %v212
    %269 = vmatpush.bf16.msra.mxu0 %v208
    %270 = vmatpush.bf16.msra.mxu0 %v204
    %271 = vmatpush.bf16.msra.mxu0 %v200
    %272 = vmatmul.bf16.gmra.mxu0 %v96
    %v273 = vpop.f32.mrf.mxu0
    %v274 = vadd.f32 %v72, %v273
    %v275 = vpop.f32.mrf.mxu0
    %v276 = vadd.f32 %v72, %v275
    %277 = vmatmul.bf16.gmra.mxu0 %v97
    %v278 = vpop.f32.mrf.mxu0
    %v279 = vadd.f32 %v72, %v278
    %v280 = vpop.f32.mrf.mxu0
    %v281 = vadd.f32 %v72, %v280
    %282 = vmatmul.bf16.gmra.mxu0 %v98
    %v283 = vpop.f32.mrf.mxu0
    %v284 = vadd.f32 %v72, %v283
    %v285 = vpop.f32.mrf.mxu0
    %v286 = vadd.f32 %v72, %v285
    %287 = vmatmul.bf16.gmra.mxu0 %v99
    %v288 = vpop.f32.mrf.mxu0
    %v289 = vadd.f32 %v72, %v288
    %v290 = vpop.f32.mrf.mxu0
    %v291 = vadd.f32 %v72, %v290
    %292 = vdwg.mxu0
    %293 = vmatpush.bf16.msra.mxu0 %v229
    %294 = vmatpush.bf16.msra.mxu0 %v225
    %295 = vmatpush.bf16.msra.mxu0 %v221
    %296 = vmatpush.bf16.msra.mxu0 %v217
    %297 = vmatpush.bf16.msra.mxu0 %v213
    %298 = vmatpush.bf16.msra.mxu0 %v209
    %299 = vmatpush.bf16.msra.mxu0 %v205
    %300 = vmatpush.bf16.msra.mxu0 %v201
    %301 = vmatmul.bf16.gmra.mxu0 %v96
    %v302 = vpop.f32.mrf.mxu0
    %v303 = vadd.f32 %v73, %v302
    %v304 = vpop.f32.mrf.mxu0
    %v305 = vadd.f32 %v73, %v304
    %306 = vmatmul.bf16.gmra.mxu0 %v97
    %v307 = vpop.f32.mrf.mxu0
    %v308 = vadd.f32 %v73, %v307
    %v309 = vpop.f32.mrf.mxu0
    %v310 = vadd.f32 %v73, %v309
    %311 = vmatmul.bf16.gmra.mxu0 %v98
    %v312 = vpop.f32.mrf.mxu0
    %v313 = vadd.f32 %v73, %v312
    %v314 = vpop.f32.mrf.mxu0
    %v315 = vadd.f32 %v73, %v314
    %316 = vmatmul.bf16.gmra.mxu0 %v99
    %v317 = vpop.f32.mrf.mxu0
    %v318 = vadd.f32 %v73, %v317
    %v319 = vpop.f32.mrf.mxu0
    %v320 = vadd.f32 %v73, %v319
    %321 = vdwg.mxu0
    %322 = vmatpush.bf16.msra.mxu0 %v230
    %323 = vmatpush.bf16.msra.mxu0 %v226
    %324 = vmatpush.bf16.msra.mxu0 %v222
    %325 = vmatpush.bf16.msra.mxu0 %v218
    %326 = vmatpush.bf16.msra.mxu0 %v214
    %327 = vmatpush.bf16.msra.mxu0 %v210
    %328 = vmatpush.bf16.msra.mxu0 %v206
    %329 = vmatpush.bf16.msra.mxu0 %v202
    %330 = vmatmul.bf16.gmra.mxu0 %v96
    %v331 = vpop.f32.mrf.mxu0
    %v332 = vadd.f32 %v74, %v331
    %v333 = vpop.f32.mrf.mxu0
    %v334 = vadd.f32 %v74, %v333
    %335 = vmatmul.bf16.gmra.mxu0 %v97
    %v336 = vpop.f32.mrf.mxu0
    %v337 = vadd.f32 %v74, %v336
    %v338 = vpop.f32.mrf.mxu0
    %v339 = vadd.f32 %v74, %v338
    %340 = vmatmul.bf16.gmra.mxu0 %v98
    %v341 = vpop.f32.mrf.mxu0
    %v342 = vadd.f32 %v74, %v341
    %v343 = vpop.f32.mrf.mxu0
    %v344 = vadd.f32 %v74, %v343
    %345 = vmatmul.bf16.gmra.mxu0 %v99
    %v346 = vpop.f32.mrf.mxu0
    %v347 = vadd.f32 %v74, %v346
    %v348 = vpop.f32.mrf.mxu0
    %v349 = vadd.f32 %v74, %v348
    %350 = vdwg.mxu0
    %351 = vmatpush.bf16.msra.mxu0 %v231
    %352 = vmatpush.bf16.msra.mxu0 %v227
    %353 = vmatpush.bf16.msra.mxu0 %v223
    %354 = vmatpush.bf16.msra.mxu0 %v219
    %355 = vmatpush.bf16.msra.mxu0 %v215
    %356 = vmatpush.bf16.msra.mxu0 %v211
    %357 = vmatpush.bf16.msra.mxu0 %v207
    %358 = vmatpush.bf16.msra.mxu0 %v203
    %359 = vmatmul.bf16.gmra.mxu0 %v96
    %v360 = vpop.f32.mrf.mxu0
    %v361 = vadd.f32 %v75, %v360
    %v362 = vpop.f32.mrf.mxu0
    %v363 = vadd.f32 %v75, %v362
    %364 = vmatmul.bf16.gmra.mxu0 %v97
    %v365 = vpop.f32.mrf.mxu0
    %v366 = vadd.f32 %v75, %v365
    %v367 = vpop.f32.mrf.mxu0
    %v368 = vadd.f32 %v75, %v367
    %369 = vmatmul.bf16.gmra.mxu0 %v98
    %v370 = vpop.f32.mrf.mxu0
    %v371 = vadd.f32 %v75, %v370
    %v372 = vpop.f32.mrf.mxu0
    %v373 = vadd.f32 %v75, %v372
    %374 = vmatmul.bf16.gmra.mxu0 %v99
    %v375 = vpop.f32.mrf.mxu0
    %v376 = vadd.f32 %v75, %v375
    %v377 = vpop.f32.mrf.mxu0
    %v378 = vadd.f32 %v75, %v377
    %379 = vdwg.mxu0
    %380 = vst [vmem:[%s3] sm:$0xff] %v274
    %381 = vst [vmem:[%s3 + $0x8] sm:$0xff] %v303
    %382 = vst [vmem:[%s3 + $0x10] sm:$0xff] %v332
    %383 = vst [vmem:[%s3 + $0x18] sm:$0xff] %v361
    %384 = vst [vmem:[%s3 + $0x20] sm:$0xff] %v276
    %385 = vst [vmem:[%s3 + $0x28] sm:$0xff] %v305
    %386 = vst [vmem:[%s3 + $0x30] sm:$0xff] %v334
    %387 = vst [vmem:[%s3 + $0x38] sm:$0xff] %v363
    %388 = vst [vmem:[%s3 + $0x40] sm:$0xff] %v279
    %389 = vst [vmem:[%s3 + $0x48] sm:$0xff] %v308
    %390 = vst [vmem:[%s3 + $0x50] sm:$0xff] %v337
    %391 = vst [vmem:[%s3 + $0x58] sm:$0xff] %v366
    %392 = vst [vmem:[%s3 + $0x60] sm:$0xff] %v281
    %393 = vst [vmem:[%s3 + $0x68] sm:$0xff] %v310
    %394 = vst [vmem:[%s3 + $0x70] sm:$0xff] %v339
    %395 = vst [vmem:[%s3 + $0x78] sm:$0xff] %v368
    %396 = vst [vmem:[%s3 + $0x80] sm:$0xff] %v284
    %397 = vst [vmem:[%s3 + $0x88] sm:$0xff] %v313
    %398 = vst [vmem:[%s3 + $0x90] sm:$0xff] %v342
    %399 = vst [vmem:[%s3 + $0x98] sm:$0xff] %v371
    %400 = vst [vmem:[%s3 + $0xa0] sm:$0xff] %v286
    %401 = vst [vmem:[%s3 + $0xa8] sm:$0xff] %v315
    %402 = vst [vmem:[%s3 + $0xb0] sm:$0xff] %v344
    %403 = vst [vmem:[%s3 + $0xb8] sm:$0xff] %v373
    %404 = vst [vmem:[%s3 + $0xc0] sm:$0xff] %v289
    %405 = vst [vmem:[%s3 + $0xc8] sm:$0xff] %v318
    %406 = vst [vmem:[%s3 + $0xd0] sm:$0xff] %v347
    %407 = vst [vmem:[%s3 + $0xd8] sm:$0xff] %v376
    %408 = vst [vmem:[%s3 + $0xe0] sm:$0xff] %v291
    %409 = vst [vmem:[%s3 + $0xe8] sm:$0xff] %v320
    %410 = vst [vmem:[%s3 + $0xf0] sm:$0xff] %v349
    %411 = vst [vmem:[%s3 + $0xf8] sm:$0xff] %v378
    // Predicated region
    $region18: #{rnn_model_forward.11} parent=1 // pred_check
      _
    $region19: #{rnn_model_forward.11} parent=1 // pred_check_branch
      %413 = sbr.rel (0) target = $region21
    $region20: #{rnn_model_forward.11} parent=1 // pred_region
      _
    $region21: #{rnn_model_forward.11} parent=1 // pred_fallthru
      _
    // Predicated region
    $region22: #{rnn_model_forward.11} parent=1 // pred_check
      _
    $region23: #{rnn_model_forward.11} parent=1 // pred_check_branch
      %415 = sbr.rel (0) target = $region25
    $region24: #{rnn_model_forward.11} parent=1 // pred_region
      _
    $region25: #{rnn_model_forward.11} parent=1 // pred_fallthru
      _
    %416 = vsyncpa [#allocation3], 1

// kernel: rnn_model_forward.9
$region0: #{rnn_model_forward.9}
  #allocation0 [shape = 'u32[]', space=smem, size = 0x4, offset = 0x4, fixed_abs, tag = 'smem constant byte address 0x4 - core index']
  #allocation1 [shape = 'u32[72,128]{1,0:T(1,128)}', space=vmem, size = 0x9000, scoped, tag = 'internal scratch']
  %s0 = inlined_call_operand.vmem [shape: bf16[64,88], index: 0, kind: input, shape index: {}]
  %s1 = inlined_call_operand.hbm [shape: bf16[88,512], index: 1, kind: input, shape index: {}]
  %s2 = inlined_call_operand.vmem [shape: f32[1,512], index: 2, kind: input, shape index: {}]
  %s3 = inlined_call_operand.vmem [shape: f32[64,512], index: 3, kind: output, shape index: {}]
  %s4 = sld [smem:[#allocation0]]
  $region26: #{rnn_model_forward.9} parent=0
    _
  %s6 = ssub.s32 1, %s4
  %s7 = scalar_select 0, %s6, %s4
  $region1: #{rnn_model_forward.9} parent=0
    #allocation2 [shape = 'u8[90112]{0}', space=vmem, size = 0x16000, scoped, tag = 'input window, operand 1, single buffered']
    #allocation3 [shape = 's32[1]{0}', space=sflag, size = 0x4, scoped, tag = 'scoped memory for rnn_model_forward.9']
    %8 = vsyncpa [#allocation3], 0
    // Predicated region
    $region2: #{rnn_model_forward.9} parent=1 // pred_check
      _
    $region3: #{rnn_model_forward.9} parent=1 // pred_check_branch
      %10 = sbr.rel (0) target = $region5
    $region4: #{rnn_model_forward.9} parent=1 // pred_region
      _
    $region5: #{rnn_model_forward.9} parent=1 // pred_fallthru
      _
    // Predicated region
    $region6: #{rnn_model_forward.9} parent=1 // pred_check
      _
    $region7: #{rnn_model_forward.9} parent=1 // pred_check_branch
      %12 = sbr.rel (0) target = $region9
    $region8: #{rnn_model_forward.9} parent=1 // pred_region
      %14 = vsyncadd [#allocation3], 0
      %s15 = sshll.u32 %s1, 4
      %s16 = int_to_ptr.hbm [resolvable:$true] %s15
      %s17 = sshll.u32 [#allocation2], 4
      %s18 = int_to_ptr.vmem [resolvable:$true] %s17
      %23 = dma.hbm_to_vmem [thread:$0]  %s16, 2816, %s18, [#allocation3], 256, 256, 16
    $region9: #{rnn_model_forward.9} parent=1 // pred_fallthru
      _
    // Predicated region
    $region10: #{rnn_model_forward.9} parent=1 // pred_check
      _
    $region11: #{rnn_model_forward.9} parent=1 // pred_check_branch
      %25 = sbr.rel (0) target = $region13
    $region12: #{rnn_model_forward.9} parent=1 // pred_region
      _
    $region13: #{rnn_model_forward.9} parent=1 // pred_fallthru
      _
    // Predicated region
    $region14: #{rnn_model_forward.9} parent=1 // pred_check
      _
    $region15: #{rnn_model_forward.9} parent=1 // pred_check_branch
      %27 = sbr.rel (0) target = $region17
    $region16: #{rnn_model_forward.9} parent=1 // pred_region
      %29 = dma.done [#allocation3], 2816
    $region17: #{rnn_model_forward.9} parent=1 // pred_fallthru
      _
    %v31 = vld [vmem:[%s0] sm:$0xf]
    %v32 = vld [vmem:[%s0 + $0x4] sm:$0xf]
    %v33 = vld [vmem:[%s0 + $0x8] sm:$0xf]
    %v34 = vld [vmem:[%s0 + $0xc] sm:$0xf]
    %v35 = vld [vmem:[%s0 + $0x10] sm:$0xf]
    %v36 = vld [vmem:[%s0 + $0x14] sm:$0xf]
    %v37 = vld [vmem:[%s0 + $0x18] sm:$0xf]
    %v38 = vld [vmem:[%s0 + $0x1c] sm:$0xf]
    %v39 = vld [vmem:[#allocation2] sm:$0xff]
    %v40 = vld [vmem:[#allocation2 + $0x8] sm:$0xff]
    %v41 = vld [vmem:[#allocation2 + $0x10] sm:$0xff]
    %v42 = vld [vmem:[#allocation2 + $0x18] sm:$0xff]
    %v43 = vld [vmem:[#allocation2 + $0x20] sm:$0xff]
    %v44 = vld [vmem:[#allocation2 + $0x28] sm:$0xff]
    %v45 = vld [vmem:[#allocation2 + $0x30] sm:$0xff]
    %v46 = vld [vmem:[#allocation2 + $0x38] sm:$0xff]
    %v47 = vld [vmem:[#allocation2 + $0x40] sm:$0xff]
    %v48 = vld [vmem:[#allocation2 + $0x48] sm:$0xff]
    %v49 = vld [vmem:[#allocation2 + $0x50] sm:$0xff]
    %v50 = vld [vmem:[#allocation2 + $0x58] sm:$0xff]
    %v51 = vld [vmem:[#allocation2 + $0x60] sm:$0xff]
    %v52 = vld [vmem:[#allocation2 + $0x68] sm:$0xff]
    %v53 = vld [vmem:[#allocation2 + $0x70] sm:$0xff]
    %v54 = vld [vmem:[#allocation2 + $0x78] sm:$0xff]
    %v55 = vld [vmem:[#allocation2 + $0x80] sm:$0xff]
    %v56 = vld [vmem:[#allocation2 + $0x88] sm:$0xff]
    %v57 = vld [vmem:[#allocation2 + $0x90] sm:$0xff]
    %v58 = vld [vmem:[#allocation2 + $0x98] sm:$0xff]
    %v59 = vld [vmem:[#allocation2 + $0xa0] sm:$0xff]
    %v60 = vld [vmem:[#allocation2 + $0xa8] sm:$0xff]
    %v61 = vld [vmem:[%s2] sm:$0xf]
    %v63 = vperm.slane %v61, 0
    %v64 = vperm.slane %v61, 1
    %v65 = vperm.slane %v61, 2
    %v66 = vperm.slane %v61, 3
    %v79 = vunpack.c.l.b16 %v31
    %v80 = vunpack.c.l.b16 %v32
    %v81 = vunpack.c.l.b16 %v33
    %v82 = vunpack.c.l.b16 %v34
    %v83 = vunpack.c.l.b16 %v35
    %v84 = vunpack.c.l.b16 %v36
    %v85 = vunpack.c.l.b16 %v37
    %v86 = vunpack.c.l.b16 %v38
    %v87 = vpack.c.b16 %v80, %v79
    %v88 = vpack.c.b16 %v82, %v81
    %v89 = vpack.c.b16 %v84, %v83
    %v90 = vpack.c.b16 %v86, %v85
    %v113 = vunpack.c.l.b16 %v39
    %v114 = vunpack.c.h.b16 %v39
    %v115 = vunpack.c.l.b16 %v40
    %v116 = vunpack.c.h.b16 %v40
    %v117 = vunpack.c.l.b16 %v41
    %v118 = vunpack.c.h.b16 %v41
    %v119 = vunpack.c.l.b16 %v42
    %v120 = vunpack.c.h.b16 %v42
    %v121 = vunpack.c.l.b16 %v43
    %v122 = vunpack.c.h.b16 %v43
    %v123 = vunpack.c.l.b16 %v44
    %v124 = vunpack.c.h.b16 %v44
    %v125 = vunpack.c.l.b16 %v45
    %v126 = vunpack.c.h.b16 %v45
    %v127 = vunpack.c.l.b16 %v46
    %v128 = vunpack.c.h.b16 %v46
    %v129 = vunpack.c.l.b16 %v47
    %v130 = vunpack.c.h.b16 %v47
    %v131 = vunpack.c.l.b16 %v48
    %v132 = vunpack.c.h.b16 %v48
    %v133 = vunpack.c.l.b16 %v49
    %v134 = vunpack.c.h.b16 %v49
    %v135 = vunpack.c.l.b16 %v50
    %v136 = vunpack.c.h.b16 %v50
    %v137 = vunpack.c.l.b16 %v51
    %v138 = vunpack.c.h.b16 %v51
    %v139 = vunpack.c.l.b16 %v52
    %v140 = vunpack.c.h.b16 %v52
    %v141 = vunpack.c.l.b16 %v53
    %v142 = vunpack.c.h.b16 %v53
    %v143 = vunpack.c.l.b16 %v54
    %v144 = vunpack.c.h.b16 %v54
    %v145 = vunpack.c.l.b16 %v55
    %v146 = vunpack.c.h.b16 %v55
    %v147 = vunpack.c.l.b16 %v56
    %v148 = vunpack.c.h.b16 %v56
    %v149 = vunpack.c.l.b16 %v57
    %v150 = vunpack.c.h.b16 %v57
    %v151 = vunpack.c.l.b16 %v58
    %v152 = vunpack.c.h.b16 %v58
    %v153 = vunpack.c.l.b16 %v59
    %v154 = vunpack.c.h.b16 %v59
    %v155 = vunpack.c.l.b16 %v60
    %v156 = vunpack.c.h.b16 %v60
    %v157 = vpack.c.b16 %v117, %v113
    %v158 = vpack.c.b16 %v118, %v114
    %v159 = vpack.c.b16 %v119, %v115
    %v160 = vpack.c.b16 %v120, %v116
    %v161 = vpack.c.b16 %v125, %v121
    %v162 = vpack.c.b16 %v126, %v122
    %v163 = vpack.c.b16 %v127, %v123
    %v164 = vpack.c.b16 %v128, %v124
    %v165 = vpack.c.b16 %v133, %v129
    %v166 = vpack.c.b16 %v134, %v130
    %v167 = vpack.c.b16 %v135, %v131
    %v168 = vpack.c.b16 %v136, %v132
    %v169 = vpack.c.b16 %v141, %v137
    %v170 = vpack.c.b16 %v142, %v138
    %v171 = vpack.c.b16 %v143, %v139
    %v172 = vpack.c.b16 %v144, %v140
    %v173 = vpack.c.b16 %v149, %v145
    %v174 = vpack.c.b16 %v150, %v146
    %v175 = vpack.c.b16 %v151, %v147
    %v176 = vpack.c.b16 %v152, %v148
    %v177 = vpack.c.b16 %v153, %v153
    %v178 = vpack.c.b16 %v154, %v154
    %v179 = vpack.c.b16 %v155, %v155
    %v180 = vpack.c.b16 %v156, %v156
    %vm201 = vcmask 719872
    %v203 = vsel %vm201, %v87, 0
    %v206 = vsel %vm201, %v88, 0
    %v209 = vsel %vm201, %v89, 0
    %v212 = vsel %vm201, %v90, 0
    %vm214 = vcmask 1043456
    %v216 = vsel %vm214, %v177, 0
    %v219 = vsel %vm214, %v178, 0
    %v222 = vsel %vm214, %v179, 0
    %v225 = vsel %vm214, %v180, 0
    %227 = vmatpush.bf16.msra.mxu0 0
    %228 = vmatpush.bf16.msra.mxu0 0
    %229 = vmatpush.bf16.msra.mxu0 %v216
    %230 = vmatpush.bf16.msra.mxu0 %v173
    %231 = vmatpush.bf16.msra.mxu0 %v169
    %232 = vmatpush.bf16.msra.mxu0 %v165
    %233 = vmatpush.bf16.msra.mxu0 %v161
    %234 = vmatpush.bf16.msra.mxu0 %v157
    %235 = vmatmul.bf16.gmra.mxu0 %v203
    %v236 = vpop.f32.mrf.mxu0
    %v237 = vadd.f32 %v63, %v236
    %v238 = vpop.f32.mrf.mxu0
    %v239 = vadd.f32 %v63, %v238
    %240 = vmatmul.bf16.gmra.mxu0 %v206
    %v241 = vpop.f32.mrf.mxu0
    %v242 = vadd.f32 %v63, %v241
    %v243 = vpop.f32.mrf.mxu0
    %v244 = vadd.f32 %v63, %v243
    %245 = vmatmul.bf16.gmra.mxu0 %v209
    %v246 = vpop.f32.mrf.mxu0
    %v247 = vadd.f32 %v63, %v246
    %v248 = vpop.f32.mrf.mxu0
    %v249 = vadd.f32 %v63, %v248
    %250 = vmatmul.bf16.gmra.mxu0 %v212
    %v251 = vpop.f32.mrf.mxu0
    %v252 = vadd.f32 %v63, %v251
    %v253 = vpop.f32.mrf.mxu0
    %v254 = vadd.f32 %v63, %v253
    %255 = vdwg.mxu0
    %256 = vmatpush.bf16.msra.mxu0 0
    %257 = vmatpush.bf16.msra.mxu0 0
    %258 = vmatpush.bf16.msra.mxu0 %v219
    %259 = vmatpush.bf16.msra.mxu0 %v174
    %260 = vmatpush.bf16.msra.mxu0 %v170
    %261 = vmatpush.bf16.msra.mxu0 %v166
    %262 = vmatpush.bf16.msra.mxu0 %v162
    %263 = vmatpush.bf16.msra.mxu0 %v158
    %264 = vmatmul.bf16.gmra.mxu0 %v203
    %v265 = vpop.f32.mrf.mxu0
    %v266 = vadd.f32 %v64, %v265
    %v267 = vpop.f32.mrf.mxu0
    %v268 = vadd.f32 %v64, %v267
    %269 = vmatmul.bf16.gmra.mxu0 %v206
    %v270 = vpop.f32.mrf.mxu0
    %v271 = vadd.f32 %v64, %v270
    %v272 = vpop.f32.mrf.mxu0
    %v273 = vadd.f32 %v64, %v272
    %274 = vmatmul.bf16.gmra.mxu0 %v209
    %v275 = vpop.f32.mrf.mxu0
    %v276 = vadd.f32 %v64, %v275
    %v277 = vpop.f32.mrf.mxu0
    %v278 = vadd.f32 %v64, %v277
    %279 = vmatmul.bf16.gmra.mxu0 %v212
    %v280 = vpop.f32.mrf.mxu0
    %v281 = vadd.f32 %v64, %v280
    %v282 = vpop.f32.mrf.mxu0
    %v283 = vadd.f32 %v64, %v282
    %284 = vdwg.mxu0
    %285 = vmatpush.bf16.msra.mxu0 0
    %286 = vmatpush.bf16.msra.mxu0 0
    %287 = vmatpush.bf16.msra.mxu0 %v222
    %288 = vmatpush.bf16.msra.mxu0 %v175
    %289 = vmatpush.bf16.msra.mxu0 %v171
    %290 = vmatpush.bf16.msra.mxu0 %v167
    %291 = vmatpush.bf16.msra.mxu0 %v163
    %292 = vmatpush.bf16.msra.mxu0 %v159
    %293 = vmatmul.bf16.gmra.mxu0 %v203
    %v294 = vpop.f32.mrf.mxu0
    %v295 = vadd.f32 %v65, %v294
    %v296 = vpop.f32.mrf.mxu0
    %v297 = vadd.f32 %v65, %v296
    %298 = vmatmul.bf16.gmra.mxu0 %v206
    %v299 = vpop.f32.mrf.mxu0
    %v300 = vadd.f32 %v65, %v299
    %v301 = vpop.f32.mrf.mxu0
    %v302 = vadd.f32 %v65, %v301
    %303 = vmatmul.bf16.gmra.mxu0 %v209
    %v304 = vpop.f32.mrf.mxu0
    %v305 = vadd.f32 %v65, %v304
    %v306 = vpop.f32.mrf.mxu0
    %v307 = vadd.f32 %v65, %v306
    %308 = vmatmul.bf16.gmra.mxu0 %v212
    %v309 = vpop.f32.mrf.mxu0
    %v310 = vadd.f32 %v65, %v309
    %v311 = vpop.f32.mrf.mxu0
    %v312 = vadd.f32 %v65, %v311
    %313 = vdwg.mxu0
    %314 = vmatpush.bf16.msra.mxu0 0
    %315 = vmatpush.bf16.msra.mxu0 0
    %316 = vmatpush.bf16.msra.mxu0 %v225
    %317 = vmatpush.bf16.msra.mxu0 %v176
    %318 = vmatpush.bf16.msra.mxu0 %v172
    %319 = vmatpush.bf16.msra.mxu0 %v168
    %320 = vmatpush.bf16.msra.mxu0 %v164
    %321 = vmatpush.bf16.msra.mxu0 %v160
    %322 = vmatmul.bf16.gmra.mxu0 %v203
    %v323 = vpop.f32.mrf.mxu0
    %v324 = vadd.f32 %v66, %v323
    %v325 = vpop.f32.mrf.mxu0
    %v326 = vadd.f32 %v66, %v325
    %327 = vmatmul.bf16.gmra.mxu0 %v206
    %v328 = vpop.f32.mrf.mxu0
    %v329 = vadd.f32 %v66, %v328
    %v330 = vpop.f32.mrf.mxu0
    %v331 = vadd.f32 %v66, %v330
    %332 = vmatmul.bf16.gmra.mxu0 %v209
    %v333 = vpop.f32.mrf.mxu0
    %v334 = vadd.f32 %v66, %v333
    %v335 = vpop.f32.mrf.mxu0
    %v336 = vadd.f32 %v66, %v335
    %337 = vmatmul.bf16.gmra.mxu0 %v212
    %v338 = vpop.f32.mrf.mxu0
    %v339 = vadd.f32 %v66, %v338
    %v340 = vpop.f32.mrf.mxu0
    %v341 = vadd.f32 %v66, %v340
    %342 = vdwg.mxu0
    %343 = vst [vmem:[%s3] sm:$0xff] %v237
    %344 = vst [vmem:[%s3 + $0x8] sm:$0xff] %v266
    %345 = vst [vmem:[%s3 + $0x10] sm:$0xff] %v295
    %346 = vst [vmem:[%s3 + $0x18] sm:$0xff] %v324
    %347 = vst [vmem:[%s3 + $0x20] sm:$0xff] %v239
    %348 = vst [vmem:[%s3 + $0x28] sm:$0xff] %v268
    %349 = vst [vmem:[%s3 + $0x30] sm:$0xff] %v297
    %350 = vst [vmem:[%s3 + $0x38] sm:$0xff] %v326
    %351 = vst [vmem:[%s3 + $0x40] sm:$0xff] %v242
    %352 = vst [vmem:[%s3 + $0x48] sm:$0xff] %v271
    %353 = vst [vmem:[%s3 + $0x50] sm:$0xff] %v300
    %354 = vst [vmem:[%s3 + $0x58] sm:$0xff] %v329
    %355 = vst [vmem:[%s3 + $0x60] sm:$0xff] %v244
    %356 = vst [vmem:[%s3 + $0x68] sm:$0xff] %v273
    %357 = vst [vmem:[%s3 + $0x70] sm:$0xff] %v302
    %358 = vst [vmem:[%s3 + $0x78] sm:$0xff] %v331
    %359 = vst [vmem:[%s3 + $0x80] sm:$0xff] %v247
    %360 = vst [vmem:[%s3 + $0x88] sm:$0xff] %v276
    %361 = vst [vmem:[%s3 + $0x90] sm:$0xff] %v305
    %362 = vst [vmem:[%s3 + $0x98] sm:$0xff] %v334
    %363 = vst [vmem:[%s3 + $0xa0] sm:$0xff] %v249
    %364 = vst [vmem:[%s3 + $0xa8] sm:$0xff] %v278
    %365 = vst [vmem:[%s3 + $0xb0] sm:$0xff] %v307
    %366 = vst [vmem:[%s3 + $0xb8] sm:$0xff] %v336
    %367 = vst [vmem:[%s3 + $0xc0] sm:$0xff] %v252
    %368 = vst [vmem:[%s3 + $0xc8] sm:$0xff] %v281
    %369 = vst [vmem:[%s3 + $0xd0] sm:$0xff] %v310
    %370 = vst [vmem:[%s3 + $0xd8] sm:$0xff] %v339
    %371 = vst [vmem:[%s3 + $0xe0] sm:$0xff] %v254
    %372 = vst [vmem:[%s3 + $0xe8] sm:$0xff] %v283
    %373 = vst [vmem:[%s3 + $0xf0] sm:$0xff] %v312
    %374 = vst [vmem:[%s3 + $0xf8] sm:$0xff] %v341
    // Predicated region
    $region18: #{rnn_model_forward.9} parent=1 // pred_check
      _
    $region19: #{rnn_model_forward.9} parent=1 // pred_check_branch
      %376 = sbr.rel (0) target = $region21
    $region20: #{rnn_model_forward.9} parent=1 // pred_region
      _
    $region21: #{rnn_model_forward.9} parent=1 // pred_fallthru
      _
    // Predicated region
    $region22: #{rnn_model_forward.9} parent=1 // pred_check
      _
    $region23: #{rnn_model_forward.9} parent=1 // pred_check_branch
      %378 = sbr.rel (0) target = $region25
    $region24: #{rnn_model_forward.9} parent=1 // pred_region
      _
    $region25: #{rnn_model_forward.9} parent=1 // pred_fallthru
      _
    %379 = vsyncpa [#allocation3], 1

// kernel: rnn_model_forward.10
$region0: #{rnn_model_forward.10}
  #allocation0 [shape = 'u32[]', space=smem, size = 0x4, offset = 0x4, fixed_abs, tag = 'smem constant byte address 0x4 - core index']
  #allocation1 [shape = 'u32[72,128]{1,0:T(1,128)}', space=vmem, size = 0x9000, scoped, tag = 'internal scratch']
  #allocation2 [shape = 'f32[8,128]{1,0:T(8,128)}', space=vmem, size = 0x1000, scoped, tag = 'scratch operand']
  #allocation3 [shape = 'f32[8,128]{1,0:T(8,128)}', space=vmem, size = 0x1000, scoped, tag = 'scratch operand']
  %s0 = inlined_call_operand.vmem [shape: f32[8,8,512], index: 0, kind: input, shape index: {}]
  %s1 = inlined_call_operand.hbm [shape: bf16[128,512], index: 1, kind: input, shape index: {}]
  %s2 = inlined_call_operand.vmem [shape: bf16[8,8,128], index: 2, kind: output, shape index: {}]
  %s3 = sld [smem:[#allocation0]]
  $region26: #{rnn_model_forward.10} parent=0
    _
  %s5 = ssub.s32 1, %s3
  %s6 = scalar_select 0, %s5, %s3
  $region1: #{rnn_model_forward.10} parent=0
    #allocation4 [shape = 'u8[131072]{0}', space=vmem, size = 0x20000, scoped, tag = 'input window, operand 1, single buffered']
    #allocation5 [shape = 's32[1]{0}', space=sflag, size = 0x4, scoped, tag = 'scoped memory for rnn_model_forward.10']
    %7 = vsyncpa [#allocation5], 0
    // Predicated region
    $region2: #{rnn_model_forward.10} parent=1 // pred_check
      _
    $region3: #{rnn_model_forward.10} parent=1 // pred_check_branch
      %9 = sbr.rel (0) target = $region5
    $region4: #{rnn_model_forward.10} parent=1 // pred_region
      _
    $region5: #{rnn_model_forward.10} parent=1 // pred_fallthru
      _
    // Predicated region
    $region6: #{rnn_model_forward.10} parent=1 // pred_check
      _
    $region7: #{rnn_model_forward.10} parent=1 // pred_check_branch
      %11 = sbr.rel (0) target = $region9
    $region8: #{rnn_model_forward.10} parent=1 // pred_region
      %13 = vsyncadd [#allocation5], 0
      %s14 = sshll.u32 %s1, 4
      %s15 = int_to_ptr.hbm [resolvable:$true] %s14
      %s16 = sshll.u32 [#allocation4], 4
      %s17 = int_to_ptr.vmem [resolvable:$true] %s16
      %22 = dma.hbm_to_vmem [thread:$0]  %s15, 4096, %s17, [#allocation5], 256, 256, 16
    $region9: #{rnn_model_forward.10} parent=1 // pred_fallthru
      _
    // Predicated region
    $region10: #{rnn_model_forward.10} parent=1 // pred_check
      _
    $region11: #{rnn_model_forward.10} parent=1 // pred_check_branch
      %24 = sbr.rel (0) target = $region13
    $region12: #{rnn_model_forward.10} parent=1 // pred_region
      %26 = dma.done [#allocation5], 4096
    $region13: #{rnn_model_forward.10} parent=1 // pred_fallthru
      _
    %p27 = scmp.eq.s32.totalorder 0, 0
    // Predicated region
    $region14: #{rnn_model_forward.10} parent=1 // pred_check
      %p28 = pneg %p27
    $region15: #{rnn_model_forward.10} parent=1 // pred_check_branch
      %30 = sbr.rel (%p28) target = $region17
    $region16: #{rnn_model_forward.10} parent=1 // pred_region
      %31 = vst [vmem:[#allocation2] sm:$0xff] 0.0
      %32 = vst [vmem:[#allocation3] sm:$0xff] 0.0
    $region17: #{rnn_model_forward.10} parent=1 // pred_fallthru
      _
    %v33 = vld [vmem:[%s0] sm:$0xff]
    %v34 = vld [vmem:[%s0 + $0x8] sm:$0xff]
    %v35 = vld [vmem:[%s0 + $0x10] sm:$0xff]
    %v36 = vld [vmem:[%s0 + $0x18] sm:$0xff]
    %v37 = vld [vmem:[#allocation2] sm:$0xff]
    %v38 = vpack.c.bf16 %v37, %v37
    %v39 = vld [vmem:[#allocation4] sm:$0xff]
    %v40 = vld [vmem:[#allocation4 + $0x8] sm:$0xff]
    %v41 = vld [vmem:[#allocation4 + $0x10] sm:$0xff]
    %v42 = vld [vmem:[#allocation4 + $0x18] sm:$0xff]
    %v43 = vld [vmem:[#allocation4 + $0x20] sm:$0xff]
    %v44 = vld [vmem:[#allocation4 + $0x28] sm:$0xff]
    %v45 = vld [vmem:[#allocation4 + $0x30] sm:$0xff]
    %v46 = vld [vmem:[#allocation4 + $0x38] sm:$0xff]
    %v47 = vld [vmem:[#allocation4 + $0x40] sm:$0xff]
    %v48 = vld [vmem:[#allocation4 + $0x48] sm:$0xff]
    %v49 = vld [vmem:[#allocation4 + $0x50] sm:$0xff]
    %v50 = vld [vmem:[#allocation4 + $0x58] sm:$0xff]
    %v51 = vld [vmem:[#allocation4 + $0x60] sm:$0xff]
    %v52 = vld [vmem:[#allocation4 + $0x68] sm:$0xff]
    %v53 = vld [vmem:[#allocation4 + $0x70] sm:$0xff]
    %v54 = vld [vmem:[#allocation4 + $0x78] sm:$0xff]
    %v55 = vld [vmem:[#allocation4 + $0x80] sm:$0xff]
    %v56 = vld [vmem:[#allocation4 + $0x88] sm:$0xff]
    %v57 = vld [vmem:[#allocation4 + $0x90] sm:$0xff]
    %v58 = vld [vmem:[#allocation4 + $0x98] sm:$0xff]
    %v59 = vld [vmem:[#allocation4 + $0xa0] sm:$0xff]
    %v60 = vld [vmem:[#allocation4 + $0xa8] sm:$0xff]
    %v61 = vld [vmem:[#allocation4 + $0xb0] sm:$0xff]
    %v62 = vld [vmem:[#allocation4 + $0xb8] sm:$0xff]
    %v63 = vld [vmem:[#allocation4 + $0xc0] sm:$0xff]
    %v64 = vld [vmem:[#allocation4 + $0xc8] sm:$0xff]
    %v65 = vld [vmem:[#allocation4 + $0xd0] sm:$0xff]
    %v66 = vld [vmem:[#allocation4 + $0xd8] sm:$0xff]
    %v67 = vld [vmem:[#allocation4 + $0xe0] sm:$0xff]
    %v68 = vld [vmem:[#allocation4 + $0xe8] sm:$0xff]
    %v69 = vld [vmem:[#allocation4 + $0xf0] sm:$0xff]
    %v70 = vld [vmem:[#allocation4 + $0xf8] sm:$0xff]
    %v103 = vunpack.c.l.b16 %v39
    %v104 = vunpack.c.h.b16 %v39
    %v105 = vunpack.c.l.b16 %v40
    %v106 = vunpack.c.h.b16 %v40
    %v107 = vunpack.c.l.b16 %v41
    %v108 = vunpack.c.h.b16 %v41
    %v109 = vunpack.c.l.b16 %v42
    %v110 = vunpack.c.h.b16 %v42
    %v111 = vunpack.c.l.b16 %v43
    %v112 = vunpack.c.h.b16 %v43
    %v113 = vunpack.c.l.b16 %v44
    %v114 = vunpack.c.h.b16 %v44
    %v115 = vunpack.c.l.b16 %v45
    %v116 = vunpack.c.h.b16 %v45
    %v117 = vunpack.c.l.b16 %v46
    %v118 = vunpack.c.h.b16 %v46
    %v119 = vunpack.c.l.b16 %v47
    %v120 = vunpack.c.h.b16 %v47
    %v121 = vunpack.c.l.b16 %v48
    %v122 = vunpack.c.h.b16 %v48
    %v123 = vunpack.c.l.b16 %v49
    %v124 = vunpack.c.h.b16 %v49
    %v125 = vunpack.c.l.b16 %v50
    %v126 = vunpack.c.h.b16 %v50
    %v127 = vunpack.c.l.b16 %v51
    %v128 = vunpack.c.h.b16 %v51
    %v129 = vunpack.c.l.b16 %v52
    %v130 = vunpack.c.h.b16 %v52
    %v131 = vunpack.c.l.b16 %v53
    %v132 = vunpack.c.h.b16 %v53
    %v133 = vunpack.c.l.b16 %v54
    %v134 = vunpack.c.h.b16 %v54
    %v135 = vunpack.c.l.b16 %v55
    %v136 = vunpack.c.h.b16 %v55
    %v137 = vunpack.c.l.b16 %v56
    %v138 = vunpack.c.h.b16 %v56
    %v139 = vunpack.c.l.b16 %v57
    %v140 = vunpack.c.h.b16 %v57
    %v141 = vunpack.c.l.b16 %v58
    %v142 = vunpack.c.h.b16 %v58
    %v143 = vunpack.c.l.b16 %v59
    %v144 = vunpack.c.h.b16 %v59
    %v145 = vunpack.c.l.b16 %v60
    %v146 = vunpack.c.h.b16 %v60
    %v147 = vunpack.c.l.b16 %v61
    %v148 = vunpack.c.h.b16 %v61
    %v149 = vunpack.c.l.b16 %v62
    %v150 = vunpack.c.h.b16 %v62
    %v151 = vunpack.c.l.b16 %v63
    %v152 = vunpack.c.h.b16 %v63
    %v153 = vunpack.c.l.b16 %v64
    %v154 = vunpack.c.h.b16 %v64
    %v155 = vunpack.c.l.b16 %v65
    %v156 = vunpack.c.h.b16 %v65
    %v157 = vunpack.c.l.b16 %v66
    %v158 = vunpack.c.h.b16 %v66
    %v159 = vunpack.c.l.b16 %v67
    %v160 = vunpack.c.h.b16 %v67
    %v161 = vunpack.c.l.b16 %v68
    %v162 = vunpack.c.h.b16 %v68
    %v163 = vunpack.c.l.b16 %v69
    %v164 = vunpack.c.h.b16 %v69
    %v165 = vunpack.c.l.b16 %v70
    %v166 = vunpack.c.h.b16 %v70
    %v167 = vpack.c.b16 %v107, %v103
    %v168 = vpack.c.b16 %v108, %v104
    %v169 = vpack.c.b16 %v109, %v105
    %v170 = vpack.c.b16 %v110, %v106
    %v171 = vpack.c.b16 %v115, %v111
    %v172 = vpack.c.b16 %v116, %v112
    %v173 = vpack.c.b16 %v117, %v113
    %v174 = vpack.c.b16 %v118, %v114
    %v175 = vpack.c.b16 %v123, %v119
    %v176 = vpack.c.b16 %v124, %v120
    %v177 = vpack.c.b16 %v125, %v121
    %v178 = vpack.c.b16 %v126, %v122
    %v179 = vpack.c.b16 %v131, %v127
    %v180 = vpack.c.b16 %v132, %v128
    %v181 = vpack.c.b16 %v133, %v129
    %v182 = vpack.c.b16 %v134, %v130
    %v183 = vpack.c.b16 %v139, %v135
    %v184 = vpack.c.b16 %v140, %v136
    %v185 = vpack.c.b16 %v141, %v137
    %v186 = vpack.c.b16 %v142, %v138
    %v187 = vpack.c.b16 %v147, %v143
    %v188 = vpack.c.b16 %v148, %v144
    %v189 = vpack.c.b16 %v149, %v145
    %v190 = vpack.c.b16 %v150, %v146
    %v191 = vpack.c.b16 %v155, %v151
    %v192 = vpack.c.b16 %v156, %v152
    %v193 = vpack.c.b16 %v157, %v153
    %v194 = vpack.c.b16 %v158, %v154
    %v195 = vpack.c.b16 %v163, %v159
    %v196 = vpack.c.b16 %v164, %v160
    %v197 = vpack.c.b16 %v165, %v161
    %v198 = vpack.c.b16 %v166, %v162
    %231 = vmatpush.bf16.msra.mxu0 %v195
    %232 = vmatpush.bf16.msra.mxu0 %v191
    %233 = vmatpush.bf16.msra.mxu0 %v187
    %234 = vmatpush.bf16.msra.mxu0 %v183
    %235 = vmatpush.bf16.msra.mxu0 %v179
    %236 = vmatpush.bf16.msra.mxu0 %v175
    %237 = vmatpush.bf16.msra.mxu0 %v171
    %238 = vmatpush.bf16.msra.mxu0 %v167
    %239 = vmatmul.bf16.gmra.mxu0 %v38
    %v240 = vpop.f32.mrf.mxu0
    %v241 = vadd.f32 0.0, %v240
    %v242 = vpop.f32.mrf.mxu0
    %243 = vdwg.mxu0
    %244 = vmatpush.bf16.msra.mxu0 %v196
    %245 = vmatpush.bf16.msra.mxu0 %v192
    %246 = vmatpush.bf16.msra.mxu0 %v188
    %247 = vmatpush.bf16.msra.mxu0 %v184
    %248 = vmatpush.bf16.msra.mxu0 %v180
    %249 = vmatpush.bf16.msra.mxu0 %v176
    %250 = vmatpush.bf16.msra.mxu0 %v172
    %251 = vmatpush.bf16.msra.mxu0 %v168
    %252 = vmatmul.bf16.gmra.mxu0 %v38
    %v253 = vpop.f32.mrf.mxu0
    %v254 = vadd.f32 0.0, %v253
    %v255 = vpop.f32.mrf.mxu0
    %256 = vdwg.mxu0
    %257 = vmatpush.bf16.msra.mxu0 %v197
    %258 = vmatpush.bf16.msra.mxu0 %v193
    %259 = vmatpush.bf16.msra.mxu0 %v189
    %260 = vmatpush.bf16.msra.mxu0 %v185
    %261 = vmatpush.bf16.msra.mxu0 %v181
    %262 = vmatpush.bf16.msra.mxu0 %v177
    %263 = vmatpush.bf16.msra.mxu0 %v173
    %264 = vmatpush.bf16.msra.mxu0 %v169
    %265 = vmatmul.bf16.gmra.mxu0 %v38
    %v266 = vpop.f32.mrf.mxu0
    %v267 = vadd.f32 0.0, %v266
    %v268 = vpop.f32.mrf.mxu0
    %269 = vdwg.mxu0
    %270 = vmatpush.bf16.msra.mxu0 %v198
    %271 = vmatpush.bf16.msra.mxu0 %v194
    %272 = vmatpush.bf16.msra.mxu0 %v190
    %273 = vmatpush.bf16.msra.mxu0 %v186
    %274 = vmatpush.bf16.msra.mxu0 %v182
    %275 = vmatpush.bf16.msra.mxu0 %v178
    %276 = vmatpush.bf16.msra.mxu0 %v174
    %277 = vmatpush.bf16.msra.mxu0 %v170
    %278 = vmatmul.bf16.gmra.mxu0 %v38
    %v279 = vpop.f32.mrf.mxu0
    %v280 = vadd.f32 0.0, %v279
    %v281 = vpop.f32.mrf.mxu0
    %282 = vdwg.mxu0
    %v283 = vadd.f32 %v33, %v241
    %v284 = vadd.f32 %v34, %v254
    %v285 = vadd.f32 %v35, %v267
    %v286 = vadd.f32 %v36, %v280
    %v287 = vxor.u32 %v283, 2147483648
    %v288 = vmul.f32 %v287, 1.442695
    %v289 = vpow.pop %v288
    %v290 = vadd.f32 %v289, 1.0
    %v291 = vrcp.pop %v290
    %v292 = vmul.f32 %v290, %v291
    %v293 = vsub.f32 1.0, %v292
    %v294 = vmul.f32 %v291, %v293
    %v295 = vadd.f32 %v291, %v294
    %vm296 = vweird.f32 %v290
    %vm297 = vweird.f32 %v291
    %vm298 = vmor %vm296, %vm297
    %v299 = vsel %vm298, %v291, %v295
    %v300 = vand.u32 2147483647, %v290
    %vm301 = vcmp.eq.f32.partialorder %v300, 8.507059e+37
    %v302 = vand.u32 %v290, 2147483648
    %v303 = vor.u32 1.1754944e-38, %v302
    %v304 = vsel %vm301, %v303, %v299
    %v305 = vmul.f32 1.0, %v304
    %v306 = vxor.u32 %v284, 2147483648
    %v307 = vmul.f32 %v306, 1.442695
    %v308 = vpow.pop %v307
    %v309 = vadd.f32 %v308, 1.0
    %v310 = vrcp.pop %v309
    %v311 = vmul.f32 %v309, %v310
    %v312 = vsub.f32 1.0, %v311
    %v313 = vmul.f32 %v310, %v312
    %v314 = vadd.f32 %v310, %v313
    %vm315 = vweird.f32 %v309
    %vm316 = vweird.f32 %v310
    %vm317 = vmor %vm315, %vm316
    %v318 = vsel %vm317, %v310, %v314
    %v319 = vand.u32 2147483647, %v309
    %vm320 = vcmp.eq.f32.partialorder %v319, 8.507059e+37
    %v321 = vand.u32 %v309, 2147483648
    %v322 = vor.u32 1.1754944e-38, %v321
    %v323 = vsel %vm320, %v322, %v318
    %v324 = vmul.f32 1.0, %v323
    %v325 = vtanh.pop %v285
    %v326 = vxor.u32 %v286, 2147483648
    %v327 = vmul.f32 %v326, 1.442695
    %v328 = vpow.pop %v327
    %v329 = vadd.f32 %v328, 1.0
    %v330 = vrcp.pop %v329
    %v331 = vmul.f32 %v329, %v330
    %v332 = vsub.f32 1.0, %v331
    %v333 = vmul.f32 %v330, %v332
    %v334 = vadd.f32 %v330, %v333
    %vm335 = vweird.f32 %v329
    %vm336 = vweird.f32 %v330
    %vm337 = vmor %vm335, %vm336
    %v338 = vsel %vm337, %v330, %v334
    %v339 = vand.u32 2147483647, %v329
    %vm340 = vcmp.eq.f32.partialorder %v339, 8.507059e+37
    %v341 = vand.u32 %v329, 2147483648
    %v342 = vor.u32 1.1754944e-38, %v341
    %v343 = vsel %vm340, %v342, %v338
    %v344 = vmul.f32 1.0, %v343
    %v345 = vld [vmem:[#allocation3] sm:$0xff]
    %v346 = vmul.f32 %v324, %v345
    %v347 = vmul.f32 %v305, %v325
    %v348 = vadd.f32 %v346, %v347
    %v349 = vtanh.pop %v348
    %v350 = vmul.f32 %v344, %v349
    %351 = vst [vmem:[#allocation3] sm:$0xff] %v348
    %352 = vst [vmem:[#allocation2] sm:$0xff] %v350
    %v353 = vpack.c.bf16 %v350, %v350
    %354 = vst [vmem:[%s2] sm:$0xf] %v353
    %s355 = scalar_lea.vmem %s0, 32
    %v356 = vld [vmem:[%s355] sm:$0xff]
    %v357 = vld [vmem:[%s355 + $0x8] sm:$0xff]
    %v358 = vld [vmem:[%s355 + $0x10] sm:$0xff]
    %v359 = vld [vmem:[%s355 + $0x18] sm:$0xff]
    %v360 = vld [vmem:[#allocation2] sm:$0xff]
    %v361 = vpack.c.bf16 %v360, %v360
    %v362 = vld [vmem:[#allocation4] sm:$0xff]
    %v363 = vld [vmem:[#allocation4 + $0x8] sm:$0xff]
    %v364 = vld [vmem:[#allocation4 + $0x10] sm:$0xff]
    %v365 = vld [vmem:[#allocation4 + $0x18] sm:$0xff]
    %v366 = vld [vmem:[#allocation4 + $0x20] sm:$0xff]
    %v367 = vld [vmem:[#allocation4 + $0x28] sm:$0xff]
    %v368 = vld [vmem:[#allocation4 + $0x30] sm:$0xff]
    %v369 = vld [vmem:[#allocation4 + $0x38] sm:$0xff]
    %v370 = vld [vmem:[#allocation4 + $0x40] sm:$0xff]
    %v371 = vld [vmem:[#allocation4 + $0x48] sm:$0xff]
    %v372 = vld [vmem:[#allocation4 + $0x50] sm:$0xff]
    %v373 = vld [vmem:[#allocation4 + $0x58] sm:$0xff]
    %v374 = vld [vmem:[#allocation4 + $0x60] sm:$0xff]
    %v375 = vld [vmem:[#allocation4 + $0x68] sm:$0xff]
    %v376 = vld [vmem:[#allocation4 + $0x70] sm:$0xff]
    %v377 = vld [vmem:[#allocation4 + $0x78] sm:$0xff]
    %v378 = vld [vmem:[#allocation4 + $0x80] sm:$0xff]
    %v379 = vld [vmem:[#allocation4 + $0x88] sm:$0xff]
    %v380 = vld [vmem:[#allocation4 + $0x90] sm:$0xff]
    %v381 = vld [vmem:[#allocation4 + $0x98] sm:$0xff]
    %v382 = vld [vmem:[#allocation4 + $0xa0] sm:$0xff]
    %v383 = vld [vmem:[#allocation4 + $0xa8] sm:$0xff]
    %v384 = vld [vmem:[#allocation4 + $0xb0] sm:$0xff]
    %v385 = vld [vmem:[#allocation4 + $0xb8] sm:$0xff]
    %v386 = vld [vmem:[#allocation4 + $0xc0] sm:$0xff]
    %v387 = vld [vmem:[#allocation4 + $0xc8] sm:$0xff]
    %v388 = vld [vmem:[#allocation4 + $0xd0] sm:$0xff]
    %v389 = vld [vmem:[#allocation4 + $0xd8] sm:$0xff]
    %v390 = vld [vmem:[#allocation4 + $0xe0] sm:$0xff]
    %v391 = vld [vmem:[#allocation4 + $0xe8] sm:$0xff]
    %v392 = vld [vmem:[#allocation4 + $0xf0] sm:$0xff]
    %v393 = vld [vmem:[#allocation4 + $0xf8] sm:$0xff]
    %v426 = vunpack.c.l.b16 %v362
    %v427 = vunpack.c.h.b16 %v362
    %v428 = vunpack.c.l.b16 %v363
    %v429 = vunpack.c.h.b16 %v363
    %v430 = vunpack.c.l.b16 %v364
    %v431 = vunpack.c.h.b16 %v364
    %v432 = vunpack.c.l.b16 %v365
    %v433 = vunpack.c.h.b16 %v365
    %v434 = vunpack.c.l.b16 %v366
    %v435 = vunpack.c.h.b16 %v366
    %v436 = vunpack.c.l.b16 %v367
    %v437 = vunpack.c.h.b16 %v367
    %v438 = vunpack.c.l.b16 %v368
    %v439 = vunpack.c.h.b16 %v368
    %v440 = vunpack.c.l.b16 %v369
    %v441 = vunpack.c.h.b16 %v369
    %v442 = vunpack.c.l.b16 %v370
    %v443 = vunpack.c.h.b16 %v370
    %v444 = vunpack.c.l.b16 %v371
    %v445 = vunpack.c.h.b16 %v371
    %v446 = vunpack.c.l.b16 %v372
    %v447 = vunpack.c.h.b16 %v372
    %v448 = vunpack.c.l.b16 %v373
    %v449 = vunpack.c.h.b16 %v373
    %v450 = vunpack.c.l.b16 %v374
    %v451 = vunpack.c.h.b16 %v374
    %v452 = vunpack.c.l.b16 %v375
    %v453 = vunpack.c.h.b16 %v375
    %v454 = vunpack.c.l.b16 %v376
    %v455 = vunpack.c.h.b16 %v376
    %v456 = vunpack.c.l.b16 %v377
    %v457 = vunpack.c.h.b16 %v377
    %v458 = vunpack.c.l.b16 %v378
    %v459 = vunpack.c.h.b16 %v378
    %v460 = vunpack.c.l.b16 %v379
    %v461 = vunpack.c.h.b16 %v379
    %v462 = vunpack.c.l.b16 %v380
    %v463 = vunpack.c.h.b16 %v380
    %v464 = vunpack.c.l.b16 %v381
    %v465 = vunpack.c.h.b16 %v381
    %v466 = vunpack.c.l.b16 %v382
    %v467 = vunpack.c.h.b16 %v382
    %v468 = vunpack.c.l.b16 %v383
    %v469 = vunpack.c.h.b16 %v383
    %v470 = vunpack.c.l.b16 %v384
    %v471 = vunpack.c.h.b16 %v384
    %v472 = vunpack.c.l.b16 %v385
    %v473 = vunpack.c.h.b16 %v385
    %v474 = vunpack.c.l.b16 %v386
    %v475 = vunpack.c.h.b16 %v386
    %v476 = vunpack.c.l.b16 %v387
    %v477 = vunpack.c.h.b16 %v387
    %v478 = vunpack.c.l.b16 %v388
    %v479 = vunpack.c.h.b16 %v388
    %v480 = vunpack.c.l.b16 %v389
    %v481 = vunpack.c.h.b16 %v389
    %v482 = vunpack.c.l.b16 %v390
    %v483 = vunpack.c.h.b16 %v390
    %v484 = vunpack.c.l.b16 %v391
    %v485 = vunpack.c.h.b16 %v391
    %v486 = vunpack.c.l.b16 %v392
    %v487 = vunpack.c.h.b16 %v392
    %v488 = vunpack.c.l.b16 %v393
    %v489 = vunpack.c.h.b16 %v393
    %v490 = vpack.c.b16 %v430, %v426
    %v491 = vpack.c.b16 %v431, %v427
    %v492 = vpack.c.b16 %v432, %v428
    %v493 = vpack.c.b16 %v433, %v429
    %v494 = vpack.c.b16 %v438, %v434
    %v495 = vpack.c.b16 %v439, %v435
    %v496 = vpack.c.b16 %v440, %v436
    %v497 = vpack.c.b16 %v441, %v437
    %v498 = vpack.c.b16 %v446, %v442
    %v499 = vpack.c.b16 %v447, %v443
    %v500 = vpack.c.b16 %v448, %v444
    %v501 = vpack.c.b16 %v449, %v445
    %v502 = vpack.c.b16 %v454, %v450
    %v503 = vpack.c.b16 %v455, %v451
    %v504 = vpack.c.b16 %v456, %v452
    %v505 = vpack.c.b16 %v457, %v453
    %v506 = vpack.c.b16 %v462, %v458
    %v507 = vpack.c.b16 %v463, %v459
    %v508 = vpack.c.b16 %v464, %v460
    %v509 = vpack.c.b16 %v465, %v461
    %v510 = vpack.c.b16 %v470, %v466
    %v511 = vpack.c.b16 %v471, %v467
    %v512 = vpack.c.b16 %v472, %v468
    %v513 = vpack.c.b16 %v473, %v469
    %v514 = vpack.c.b16 %v478, %v474
    %v515 = vpack.c.b16 %v479, %v475
    %v516 = vpack.c.b16 %v480, %v476
    %v517 = vpack.c.b16 %v481, %v477
    %v518 = vpack.c.b16 %v486, %v482
    %v519 = vpack.c.b16 %v487, %v483
    %v520 = vpack.c.b16 %v488, %v484
    %v521 = vpack.c.b16 %v489, %v485
    %554 = vmatpush.bf16.msra.mxu0 %v518
    %555 = vmatpush.bf16.msra.mxu0 %v514
    %556 = vmatpush.bf16.msra.mxu0 %v510
    %557 = vmatpush.bf16.msra.mxu0 %v506
    %558 = vmatpush.bf16.msra.mxu0 %v502
    %559 = vmatpush.bf16.msra.mxu0 %v498
    %560 = vmatpush.bf16.msra.mxu0 %v494
    %561 = vmatpush.bf16.msra.mxu0 %v490
    %562 = vmatmul.bf16.gmra.mxu0 %v361
    %v563 = vpop.f32.mrf.mxu0
    %v564 = vadd.f32 0.0, %v563
    %v565 = vpop.f32.mrf.mxu0
    %566 = vdwg.mxu0
    %567 = vmatpush.bf16.msra.mxu0 %v519
    %568 = vmatpush.bf16.msra.mxu0 %v515
    %569 = vmatpush.bf16.msra.mxu0 %v511
    %570 = vmatpush.bf16.msra.mxu0 %v507
    %571 = vmatpush.bf16.msra.mxu0 %v503
    %572 = vmatpush.bf16.msra.mxu0 %v499
    %573 = vmatpush.bf16.msra.mxu0 %v495
    %574 = vmatpush.bf16.msra.mxu0 %v491
    %575 = vmatmul.bf16.gmra.mxu0 %v361
    %v576 = vpop.f32.mrf.mxu0
    %v577 = vadd.f32 0.0, %v576
    %v578 = vpop.f32.mrf.mxu0
    %579 = vdwg.mxu0
    %580 = vmatpush.bf16.msra.mxu0 %v520
    %581 = vmatpush.bf16.msra.mxu0 %v516
    %582 = vmatpush.bf16.msra.mxu0 %v512
    %583 = vmatpush.bf16.msra.mxu0 %v508
    %584 = vmatpush.bf16.msra.mxu0 %v504
    %585 = vmatpush.bf16.msra.mxu0 %v500
    %586 = vmatpush.bf16.msra.mxu0 %v496
    %587 = vmatpush.bf16.msra.mxu0 %v492
    %588 = vmatmul.bf16.gmra.mxu0 %v361
    %v589 = vpop.f32.mrf.mxu0
    %v590 = vadd.f32 0.0, %v589
    %v591 = vpop.f32.mrf.mxu0
    %592 = vdwg.mxu0
    %593 = vmatpush.bf16.msra.mxu0 %v521
    %594 = vmatpush.bf16.msra.mxu0 %v517
    %595 = vmatpush.bf16.msra.mxu0 %v513
    %596 = vmatpush.bf16.msra.mxu0 %v509
    %597 = vmatpush.bf16.msra.mxu0 %v505
    %598 = vmatpush.bf16.msra.mxu0 %v501
    %599 = vmatpush.bf16.msra.mxu0 %v497
    %600 = vmatpush.bf16.msra.mxu0 %v493
    %601 = vmatmul.bf16.gmra.mxu0 %v361
    %v602 = vpop.f32.mrf.mxu0
    %v603 = vadd.f32 0.0, %v602
    %v604 = vpop.f32.mrf.mxu0
    %605 = vdwg.mxu0
    %v606 = vadd.f32 %v356, %v564
    %v607 = vadd.f32 %v357, %v577
    %v608 = vadd.f32 %v358, %v590
    %v609 = vadd.f32 %v359, %v603
    %v610 = vxor.u32 %v606, 2147483648
    %v611 = vmul.f32 %v610, 1.442695
    %v612 = vpow.pop %v611
    %v613 = vadd.f32 %v612, 1.0
    %v614 = vrcp.pop %v613
    %v615 = vmul.f32 %v613, %v614
    %v616 = vsub.f32 1.0, %v615
    %v617 = vmul.f32 %v614, %v616
    %v618 = vadd.f32 %v614, %v617
    %vm619 = vweird.f32 %v613
    %vm620 = vweird.f32 %v614
    %vm621 = vmor %vm619, %vm620
    %v622 = vsel %vm621, %v614, %v618
    %v623 = vand.u32 2147483647, %v613
    %vm624 = vcmp.eq.f32.partialorder %v623, 8.507059e+37
    %v625 = vand.u32 %v613, 2147483648
    %v626 = vor.u32 1.1754944e-38, %v625
    %v627 = vsel %vm624, %v626, %v622
    %v628 = vmul.f32 1.0, %v627
    %v629 = vxor.u32 %v607, 2147483648
    %v630 = vmul.f32 %v629, 1.442695
    %v631 = vpow.pop %v630
    %v632 = vadd.f32 %v631, 1.0
    %v633 = vrcp.pop %v632
    %v634 = vmul.f32 %v632, %v633
    %v635 = vsub.f32 1.0, %v634
    %v636 = vmul.f32 %v633, %v635
    %v637 = vadd.f32 %v633, %v636
    %vm638 = vweird.f32 %v632
    %vm639 = vweird.f32 %v633
    %vm640 = vmor %vm638, %vm639
    %v641 = vsel %vm640, %v633, %v637
    %v642 = vand.u32 2147483647, %v632
    %vm643 = vcmp.eq.f32.partialorder %v642, 8.507059e+37
    %v644 = vand.u32 %v632, 2147483648
    %v645 = vor.u32 1.1754944e-38, %v644
    %v646 = vsel %vm643, %v645, %v641
    %v647 = vmul.f32 1.0, %v646
    %v648 = vtanh.pop %v608
    %v649 = vxor.u32 %v609, 2147483648
    %v650 = vmul.f32 %v649, 1.442695
    %v651 = vpow.pop %v650
    %v652 = vadd.f32 %v651, 1.0
    %v653 = vrcp.pop %v652
    %v654 = vmul.f32 %v652, %v653
    %v655 = vsub.f32 1.0, %v654
    %v656 = vmul.f32 %v653, %v655
    %v657 = vadd.f32 %v653, %v656
    %vm658 = vweird.f32 %v652
    %vm659 = vweird.f32 %v653
    %vm660 = vmor %vm658, %vm659
    %v661 = vsel %vm660, %v653, %v657
    %v662 = vand.u32 2147483647, %v652
    %vm663 = vcmp.eq.f32.partialorder %v662, 8.507059e+37
    %v664 = vand.u32 %v652, 2147483648
    %v665 = vor.u32 1.1754944e-38, %v664
    %v666 = vsel %vm663, %v665, %v661
    %v667 = vmul.f32 1.0, %v666
    %v668 = vld [vmem:[#allocation3] sm:$0xff]
    %v669 = vmul.f32 %v647, %v668
    %v670 = vmul.f32 %v628, %v648
    %v671 = vadd.f32 %v669, %v670
    %v672 = vtanh.pop %v671
    %v673 = vmul.f32 %v667, %v672
    %674 = vst [vmem:[#allocation3] sm:$0xff] %v671
    %675 = vst [vmem:[#allocation2] sm:$0xff] %v673
    %v676 = vpack.c.bf16 %v673, %v673
    %s677 = scalar_lea.vmem %s2, 4
    %678 = vst [vmem:[%s677] sm:$0xf] %v676
    %s679 = scalar_lea.vmem %s0, 64
    %v680 = vld [vmem:[%s679] sm:$0xff]
    %v681 = vld [vmem:[%s679 + $0x8] sm:$0xff]
    %v682 = vld [vmem:[%s679 + $0x10] sm:$0xff]
    %v683 = vld [vmem:[%s679 + $0x18] sm:$0xff]
    %v684 = vld [vmem:[#allocation2] sm:$0xff]
    %v685 = vpack.c.bf16 %v684, %v684
    %v686 = vld [vmem:[#allocation4] sm:$0xff]
    %v687 = vld [vmem:[#allocation4 + $0x8] sm:$0xff]
    %v688 = vld [vmem:[#allocation4 + $0x10] sm:$0xff]
    %v689 = vld [vmem:[#allocation4 + $0x18] sm:$0xff]
    %v690 = vld [vmem:[#allocation4 + $0x20] sm:$0xff]
    %v691 = vld [vmem:[#allocation4 + $0x28] sm:$0xff]
    %v692 = vld [vmem:[#allocation4 + $0x30] sm:$0xff]
    %v693 = vld [vmem:[#allocation4 + $0x38] sm:$0xff]
    %v694 = vld [vmem:[#allocation4 + $0x40] sm:$0xff]
    %v695 = vld [vmem:[#allocation4 + $0x48] sm:$0xff]
    %v696 = vld [vmem:[#allocation4 + $0x50] sm:$0xff]
    %v697 = vld [vmem:[#allocation4 + $0x58] sm:$0xff]
    %v698 = vld [vmem:[#allocation4 + $0x60] sm:$0xff]
    %v699 = vld [vmem:[#allocation4 + $0x68] sm:$0xff]
    %v700 = vld [vmem:[#allocation4 + $0x70] sm:$0xff]
    %v701 = vld [vmem:[#allocation4 + $0x78] sm:$0xff]
    %v702 = vld [vmem:[#allocation4 + $0x80] sm:$0xff]
    %v703 = vld [vmem:[#allocation4 + $0x88] sm:$0xff]
    %v704 = vld [vmem:[#allocation4 + $0x90] sm:$0xff]
    %v705 = vld [vmem:[#allocation4 + $0x98] sm:$0xff]
    %v706 = vld [vmem:[#allocation4 + $0xa0] sm:$0xff]
    %v707 = vld [vmem:[#allocation4 + $0xa8] sm:$0xff]
    %v708 = vld [vmem:[#allocation4 + $0xb0] sm:$0xff]
    %v709 = vld [vmem:[#allocation4 + $0xb8] sm:$0xff]
    %v710 = vld [vmem:[#allocation4 + $0xc0] sm:$0xff]
    %v711 = vld [vmem:[#allocation4 + $0xc8] sm:$0xff]
    %v712 = vld [vmem:[#allocation4 + $0xd0] sm:$0xff]
    %v713 = vld [vmem:[#allocation4 + $0xd8] sm:$0xff]
    %v714 = vld [vmem:[#allocation4 + $0xe0] sm:$0xff]
    %v715 = vld [vmem:[#allocation4 + $0xe8] sm:$0xff]
    %v716 = vld [vmem:[#allocation4 + $0xf0] sm:$0xff]
    %v717 = vld [vmem:[#allocation4 + $0xf8] sm:$0xff]
    %v750 = vunpack.c.l.b16 %v686
    %v751 = vunpack.c.h.b16 %v686
    %v752 = vunpack.c.l.b16 %v687
    %v753 = vunpack.c.h.b16 %v687
    %v754 = vunpack.c.l.b16 %v688
    %v755 = vunpack.c.h.b16 %v688
    %v756 = vunpack.c.l.b16 %v689
    %v757 = vunpack.c.h.b16 %v689
    %v758 = vunpack.c.l.b16 %v690
    %v759 = vunpack.c.h.b16 %v690
    %v760 = vunpack.c.l.b16 %v691
    %v761 = vunpack.c.h.b16 %v691
    %v762 = vunpack.c.l.b16 %v692
    %v763 = vunpack.c.h.b16 %v692
    %v764 = vunpack.c.l.b16 %v693
    %v765 = vunpack.c.h.b16 %v693
    %v766 = vunpack.c.l.b16 %v694
    %v767 = vunpack.c.h.b16 %v694
    %v768 = vunpack.c.l.b16 %v695
    %v769 = vunpack.c.h.b16 %v695
    %v770 = vunpack.c.l.b16 %v696
    %v771 = vunpack.c.h.b16 %v696
    %v772 = vunpack.c.l.b16 %v697
    %v773 = vunpack.c.h.b16 %v697
    %v774 = vunpack.c.l.b16 %v698
    %v775 = vunpack.c.h.b16 %v698
    %v776 = vunpack.c.l.b16 %v699
    %v777 = vunpack.c.h.b16 %v699
    %v778 = vunpack.c.l.b16 %v700
    %v779 = vunpack.c.h.b16 %v700
    %v780 = vunpack.c.l.b16 %v701
    %v781 = vunpack.c.h.b16 %v701
    %v782 = vunpack.c.l.b16 %v702
    %v783 = vunpack.c.h.b16 %v702
    %v784 = vunpack.c.l.b16 %v703
    %v785 = vunpack.c.h.b16 %v703
    %v786 = vunpack.c.l.b16 %v704
    %v787 = vunpack.c.h.b16 %v704
    %v788 = vunpack.c.l.b16 %v705
    %v789 = vunpack.c.h.b16 %v705
    %v790 = vunpack.c.l.b16 %v706
    %v791 = vunpack.c.h.b16 %v706
    %v792 = vunpack.c.l.b16 %v707
    %v793 = vunpack.c.h.b16 %v707
    %v794 = vunpack.c.l.b16 %v708
    %v795 = vunpack.c.h.b16 %v708
    %v796 = vunpack.c.l.b16 %v709
    %v797 = vunpack.c.h.b16 %v709
    %v798 = vunpack.c.l.b16 %v710
    %v799 = vunpack.c.h.b16 %v710
    %v800 = vunpack.c.l.b16 %v711
    %v801 = vunpack.c.h.b16 %v711
    %v802 = vunpack.c.l.b16 %v712
    %v803 = vunpack.c.h.b16 %v712
    %v804 = vunpack.c.l.b16 %v713
    %v805 = vunpack.c.h.b16 %v713
    %v806 = vunpack.c.l.b16 %v714
    %v807 = vunpack.c.h.b16 %v714
    %v808 = vunpack.c.l.b16 %v715
    %v809 = vunpack.c.h.b16 %v715
    %v810 = vunpack.c.l.b16 %v716
    %v811 = vunpack.c.h.b16 %v716
    %v812 = vunpack.c.l.b16 %v717
    %v813 = vunpack.c.h.b16 %v717
    %v814 = vpack.c.b16 %v754, %v750
    %v815 = vpack.c.b16 %v755, %v751
    %v816 = vpack.c.b16 %v756, %v752
    %v817 = vpack.c.b16 %v757, %v753
    %v818 = vpack.c.b16 %v762, %v758
    %v819 = vpack.c.b16 %v763, %v759
    %v820 = vpack.c.b16 %v764, %v760
    %v821 = vpack.c.b16 %v765, %v761
    %v822 = vpack.c.b16 %v770, %v766
    %v823 = vpack.c.b16 %v771, %v767
    %v824 = vpack.c.b16 %v772, %v768
    %v825 = vpack.c.b16 %v773, %v769
    %v826 = vpack.c.b16 %v778, %v774
    %v827 = vpack.c.b16 %v779, %v775
    %v828 = vpack.c.b16 %v780, %v776
    %v829 = vpack.c.b16 %v781, %v777
    %v830 = vpack.c.b16 %v786, %v782
    %v831 = vpack.c.b16 %v787, %v783
    %v832 = vpack.c.b16 %v788, %v784
    %v833 = vpack.c.b16 %v789, %v785
    %v834 = vpack.c.b16 %v794, %v790
    %v835 = vpack.c.b16 %v795, %v791
    %v836 = vpack.c.b16 %v796, %v792
    %v837 = vpack.c.b16 %v797, %v793
    %v838 = vpack.c.b16 %v802, %v798
    %v839 = vpack.c.b16 %v803, %v799
    %v840 = vpack.c.b16 %v804, %v800
    %v841 = vpack.c.b16 %v805, %v801
    %v842 = vpack.c.b16 %v810, %v806
    %v843 = vpack.c.b16 %v811, %v807
    %v844 = vpack.c.b16 %v812, %v808
    %v845 = vpack.c.b16 %v813, %v809
    %878 = vmatpush.bf16.msra.mxu0 %v842
    %879 = vmatpush.bf16.msra.mxu0 %v838
    %880 = vmatpush.bf16.msra.mxu0 %v834
    %881 = vmatpush.bf16.msra.mxu0 %v830
    %882 = vmatpush.bf16.msra.mxu0 %v826
    %883 = vmatpush.bf16.msra.mxu0 %v822
    %884 = vmatpush.bf16.msra.mxu0 %v818
    %885 = vmatpush.bf16.msra.mxu0 %v814
    %886 = vmatmul.bf16.gmra.mxu0 %v685
    %v887 = vpop.f32.mrf.mxu0
    %v888 = vadd.f32 0.0, %v887
    %v889 = vpop.f32.mrf.mxu0
    %890 = vdwg.mxu0
    %891 = vmatpush.bf16.msra.mxu0 %v843
    %892 = vmatpush.bf16.msra.mxu0 %v839
    %893 = vmatpush.bf16.msra.mxu0 %v835
    %894 = vmatpush.bf16.msra.mxu0 %v831
    %895 = vmatpush.bf16.msra.mxu0 %v827
    %896 = vmatpush.bf16.msra.mxu0 %v823
    %897 = vmatpush.bf16.msra.mxu0 %v819
    %898 = vmatpush.bf16.msra.mxu0 %v815
    %899 = vmatmul.bf16.gmra.mxu0 %v685
    %v900 = vpop.f32.mrf.mxu0
    %v901 = vadd.f32 0.0, %v900
    %v902 = vpop.f32.mrf.mxu0
    %903 = vdwg.mxu0
    %904 = vmatpush.bf16.msra.mxu0 %v844
    %905 = vmatpush.bf16.msra.mxu0 %v840
    %906 = vmatpush.bf16.msra.mxu0 %v836
    %907 = vmatpush.bf16.msra.mxu0 %v832
    %908 = vmatpush.bf16.msra.mxu0 %v828
    %909 = vmatpush.bf16.msra.mxu0 %v824
    %910 = vmatpush.bf16.msra.mxu0 %v820
    %911 = vmatpush.bf16.msra.mxu0 %v816
    %912 = vmatmul.bf16.gmra.mxu0 %v685
    %v913 = vpop.f32.mrf.mxu0
    %v914 = vadd.f32 0.0, %v913
    %v915 = vpop.f32.mrf.mxu0
    %916 = vdwg.mxu0
    %917 = vmatpush.bf16.msra.mxu0 %v845
    %918 = vmatpush.bf16.msra.mxu0 %v841
    %919 = vmatpush.bf16.msra.mxu0 %v837
    %920 = vmatpush.bf16.msra.mxu0 %v833
    %921 = vmatpush.bf16.msra.mxu0 %v829
    %922 = vmatpush.bf16.msra.mxu0 %v825
    %923 = vmatpush.bf16.msra.mxu0 %v821
    %924 = vmatpush.bf16.msra.mxu0 %v817
    %925 = vmatmul.bf16.gmra.mxu0 %v685
    %v926 = vpop.f32.mrf.mxu0
    %v927 = vadd.f32 0.0, %v926
    %v928 = vpop.f32.mrf.mxu0
    %929 = vdwg.mxu0
    %v930 = vadd.f32 %v680, %v888
    %v931 = vadd.f32 %v681, %v901
    %v932 = vadd.f32 %v682, %v914
    %v933 = vadd.f32 %v683, %v927
    %v934 = vxor.u32 %v930, 2147483648
    %v935 = vmul.f32 %v934, 1.442695
    %v936 = vpow.pop %v935
    %v937 = vadd.f32 %v936, 1.0
    %v938 = vrcp.pop %v937
    %v939 = vmul.f32 %v937, %v938
    %v940 = vsub.f32 1.0, %v939
    %v941 = vmul.f32 %v938, %v940
    %v942 = vadd.f32 %v938, %v941
    %vm943 = vweird.f32 %v937
    %vm944 = vweird.f32 %v938
    %vm945 = vmor %vm943, %vm944
    %v946 = vsel %vm945, %v938, %v942
    %v947 = vand.u32 2147483647, %v937
    %vm948 = vcmp.eq.f32.partialorder %v947, 8.507059e+37
    %v949 = vand.u32 %v937, 2147483648
    %v950 = vor.u32 1.1754944e-38, %v949
    %v951 = vsel %vm948, %v950, %v946
    %v952 = vmul.f32 1.0, %v951
    %v953 = vxor.u32 %v931, 2147483648
    %v954 = vmul.f32 %v953, 1.442695
    %v955 = vpow.pop %v954
    %v956 = vadd.f32 %v955, 1.0
    %v957 = vrcp.pop %v956
    %v958 = vmul.f32 %v956, %v957
    %v959 = vsub.f32 1.0, %v958
    %v960 = vmul.f32 %v957, %v959
    %v961 = vadd.f32 %v957, %v960
    %vm962 = vweird.f32 %v956
    %vm963 = vweird.f32 %v957
    %vm964 = vmor %vm962, %vm963
    %v965 = vsel %vm964, %v957, %v961
    %v966 = vand.u32 2147483647, %v956
    %vm967 = vcmp.eq.f32.partialorder %v966, 8.507059e+37
    %v968 = vand.u32 %v956, 2147483648
    %v969 = vor.u32 1.1754944e-38, %v968
    %v970 = vsel %vm967, %v969, %v965
    %v971 = vmul.f32 1.0, %v970
    %v972 = vtanh.pop %v932
    %v973 = vxor.u32 %v933, 2147483648
    %v974 = vmul.f32 %v973, 1.442695
    %v975 = vpow.pop %v974
    %v976 = vadd.f32 %v975, 1.0
    %v977 = vrcp.pop %v976
    %v978 = vmul.f32 %v976, %v977
    %v979 = vsub.f32 1.0, %v978
    %v980 = vmul.f32 %v977, %v979
    %v981 = vadd.f32 %v977, %v980
    %vm982 = vweird.f32 %v976
    %vm983 = vweird.f32 %v977
    %vm984 = vmor %vm982, %vm983
    %v985 = vsel %vm984, %v977, %v981
    %v986 = vand.u32 2147483647, %v976
    %vm987 = vcmp.eq.f32.partialorder %v986, 8.507059e+37
    %v988 = vand.u32 %v976, 2147483648
    %v989 = vor.u32 1.1754944e-38, %v988
    %v990 = vsel %vm987, %v989, %v985
    %v991 = vmul.f32 1.0, %v990
    %v992 = vld [vmem:[#allocation3] sm:$0xff]
    %v993 = vmul.f32 %v971, %v992
    %v994 = vmul.f32 %v952, %v972
    %v995 = vadd.f32 %v993, %v994
    %v996 = vtanh.pop %v995
    %v997 = vmul.f32 %v991, %v996
    %998 = vst [vmem:[#allocation3] sm:$0xff] %v995
    %999 = vst [vmem:[#allocation2] sm:$0xff] %v997
    %v1000 = vpack.c.bf16 %v997, %v997
    %s1001 = scalar_lea.vmem %s2, 8
    %1002 = vst [vmem:[%s1001] sm:$0xf] %v1000
    %s1003 = scalar_lea.vmem %s0, 96
    %v1004 = vld [vmem:[%s1003] sm:$0xff]
    %v1005 = vld [vmem:[%s1003 + $0x8] sm:$0xff]
    %v1006 = vld [vmem:[%s1003 + $0x10] sm:$0xff]
    %v1007 = vld [vmem:[%s1003 + $0x18] sm:$0xff]
    %v1008 = vld [vmem:[#allocation2] sm:$0xff]
    %v1009 = vpack.c.bf16 %v1008, %v1008
    %v1010 = vld [vmem:[#allocation4] sm:$0xff]
    %v1011 = vld [vmem:[#allocation4 + $0x8] sm:$0xff]
    %v1012 = vld [vmem:[#allocation4 + $0x10] sm:$0xff]
    %v1013 = vld [vmem:[#allocation4 + $0x18] sm:$0xff]
    %v1014 = vld [vmem:[#allocation4 + $0x20] sm:$0xff]
    %v1015 = vld [vmem:[#allocation4 + $0x28] sm:$0xff]
    %v1016 = vld [vmem:[#allocation4 + $0x30] sm:$0xff]
    %v1017 = vld [vmem:[#allocation4 + $0x38] sm:$0xff]
    %v1018 = vld [vmem:[#allocation4 + $0x40] sm:$0xff]
    %v1019 = vld [vmem:[#allocation4 + $0x48] sm:$0xff]
    %v1020 = vld [vmem:[#allocation4 + $0x50] sm:$0xff]
    %v1021 = vld [vmem:[#allocation4 + $0x58] sm:$0xff]
    %v1022 = vld [vmem:[#allocation4 + $0x60] sm:$0xff]
    %v1023 = vld [vmem:[#allocation4 + $0x68] sm:$0xff]
    %v1024 = vld [vmem:[#allocation4 + $0x70] sm:$0xff]
    %v1025 = vld [vmem:[#allocation4 + $0x78] sm:$0xff]
    %v1026 = vld [vmem:[#allocation4 + $0x80] sm:$0xff]
    %v1027 = vld [vmem:[#allocation4 + $0x88] sm:$0xff]
    %v1028 = vld [vmem:[#allocation4 + $0x90] sm:$0xff]
    %v1029 = vld [vmem:[#allocation4 + $0x98] sm:$0xff]
    %v1030 = vld [vmem:[#allocation4 + $0xa0] sm:$0xff]
    %v1031 = vld [vmem:[#allocation4 + $0xa8] sm:$0xff]
    %v1032 = vld [vmem:[#allocation4 + $0xb0] sm:$0xff]
    %v1033 = vld [vmem:[#allocation4 + $0xb8] sm:$0xff]
    %v1034 = vld [vmem:[#allocation4 + $0xc0] sm:$0xff]
    %v1035 = vld [vmem:[#allocation4 + $0xc8] sm:$0xff]
    %v1036 = vld [vmem:[#allocation4 + $0xd0] sm:$0xff]
    %v1037 = vld [vmem:[#allocation4 + $0xd8] sm:$0xff]
    %v1038 = vld [vmem:[#allocation4 + $0xe0] sm:$0xff]
    %v1039 = vld [vmem:[#allocation4 + $0xe8] sm:$0xff]
    %v1040 = vld [vmem:[#allocation4 + $0xf0] sm:$0xff]
    %v1041 = vld [vmem:[#allocation4 + $0xf8] sm:$0xff]
    %v1074 = vunpack.c.l.b16 %v1010
    %v1075 = vunpack.c.h.b16 %v1010
    %v1076 = vunpack.c.l.b16 %v1011
    %v1077 = vunpack.c.h.b16 %v1011
    %v1078 = vunpack.c.l.b16 %v1012
    %v1079 = vunpack.c.h.b16 %v1012
    %v1080 = vunpack.c.l.b16 %v1013
    %v1081 = vunpack.c.h.b16 %v1013
    %v1082 = vunpack.c.l.b16 %v1014
    %v1083 = vunpack.c.h.b16 %v1014
    %v1084 = vunpack.c.l.b16 %v1015
    %v1085 = vunpack.c.h.b16 %v1015
    %v1086 = vunpack.c.l.b16 %v1016
    %v1087 = vunpack.c.h.b16 %v1016
    %v1088 = vunpack.c.l.b16 %v1017
    %v1089 = vunpack.c.h.b16 %v1017
    %v1090 = vunpack.c.l.b16 %v1018
    %v1091 = vunpack.c.h.b16 %v1018
    %v1092 = vunpack.c.l.b16 %v1019
    %v1093 = vunpack.c.h.b16 %v1019
    %v1094 = vunpack.c.l.b16 %v1020
    %v1095 = vunpack.c.h.b16 %v1020
    %v1096 = vunpack.c.l.b16 %v1021
    %v1097 = vunpack.c.h.b16 %v1021
    %v1098 = vunpack.c.l.b16 %v1022
    %v1099 = vunpack.c.h.b16 %v1022
    %v1100 = vunpack.c.l.b16 %v1023
    %v1101 = vunpack.c.h.b16 %v1023
    %v1102 = vunpack.c.l.b16 %v1024
    %v1103 = vunpack.c.h.b16 %v1024
    %v1104 = vunpack.c.l.b16 %v1025
    %v1105 = vunpack.c.h.b16 %v1025
    %v1106 = vunpack.c.l.b16 %v1026
    %v1107 = vunpack.c.h.b16 %v1026
    %v1108 = vunpack.c.l.b16 %v1027
    %v1109 = vunpack.c.h.b16 %v1027
    %v1110 = vunpack.c.l.b16 %v1028
    %v1111 = vunpack.c.h.b16 %v1028
    %v1112 = vunpack.c.l.b16 %v1029
    %v1113 = vunpack.c.h.b16 %v1029
    %v1114 = vunpack.c.l.b16 %v1030
    %v1115 = vunpack.c.h.b16 %v1030
    %v1116 = vunpack.c.l.b16 %v1031
    %v1117 = vunpack.c.h.b16 %v1031
    %v1118 = vunpack.c.l.b16 %v1032
    %v1119 = vunpack.c.h.b16 %v1032
    %v1120 = vunpack.c.l.b16 %v1033
    %v1121 = vunpack.c.h.b16 %v1033
    %v1122 = vunpack.c.l.b16 %v1034
    %v1123 = vunpack.c.h.b16 %v1034
    %v1124 = vunpack.c.l.b16 %v1035
    %v1125 = vunpack.c.h.b16 %v1035
    %v1126 = vunpack.c.l.b16 %v1036
    %v1127 = vunpack.c.h.b16 %v1036
    %v1128 = vunpack.c.l.b16 %v1037
    %v1129 = vunpack.c.h.b16 %v1037
    %v1130 = vunpack.c.l.b16 %v1038
    %v1131 = vunpack.c.h.b16 %v1038
    %v1132 = vunpack.c.l.b16 %v1039
    %v1133 = vunpack.c.h.b16 %v1039
    %v1134 = vunpack.c.l.b16 %v1040
    %v1135 = vunpack.c.h.b16 %v1040
    %v1136 = vunpack.c.l.b16 %v1041
    %v1137 = vunpack.c.h.b16 %v1041
    %v1138 = vpack.c.b16 %v1078, %v1074
    %v1139 = vpack.c.b16 %v1079, %v1075
    %v1140 = vpack.c.b16 %v1080, %v1076
    %v1141 = vpack.c.b16 %v1081, %v1077
    %v1142 = vpack.c.b16 %v1086, %v1082
    %v1143 = vpack.c.b16 %v1087, %v1083
    %v1144 = vpack.c.b16 %v1088, %v1084
    %v1145 = vpack.c.b16 %v1089, %v1085
    %v1146 = vpack.c.b16 %v1094, %v1090
    %v1147 = vpack.c.b16 %v1095, %v1091
    %v1148 = vpack.c.b16 %v1096, %v1092
    %v1149 = vpack.c.b16 %v1097, %v1093
    %v1150 = vpack.c.b16 %v1102, %v1098
    %v1151 = vpack.c.b16 %v1103, %v1099
    %v1152 = vpack.c.b16 %v1104, %v1100
    %v1153 = vpack.c.b16 %v1105, %v1101
    %v1154 = vpack.c.b16 %v1110, %v1106
    %v1155 = vpack.c.b16 %v1111, %v1107
    %v1156 = vpack.c.b16 %v1112, %v1108
    %v1157 = vpack.c.b16 %v1113, %v1109
    %v1158 = vpack.c.b16 %v1118, %v1114
    %v1159 = vpack.c.b16 %v1119, %v1115
    %v1160 = vpack.c.b16 %v1120, %v1116
    %v1161 = vpack.c.b16 %v1121, %v1117
    %v1162 = vpack.c.b16 %v1126, %v1122
    %v1163 = vpack.c.b16 %v1127, %v1123
    %v1164 = vpack.c.b16 %v1128, %v1124
    %v1165 = vpack.c.b16 %v1129, %v1125
    %v1166 = vpack.c.b16 %v1134, %v1130
    %v1167 = vpack.c.b16 %v1135, %v1131
    %v1168 = vpack.c.b16 %v1136, %v1132
    %v1169 = vpack.c.b16 %v1137, %v1133
    %1202 = vmatpush.bf16.msra.mxu0 %v1166
    %1203 = vmatpush.bf16.msra.mxu0 %v1162
    %1204 = vmatpush.bf16.msra.mxu0 %v1158
    %1205 = vmatpush.bf16.msra.mxu0 %v1154
    %1206 = vmatpush.bf16.msra.mxu0 %v1150
    %1207 = vmatpush.bf16.msra.mxu0 %v1146
    %1208 = vmatpush.bf16.msra.mxu0 %v1142
    %1209 = vmatpush.bf16.msra.mxu0 %v1138
    %1210 = vmatmul.bf16.gmra.mxu0 %v1009
    %v1211 = vpop.f32.mrf.mxu0
    %v1212 = vadd.f32 0.0, %v1211
    %v1213 = vpop.f32.mrf.mxu0
    %1214 = vdwg.mxu0
    %1215 = vmatpush.bf16.msra.mxu0 %v1167
    %1216 = vmatpush.bf16.msra.mxu0 %v1163
    %1217 = vmatpush.bf16.msra.mxu0 %v1159
    %1218 = vmatpush.bf16.msra.mxu0 %v1155
    %1219 = vmatpush.bf16.msra.mxu0 %v1151
    %1220 = vmatpush.bf16.msra.mxu0 %v1147
    %1221 = vmatpush.bf16.msra.mxu0 %v1143
    %1222 = vmatpush.bf16.msra.mxu0 %v1139
    %1223 = vmatmul.bf16.gmra.mxu0 %v1009
    %v1224 = vpop.f32.mrf.mxu0
    %v1225 = vadd.f32 0.0, %v1224
    %v1226 = vpop.f32.mrf.mxu0
    %1227 = vdwg.mxu0
    %1228 = vmatpush.bf16.msra.mxu0 %v1168
    %1229 = vmatpush.bf16.msra.mxu0 %v1164
    %1230 = vmatpush.bf16.msra.mxu0 %v1160
    %1231 = vmatpush.bf16.msra.mxu0 %v1156
    %1232 = vmatpush.bf16.msra.mxu0 %v1152
    %1233 = vmatpush.bf16.msra.mxu0 %v1148
    %1234 = vmatpush.bf16.msra.mxu0 %v1144
    %1235 = vmatpush.bf16.msra.mxu0 %v1140
    %1236 = vmatmul.bf16.gmra.mxu0 %v1009
    %v1237 = vpop.f32.mrf.mxu0
    %v1238 = vadd.f32 0.0, %v1237
    %v1239 = vpop.f32.mrf.mxu0
    %1240 = vdwg.mxu0
    %1241 = vmatpush.bf16.msra.mxu0 %v1169
    %1242 = vmatpush.bf16.msra.mxu0 %v1165
    %1243 = vmatpush.bf16.msra.mxu0 %v1161
    %1244 = vmatpush.bf16.msra.mxu0 %v1157
    %1245 = vmatpush.bf16.msra.mxu0 %v1153
    %1246 = vmatpush.bf16.msra.mxu0 %v1149
    %1247 = vmatpush.bf16.msra.mxu0 %v1145
    %1248 = vmatpush.bf16.msra.mxu0 %v1141
    %1249 = vmatmul.bf16.gmra.mxu0 %v1009
    %v1250 = vpop.f32.mrf.mxu0
    %v1251 = vadd.f32 0.0, %v1250
    %v1252 = vpop.f32.mrf.mxu0
    %1253 = vdwg.mxu0
    %v1254 = vadd.f32 %v1004, %v1212
    %v1255 = vadd.f32 %v1005, %v1225
    %v1256 = vadd.f32 %v1006, %v1238
    %v1257 = vadd.f32 %v1007, %v1251
    %v1258 = vxor.u32 %v1254, 2147483648
    %v1259 = vmul.f32 %v1258, 1.442695
    %v1260 = vpow.pop %v1259
    %v1261 = vadd.f32 %v1260, 1.0
    %v1262 = vrcp.pop %v1261
    %v1263 = vmul.f32 %v1261, %v1262
    %v1264 = vsub.f32 1.0, %v1263
    %v1265 = vmul.f32 %v1262, %v1264
    %v1266 = vadd.f32 %v1262, %v1265
    %vm1267 = vweird.f32 %v1261
    %vm1268 = vweird.f32 %v1262
    %vm1269 = vmor %vm1267, %vm1268
    %v1270 = vsel %vm1269, %v1262, %v1266
    %v1271 = vand.u32 2147483647, %v1261
    %vm1272 = vcmp.eq.f32.partialorder %v1271, 8.507059e+37
    %v1273 = vand.u32 %v1261, 2147483648
    %v1274 = vor.u32 1.1754944e-38, %v1273
    %v1275 = vsel %vm1272, %v1274, %v1270
    %v1276 = vmul.f32 1.0, %v1275
    %v1277 = vxor.u32 %v1255, 2147483648
    %v1278 = vmul.f32 %v1277, 1.442695
    %v1279 = vpow.pop %v1278
    %v1280 = vadd.f32 %v1279, 1.0
    %v1281 = vrcp.pop %v1280
    %v1282 = vmul.f32 %v1280, %v1281
    %v1283 = vsub.f32 1.0, %v1282
    %v1284 = vmul.f32 %v1281, %v1283
    %v1285 = vadd.f32 %v1281, %v1284
    %vm1286 = vweird.f32 %v1280
    %vm1287 = vweird.f32 %v1281
    %vm1288 = vmor %vm1286, %vm1287
    %v1289 = vsel %vm1288, %v1281, %v1285
    %v1290 = vand.u32 2147483647, %v1280
    %vm1291 = vcmp.eq.f32.partialorder %v1290, 8.507059e+37
    %v1292 = vand.u32 %v1280, 2147483648
    %v1293 = vor.u32 1.1754944e-38, %v1292
    %v1294 = vsel %vm1291, %v1293, %v1289
    %v1295 = vmul.f32 1.0, %v1294
    %v1296 = vtanh.pop %v1256
    %v1297 = vxor.u32 %v1257, 2147483648
    %v1298 = vmul.f32 %v1297, 1.442695
    %v1299 = vpow.pop %v1298
    %v1300 = vadd.f32 %v1299, 1.0
    %v1301 = vrcp.pop %v1300
    %v1302 = vmul.f32 %v1300, %v1301
    %v1303 = vsub.f32 1.0, %v1302
    %v1304 = vmul.f32 %v1301, %v1303
    %v1305 = vadd.f32 %v1301, %v1304
    %vm1306 = vweird.f32 %v1300
    %vm1307 = vweird.f32 %v1301
    %vm1308 = vmor %vm1306, %vm1307
    %v1309 = vsel %vm1308, %v1301, %v1305
    %v1310 = vand.u32 2147483647, %v1300
    %vm1311 = vcmp.eq.f32.partialorder %v1310, 8.507059e+37
    %v1312 = vand.u32 %v1300, 2147483648
    %v1313 = vor.u32 1.1754944e-38, %v1312
    %v1314 = vsel %vm1311, %v1313, %v1309
    %v1315 = vmul.f32 1.0, %v1314
    %v1316 = vld [vmem:[#allocation3] sm:$0xff]
    %v1317 = vmul.f32 %v1295, %v1316
    %v1318 = vmul.f32 %v1276, %v1296
    %v1319 = vadd.f32 %v1317, %v1318
    %v1320 = vtanh.pop %v1319
    %v1321 = vmul.f32 %v1315, %v1320
    %1322 = vst [vmem:[#allocation3] sm:$0xff] %v1319
    %1323 = vst [vmem:[#allocation2] sm:$0xff] %v1321
    %v1324 = vpack.c.bf16 %v1321, %v1321
    %s1325 = scalar_lea.vmem %s2, 12
    %1326 = vst [vmem:[%s1325] sm:$0xf] %v1324
    %s1327 = scalar_lea.vmem %s0, 128
    %v1328 = vld [vmem:[%s1327] sm:$0xff]
    %v1329 = vld [vmem:[%s1327 + $0x8] sm:$0xff]
    %v1330 = vld [vmem:[%s1327 + $0x10] sm:$0xff]
    %v1331 = vld [vmem:[%s1327 + $0x18] sm:$0xff]
    %v1332 = vld [vmem:[#allocation2] sm:$0xff]
    %v1333 = vpack.c.bf16 %v1332, %v1332
    %v1334 = vld [vmem:[#allocation4] sm:$0xff]
    %v1335 = vld [vmem:[#allocation4 + $0x8] sm:$0xff]
    %v1336 = vld [vmem:[#allocation4 + $0x10] sm:$0xff]
    %v1337 = vld [vmem:[#allocation4 + $0x18] sm:$0xff]
    %v1338 = vld [vmem:[#allocation4 + $0x20] sm:$0xff]
    %v1339 = vld [vmem:[#allocation4 + $0x28] sm:$0xff]
    %v1340 = vld [vmem:[#allocation4 + $0x30] sm:$0xff]
    %v1341 = vld [vmem:[#allocation4 + $0x38] sm:$0xff]
    %v1342 = vld [vmem:[#allocation4 + $0x40] sm:$0xff]
    %v1343 = vld [vmem:[#allocation4 + $0x48] sm:$0xff]
    %v1344 = vld [vmem:[#allocation4 + $0x50] sm:$0xff]
    %v1345 = vld [vmem:[#allocation4 + $0x58] sm:$0xff]
    %v1346 = vld [vmem:[#allocation4 + $0x60] sm:$0xff]
    %v1347 = vld [vmem:[#allocation4 + $0x68] sm:$0xff]
    %v1348 = vld [vmem:[#allocation4 + $0x70] sm:$0xff]
    %v1349 = vld [vmem:[#allocation4 + $0x78] sm:$0xff]
    %v1350 = vld [vmem:[#allocation4 + $0x80] sm:$0xff]
    %v1351 = vld [vmem:[#allocation4 + $0x88] sm:$0xff]
    %v1352 = vld [vmem:[#allocation4 + $0x90] sm:$0xff]
    %v1353 = vld [vmem:[#allocation4 + $0x98] sm:$0xff]
    %v1354 = vld [vmem:[#allocation4 + $0xa0] sm:$0xff]
    %v1355 = vld [vmem:[#allocation4 + $0xa8] sm:$0xff]
    %v1356 = vld [vmem:[#allocation4 + $0xb0] sm:$0xff]
    %v1357 = vld [vmem:[#allocation4 + $0xb8] sm:$0xff]
    %v1358 = vld [vmem:[#allocation4 + $0xc0] sm:$0xff]
    %v1359 = vld [vmem:[#allocation4 + $0xc8] sm:$0xff]
    %v1360 = vld [vmem:[#allocation4 + $0xd0] sm:$0xff]
    %v1361 = vld [vmem:[#allocation4 + $0xd8] sm:$0xff]
    %v1362 = vld [vmem:[#allocation4 + $0xe0] sm:$0xff]
    %v1363 = vld [vmem:[#allocation4 + $0xe8] sm:$0xff]
    %v1364 = vld [vmem:[#allocation4 + $0xf0] sm:$0xff]
    %v1365 = vld [vmem:[#allocation4 + $0xf8] sm:$0xff]
    %v1398 = vunpack.c.l.b16 %v1334
    %v1399 = vunpack.c.h.b16 %v1334
    %v1400 = vunpack.c.l.b16 %v1335
    %v1401 = vunpack.c.h.b16 %v1335
    %v1402 = vunpack.c.l.b16 %v1336
    %v1403 = vunpack.c.h.b16 %v1336
    %v1404 = vunpack.c.l.b16 %v1337
    %v1405 = vunpack.c.h.b16 %v1337
    %v1406 = vunpack.c.l.b16 %v1338
    %v1407 = vunpack.c.h.b16 %v1338
    %v1408 = vunpack.c.l.b16 %v1339
    %v1409 = vunpack.c.h.b16 %v1339
    %v1410 = vunpack.c.l.b16 %v1340
    %v1411 = vunpack.c.h.b16 %v1340
    %v1412 = vunpack.c.l.b16 %v1341
    %v1413 = vunpack.c.h.b16 %v1341
    %v1414 = vunpack.c.l.b16 %v1342
    %v1415 = vunpack.c.h.b16 %v1342
    %v1416 = vunpack.c.l.b16 %v1343
    %v1417 = vunpack.c.h.b16 %v1343
    %v1418 = vunpack.c.l.b16 %v1344
    %v1419 = vunpack.c.h.b16 %v1344
    %v1420 = vunpack.c.l.b16 %v1345
    %v1421 = vunpack.c.h.b16 %v1345
    %v1422 = vunpack.c.l.b16 %v1346
    %v1423 = vunpack.c.h.b16 %v1346
    %v1424 = vunpack.c.l.b16 %v1347
    %v1425 = vunpack.c.h.b16 %v1347
    %v1426 = vunpack.c.l.b16 %v1348
    %v1427 = vunpack.c.h.b16 %v1348
    %v1428 = vunpack.c.l.b16 %v1349
    %v1429 = vunpack.c.h.b16 %v1349
    %v1430 = vunpack.c.l.b16 %v1350
    %v1431 = vunpack.c.h.b16 %v1350
    %v1432 = vunpack.c.l.b16 %v1351
    %v1433 = vunpack.c.h.b16 %v1351
    %v1434 = vunpack.c.l.b16 %v1352
    %v1435 = vunpack.c.h.b16 %v1352
    %v1436 = vunpack.c.l.b16 %v1353
    %v1437 = vunpack.c.h.b16 %v1353
    %v1438 = vunpack.c.l.b16 %v1354
    %v1439 = vunpack.c.h.b16 %v1354
    %v1440 = vunpack.c.l.b16 %v1355
    %v1441 = vunpack.c.h.b16 %v1355
    %v1442 = vunpack.c.l.b16 %v1356
    %v1443 = vunpack.c.h.b16 %v1356
    %v1444 = vunpack.c.l.b16 %v1357
    %v1445 = vunpack.c.h.b16 %v1357
    %v1446 = vunpack.c.l.b16 %v1358
    %v1447 = vunpack.c.h.b16 %v1358
    %v1448 = vunpack.c.l.b16 %v1359
    %v1449 = vunpack.c.h.b16 %v1359
    %v1450 = vunpack.c.l.b16 %v1360
    %v1451 = vunpack.c.h.b16 %v1360
    %v1452 = vunpack.c.l.b16 %v1361
    %v1453 = vunpack.c.h.b16 %v1361
    %v1454 = vunpack.c.l.b16 %v1362
    %v1455 = vunpack.c.h.b16 %v1362
    %v1456 = vunpack.c.l.b16 %v1363
    %v1457 = vunpack.c.h.b16 %v1363
    %v1458 = vunpack.c.l.b16 %v1364
    %v1459 = vunpack.c.h.b16 %v1364
    %v1460 = vunpack.c.l.b16 %v1365
    %v1461 = vunpack.c.h.b16 %v1365
    %v1462 = vpack.c.b16 %v1402, %v1398
    %v1463 = vpack.c.b16 %v1403, %v1399
    %v1464 = vpack.c.b16 %v1404, %v1400
    %v1465 = vpack.c.b16 %v1405, %v1401
    %v1466 = vpack.c.b16 %v1410, %v1406
    %v1467 = vpack.c.b16 %v1411, %v1407
    %v1468 = vpack.c.b16 %v1412, %v1408
    %v1469 = vpack.c.b16 %v1413, %v1409
    %v1470 = vpack.c.b16 %v1418, %v1414
    %v1471 = vpack.c.b16 %v1419, %v1415
    %v1472 = vpack.c.b16 %v1420, %v1416
    %v1473 = vpack.c.b16 %v1421, %v1417
    %v1474 = vpack.c.b16 %v1426, %v1422
    %v1475 = vpack.c.b16 %v1427, %v1423
    %v1476 = vpack.c.b16 %v1428, %v1424
    %v1477 = vpack.c.b16 %v1429, %v1425
    %v1478 = vpack.c.b16 %v1434, %v1430
    %v1479 = vpack.c.b16 %v1435, %v1431
    %v1480 = vpack.c.b16 %v1436, %v1432
    %v1481 = vpack.c.b16 %v1437, %v1433
    %v1482 = vpack.c.b16 %v1442, %v1438
    %v1483 = vpack.c.b16 %v1443, %v1439
    %v1484 = vpack.c.b16 %v1444, %v1440
    %v1485 = vpack.c.b16 %v1445, %v1441
    %v1486 = vpack.c.b16 %v1450, %v1446
    %v1487 = vpack.c.b16 %v1451, %v1447
    %v1488 = vpack.c.b16 %v1452, %v1448
    %v1489 = vpack.c.b16 %v1453, %v1449
    %v1490 = vpack.c.b16 %v1458, %v1454
    %v1491 = vpack.c.b16 %v1459, %v1455
    %v1492 = vpack.c.b16 %v1460, %v1456
    %v1493 = vpack.c.b16 %v1461, %v1457
    %1526 = vmatpush.bf16.msra.mxu0 %v1490
    %1527 = vmatpush.bf16.msra.mxu0 %v1486
    %1528 = vmatpush.bf16.msra.mxu0 %v1482
    %1529 = vmatpush.bf16.msra.mxu0 %v1478
    %1530 = vmatpush.bf16.msra.mxu0 %v1474
    %1531 = vmatpush.bf16.msra.mxu0 %v1470
    %1532 = vmatpush.bf16.msra.mxu0 %v1466
    %1533 = vmatpush.bf16.msra.mxu0 %v1462
    %1534 = vmatmul.bf16.gmra.mxu0 %v1333
    %v1535 = vpop.f32.mrf.mxu0
    %v1536 = vadd.f32 0.0, %v1535
    %v1537 = vpop.f32.mrf.mxu0
    %1538 = vdwg.mxu0
    %1539 = vmatpush.bf16.msra.mxu0 %v1491
    %1540 = vmatpush.bf16.msra.mxu0 %v1487
    %1541 = vmatpush.bf16.msra.mxu0 %v1483
    %1542 = vmatpush.bf16.msra.mxu0 %v1479
    %1543 = vmatpush.bf16.msra.mxu0 %v1475
    %1544 = vmatpush.bf16.msra.mxu0 %v1471
    %1545 = vmatpush.bf16.msra.mxu0 %v1467
    %1546 = vmatpush.bf16.msra.mxu0 %v1463
    %1547 = vmatmul.bf16.gmra.mxu0 %v1333
    %v1548 = vpop.f32.mrf.mxu0
    %v1549 = vadd.f32 0.0, %v1548
    %v1550 = vpop.f32.mrf.mxu0
    %1551 = vdwg.mxu0
    %1552 = vmatpush.bf16.msra.mxu0 %v1492
    %1553 = vmatpush.bf16.msra.mxu0 %v1488
    %1554 = vmatpush.bf16.msra.mxu0 %v1484
    %1555 = vmatpush.bf16.msra.mxu0 %v1480
    %1556 = vmatpush.bf16.msra.mxu0 %v1476
    %1557 = vmatpush.bf16.msra.mxu0 %v1472
    %1558 = vmatpush.bf16.msra.mxu0 %v1468
    %1559 = vmatpush.bf16.msra.mxu0 %v1464
    %1560 = vmatmul.bf16.gmra.mxu0 %v1333
    %v1561 = vpop.f32.mrf.mxu0
    %v1562 = vadd.f32 0.0, %v1561
    %v1563 = vpop.f32.mrf.mxu0
    %1564 = vdwg.mxu0
    %1565 = vmatpush.bf16.msra.mxu0 %v1493
    %1566 = vmatpush.bf16.msra.mxu0 %v1489
    %1567 = vmatpush.bf16.msra.mxu0 %v1485
    %1568 = vmatpush.bf16.msra.mxu0 %v1481
    %1569 = vmatpush.bf16.msra.mxu0 %v1477
    %1570 = vmatpush.bf16.msra.mxu0 %v1473
    %1571 = vmatpush.bf16.msra.mxu0 %v1469
    %1572 = vmatpush.bf16.msra.mxu0 %v1465
    %1573 = vmatmul.bf16.gmra.mxu0 %v1333
    %v1574 = vpop.f32.mrf.mxu0
    %v1575 = vadd.f32 0.0, %v1574
    %v1576 = vpop.f32.mrf.mxu0
    %1577 = vdwg.mxu0
    %v1578 = vadd.f32 %v1328, %v1536
    %v1579 = vadd.f32 %v1329, %v1549
    %v1580 = vadd.f32 %v1330, %v1562
    %v1581 = vadd.f32 %v1331, %v1575
    %v1582 = vxor.u32 %v1578, 2147483648
    %v1583 = vmul.f32 %v1582, 1.442695
    %v1584 = vpow.pop %v1583
    %v1585 = vadd.f32 %v1584, 1.0
    %v1586 = vrcp.pop %v1585
    %v1587 = vmul.f32 %v1585, %v1586
    %v1588 = vsub.f32 1.0, %v1587
    %v1589 = vmul.f32 %v1586, %v1588
    %v1590 = vadd.f32 %v1586, %v1589
    %vm1591 = vweird.f32 %v1585
    %vm1592 = vweird.f32 %v1586
    %vm1593 = vmor %vm1591, %vm1592
    %v1594 = vsel %vm1593, %v1586, %v1590
    %v1595 = vand.u32 2147483647, %v1585
    %vm1596 = vcmp.eq.f32.partialorder %v1595, 8.507059e+37
    %v1597 = vand.u32 %v1585, 2147483648
    %v1598 = vor.u32 1.1754944e-38, %v1597
    %v1599 = vsel %vm1596, %v1598, %v1594
    %v1600 = vmul.f32 1.0, %v1599
    %v1601 = vxor.u32 %v1579, 2147483648
    %v1602 = vmul.f32 %v1601, 1.442695
    %v1603 = vpow.pop %v1602
    %v1604 = vadd.f32 %v1603, 1.0
    %v1605 = vrcp.pop %v1604
    %v1606 = vmul.f32 %v1604, %v1605
    %v1607 = vsub.f32 1.0, %v1606
    %v1608 = vmul.f32 %v1605, %v1607
    %v1609 = vadd.f32 %v1605, %v1608
    %vm1610 = vweird.f32 %v1604
    %vm1611 = vweird.f32 %v1605
    %vm1612 = vmor %vm1610, %vm1611
    %v1613 = vsel %vm1612, %v1605, %v1609
    %v1614 = vand.u32 2147483647, %v1604
    %vm1615 = vcmp.eq.f32.partialorder %v1614, 8.507059e+37
    %v1616 = vand.u32 %v1604, 2147483648
    %v1617 = vor.u32 1.1754944e-38, %v1616
    %v1618 = vsel %vm1615, %v1617, %v1613
    %v1619 = vmul.f32 1.0, %v1618
    %v1620 = vtanh.pop %v1580
    %v1621 = vxor.u32 %v1581, 2147483648
    %v1622 = vmul.f32 %v1621, 1.442695
    %v1623 = vpow.pop %v1622
    %v1624 = vadd.f32 %v1623, 1.0
    %v1625 = vrcp.pop %v1624
    %v1626 = vmul.f32 %v1624, %v1625
    %v1627 = vsub.f32 1.0, %v1626
    %v1628 = vmul.f32 %v1625, %v1627
    %v1629 = vadd.f32 %v1625, %v1628
    %vm1630 = vweird.f32 %v1624
    %vm1631 = vweird.f32 %v1625
    %vm1632 = vmor %vm1630, %vm1631
    %v1633 = vsel %vm1632, %v1625, %v1629
    %v1634 = vand.u32 2147483647, %v1624
    %vm1635 = vcmp.eq.f32.partialorder %v1634, 8.507059e+37
    %v1636 = vand.u32 %v1624, 2147483648
    %v1637 = vor.u32 1.1754944e-38, %v1636
    %v1638 = vsel %vm1635, %v1637, %v1633
    %v1639 = vmul.f32 1.0, %v1638
    %v1640 = vld [vmem:[#allocation3] sm:$0xff]
    %v1641 = vmul.f32 %v1619, %v1640
    %v1642 = vmul.f32 %v1600, %v1620
    %v1643 = vadd.f32 %v1641, %v1642
    %v1644 = vtanh.pop %v1643
    %v1645 = vmul.f32 %v1639, %v1644
    %1646 = vst [vmem:[#allocation3] sm:$0xff] %v1643
    %1647 = vst [vmem:[#allocation2] sm:$0xff] %v1645
    %v1648 = vpack.c.bf16 %v1645, %v1645
    %s1649 = scalar_lea.vmem %s2, 16
    %1650 = vst [vmem:[%s1649] sm:$0xf] %v1648
    %s1651 = scalar_lea.vmem %s0, 160
    %v1652 = vld [vmem:[%s1651] sm:$0xff]
    %v1653 = vld [vmem:[%s1651 + $0x8] sm:$0xff]
    %v1654 = vld [vmem:[%s1651 + $0x10] sm:$0xff]
    %v1655 = vld [vmem:[%s1651 + $0x18] sm:$0xff]
    %v1656 = vld [vmem:[#allocation2] sm:$0xff]
    %v1657 = vpack.c.bf16 %v1656, %v1656
    %v1658 = vld [vmem:[#allocation4] sm:$0xff]
    %v1659 = vld [vmem:[#allocation4 + $0x8] sm:$0xff]
    %v1660 = vld [vmem:[#allocation4 + $0x10] sm:$0xff]
    %v1661 = vld [vmem:[#allocation4 + $0x18] sm:$0xff]
    %v1662 = vld [vmem:[#allocation4 + $0x20] sm:$0xff]
    %v1663 = vld [vmem:[#allocation4 + $0x28] sm:$0xff]
    %v1664 = vld [vmem:[#allocation4 + $0x30] sm:$0xff]
    %v1665 = vld [vmem:[#allocation4 + $0x38] sm:$0xff]
    %v1666 = vld [vmem:[#allocation4 + $0x40] sm:$0xff]
    %v1667 = vld [vmem:[#allocation4 + $0x48] sm:$0xff]
    %v1668 = vld [vmem:[#allocation4 + $0x50] sm:$0xff]
    %v1669 = vld [vmem:[#allocation4 + $0x58] sm:$0xff]
    %v1670 = vld [vmem:[#allocation4 + $0x60] sm:$0xff]
    %v1671 = vld [vmem:[#allocation4 + $0x68] sm:$0xff]
    %v1672 = vld [vmem:[#allocation4 + $0x70] sm:$0xff]
    %v1673 = vld [vmem:[#allocation4 + $0x78] sm:$0xff]
    %v1674 = vld [vmem:[#allocation4 + $0x80] sm:$0xff]
    %v1675 = vld [vmem:[#allocation4 + $0x88] sm:$0xff]
    %v1676 = vld [vmem:[#allocation4 + $0x90] sm:$0xff]
    %v1677 = vld [vmem:[#allocation4 + $0x98] sm:$0xff]
    %v1678 = vld [vmem:[#allocation4 + $0xa0] sm:$0xff]
    %v1679 = vld [vmem:[#allocation4 + $0xa8] sm:$0xff]
    %v1680 = vld [vmem:[#allocation4 + $0xb0] sm:$0xff]
    %v1681 = vld [vmem:[#allocation4 + $0xb8] sm:$0xff]
    %v1682 = vld [vmem:[#allocation4 + $0xc0] sm:$0xff]
    %v1683 = vld [vmem:[#allocation4 + $0xc8] sm:$0xff]
    %v1684 = vld [vmem:[#allocation4 + $0xd0] sm:$0xff]
    %v1685 = vld [vmem:[#allocation4 + $0xd8] sm:$0xff]
    %v1686 = vld [vmem:[#allocation4 + $0xe0] sm:$0xff]
    %v1687 = vld [vmem:[#allocation4 + $0xe8] sm:$0xff]
    %v1688 = vld [vmem:[#allocation4 + $0xf0] sm:$0xff]
    %v1689 = vld [vmem:[#allocation4 + $0xf8] sm:$0xff]
    %v1722 = vunpack.c.l.b16 %v1658
    %v1723 = vunpack.c.h.b16 %v1658
    %v1724 = vunpack.c.l.b16 %v1659
    %v1725 = vunpack.c.h.b16 %v1659
    %v1726 = vunpack.c.l.b16 %v1660
    %v1727 = vunpack.c.h.b16 %v1660
    %v1728 = vunpack.c.l.b16 %v1661
    %v1729 = vunpack.c.h.b16 %v1661
    %v1730 = vunpack.c.l.b16 %v1662
    %v1731 = vunpack.c.h.b16 %v1662
    %v1732 = vunpack.c.l.b16 %v1663
    %v1733 = vunpack.c.h.b16 %v1663
    %v1734 = vunpack.c.l.b16 %v1664
    %v1735 = vunpack.c.h.b16 %v1664
    %v1736 = vunpack.c.l.b16 %v1665
    %v1737 = vunpack.c.h.b16 %v1665
    %v1738 = vunpack.c.l.b16 %v1666
    %v1739 = vunpack.c.h.b16 %v1666
    %v1740 = vunpack.c.l.b16 %v1667
    %v1741 = vunpack.c.h.b16 %v1667
    %v1742 = vunpack.c.l.b16 %v1668
    %v1743 = vunpack.c.h.b16 %v1668
    %v1744 = vunpack.c.l.b16 %v1669
    %v1745 = vunpack.c.h.b16 %v1669
    %v1746 = vunpack.c.l.b16 %v1670
    %v1747 = vunpack.c.h.b16 %v1670
    %v1748 = vunpack.c.l.b16 %v1671
    %v1749 = vunpack.c.h.b16 %v1671
    %v1750 = vunpack.c.l.b16 %v1672
    %v1751 = vunpack.c.h.b16 %v1672
    %v1752 = vunpack.c.l.b16 %v1673
    %v1753 = vunpack.c.h.b16 %v1673
    %v1754 = vunpack.c.l.b16 %v1674
    %v1755 = vunpack.c.h.b16 %v1674
    %v1756 = vunpack.c.l.b16 %v1675
    %v1757 = vunpack.c.h.b16 %v1675
    %v1758 = vunpack.c.l.b16 %v1676
    %v1759 = vunpack.c.h.b16 %v1676
    %v1760 = vunpack.c.l.b16 %v1677
    %v1761 = vunpack.c.h.b16 %v1677
    %v1762 = vunpack.c.l.b16 %v1678
    %v1763 = vunpack.c.h.b16 %v1678
    %v1764 = vunpack.c.l.b16 %v1679
    %v1765 = vunpack.c.h.b16 %v1679
    %v1766 = vunpack.c.l.b16 %v1680
    %v1767 = vunpack.c.h.b16 %v1680
    %v1768 = vunpack.c.l.b16 %v1681
    %v1769 = vunpack.c.h.b16 %v1681
    %v1770 = vunpack.c.l.b16 %v1682
    %v1771 = vunpack.c.h.b16 %v1682
    %v1772 = vunpack.c.l.b16 %v1683
    %v1773 = vunpack.c.h.b16 %v1683
    %v1774 = vunpack.c.l.b16 %v1684
    %v1775 = vunpack.c.h.b16 %v1684
    %v1776 = vunpack.c.l.b16 %v1685
    %v1777 = vunpack.c.h.b16 %v1685
    %v1778 = vunpack.c.l.b16 %v1686
    %v1779 = vunpack.c.h.b16 %v1686
    %v1780 = vunpack.c.l.b16 %v1687
    %v1781 = vunpack.c.h.b16 %v1687
    %v1782 = vunpack.c.l.b16 %v1688
    %v1783 = vunpack.c.h.b16 %v1688
    %v1784 = vunpack.c.l.b16 %v1689
    %v1785 = vunpack.c.h.b16 %v1689
    %v1786 = vpack.c.b16 %v1726, %v1722
    %v1787 = vpack.c.b16 %v1727, %v1723
    %v1788 = vpack.c.b16 %v1728, %v1724
    %v1789 = vpack.c.b16 %v1729, %v1725
    %v1790 = vpack.c.b16 %v1734, %v1730
    %v1791 = vpack.c.b16 %v1735, %v1731
    %v1792 = vpack.c.b16 %v1736, %v1732
    %v1793 = vpack.c.b16 %v1737, %v1733
    %v1794 = vpack.c.b16 %v1742, %v1738
    %v1795 = vpack.c.b16 %v1743, %v1739
    %v1796 = vpack.c.b16 %v1744, %v1740
    %v1797 = vpack.c.b16 %v1745, %v1741
    %v1798 = vpack.c.b16 %v1750, %v1746
    %v1799 = vpack.c.b16 %v1751, %v1747
    %v1800 = vpack.c.b16 %v1752, %v1748
    %v1801 = vpack.c.b16 %v1753, %v1749
    %v1802 = vpack.c.b16 %v1758, %v1754
    %v1803 = vpack.c.b16 %v1759, %v1755
    %v1804 = vpack.c.b16 %v1760, %v1756
    %v1805 = vpack.c.b16 %v1761, %v1757
    %v1806 = vpack.c.b16 %v1766, %v1762
    %v1807 = vpack.c.b16 %v1767, %v1763
    %v1808 = vpack.c.b16 %v1768, %v1764
    %v1809 = vpack.c.b16 %v1769, %v1765
    %v1810 = vpack.c.b16 %v1774, %v1770
    %v1811 = vpack.c.b16 %v1775, %v1771
    %v1812 = vpack.c.b16 %v1776, %v1772
    %v1813 = vpack.c.b16 %v1777, %v1773
    %v1814 = vpack.c.b16 %v1782, %v1778
    %v1815 = vpack.c.b16 %v1783, %v1779
    %v1816 = vpack.c.b16 %v1784, %v1780
    %v1817 = vpack.c.b16 %v1785, %v1781
    %1850 = vmatpush.bf16.msra.mxu0 %v1814
    %1851 = vmatpush.bf16.msra.mxu0 %v1810
    %1852 = vmatpush.bf16.msra.mxu0 %v1806
    %1853 = vmatpush.bf16.msra.mxu0 %v1802
    %1854 = vmatpush.bf16.msra.mxu0 %v1798
    %1855 = vmatpush.bf16.msra.mxu0 %v1794
    %1856 = vmatpush.bf16.msra.mxu0 %v1790
    %1857 = vmatpush.bf16.msra.mxu0 %v1786
    %1858 = vmatmul.bf16.gmra.mxu0 %v1657
    %v1859 = vpop.f32.mrf.mxu0
    %v1860 = vadd.f32 0.0, %v1859
    %v1861 = vpop.f32.mrf.mxu0
    %1862 = vdwg.mxu0
    %1863 = vmatpush.bf16.msra.mxu0 %v1815
    %1864 = vmatpush.bf16.msra.mxu0 %v1811
    %1865 = vmatpush.bf16.msra.mxu0 %v1807
    %1866 = vmatpush.bf16.msra.mxu0 %v1803
    %1867 = vmatpush.bf16.msra.mxu0 %v1799
    %1868 = vmatpush.bf16.msra.mxu0 %v1795
    %1869 = vmatpush.bf16.msra.mxu0 %v1791
    %1870 = vmatpush.bf16.msra.mxu0 %v1787
    %1871 = vmatmul.bf16.gmra.mxu0 %v1657
    %v1872 = vpop.f32.mrf.mxu0
    %v1873 = vadd.f32 0.0, %v1872
    %v1874 = vpop.f32.mrf.mxu0
    %1875 = vdwg.mxu0
    %1876 = vmatpush.bf16.msra.mxu0 %v1816
    %1877 = vmatpush.bf16.msra.mxu0 %v1812
    %1878 = vmatpush.bf16.msra.mxu0 %v1808
    %1879 = vmatpush.bf16.msra.mxu0 %v1804
    %1880 = vmatpush.bf16.msra.mxu0 %v1800
    %1881 = vmatpush.bf16.msra.mxu0 %v1796
    %1882 = vmatpush.bf16.msra.mxu0 %v1792
    %1883 = vmatpush.bf16.msra.mxu0 %v1788
    %1884 = vmatmul.bf16.gmra.mxu0 %v1657
    %v1885 = vpop.f32.mrf.mxu0
    %v1886 = vadd.f32 0.0, %v1885
    %v1887 = vpop.f32.mrf.mxu0
    %1888 = vdwg.mxu0
    %1889 = vmatpush.bf16.msra.mxu0 %v1817
    %1890 = vmatpush.bf16.msra.mxu0 %v1813
    %1891 = vmatpush.bf16.msra.mxu0 %v1809
    %1892 = vmatpush.bf16.msra.mxu0 %v1805
    %1893 = vmatpush.bf16.msra.mxu0 %v1801
    %1894 = vmatpush.bf16.msra.mxu0 %v1797
    %1895 = vmatpush.bf16.msra.mxu0 %v1793
    %1896 = vmatpush.bf16.msra.mxu0 %v1789
    %1897 = vmatmul.bf16.gmra.mxu0 %v1657
    %v1898 = vpop.f32.mrf.mxu0
    %v1899 = vadd.f32 0.0, %v1898
    %v1900 = vpop.f32.mrf.mxu0
    %1901 = vdwg.mxu0
    %v1902 = vadd.f32 %v1652, %v1860
    %v1903 = vadd.f32 %v1653, %v1873
    %v1904 = vadd.f32 %v1654, %v1886
    %v1905 = vadd.f32 %v1655, %v1899
    %v1906 = vxor.u32 %v1902, 2147483648
    %v1907 = vmul.f32 %v1906, 1.442695
    %v1908 = vpow.pop %v1907
    %v1909 = vadd.f32 %v1908, 1.0
    %v1910 = vrcp.pop %v1909
    %v1911 = vmul.f32 %v1909, %v1910
    %v1912 = vsub.f32 1.0, %v1911
    %v1913 = vmul.f32 %v1910, %v1912
    %v1914 = vadd.f32 %v1910, %v1913
    %vm1915 = vweird.f32 %v1909
    %vm1916 = vweird.f32 %v1910
    %vm1917 = vmor %vm1915, %vm1916
    %v1918 = vsel %vm1917, %v1910, %v1914
    %v1919 = vand.u32 2147483647, %v1909
    %vm1920 = vcmp.eq.f32.partialorder %v1919, 8.507059e+37
    %v1921 = vand.u32 %v1909, 2147483648
    %v1922 = vor.u32 1.1754944e-38, %v1921
    %v1923 = vsel %vm1920, %v1922, %v1918
    %v1924 = vmul.f32 1.0, %v1923
    %v1925 = vxor.u32 %v1903, 2147483648
    %v1926 = vmul.f32 %v1925, 1.442695
    %v1927 = vpow.pop %v1926
    %v1928 = vadd.f32 %v1927, 1.0
    %v1929 = vrcp.pop %v1928
    %v1930 = vmul.f32 %v1928, %v1929
    %v1931 = vsub.f32 1.0, %v1930
    %v1932 = vmul.f32 %v1929, %v1931
    %v1933 = vadd.f32 %v1929, %v1932
    %vm1934 = vweird.f32 %v1928
    %vm1935 = vweird.f32 %v1929
    %vm1936 = vmor %vm1934, %vm1935
    %v1937 = vsel %vm1936, %v1929, %v1933
    %v1938 = vand.u32 2147483647, %v1928
    %vm1939 = vcmp.eq.f32.partialorder %v1938, 8.507059e+37
    %v1940 = vand.u32 %v1928, 2147483648
    %v1941 = vor.u32 1.1754944e-38, %v1940
    %v1942 = vsel %vm1939, %v1941, %v1937
    %v1943 = vmul.f32 1.0, %v1942
    %v1944 = vtanh.pop %v1904
    %v1945 = vxor.u32 %v1905, 2147483648
    %v1946 = vmul.f32 %v1945, 1.442695
    %v1947 = vpow.pop %v1946
    %v1948 = vadd.f32 %v1947, 1.0
    %v1949 = vrcp.pop %v1948
    %v1950 = vmul.f32 %v1948, %v1949
    %v1951 = vsub.f32 1.0, %v1950
    %v1952 = vmul.f32 %v1949, %v1951
    %v1953 = vadd.f32 %v1949, %v1952
    %vm1954 = vweird.f32 %v1948
    %vm1955 = vweird.f32 %v1949
    %vm1956 = vmor %vm1954, %vm1955
    %v1957 = vsel %vm1956, %v1949, %v1953
    %v1958 = vand.u32 2147483647, %v1948
    %vm1959 = vcmp.eq.f32.partialorder %v1958, 8.507059e+37
    %v1960 = vand.u32 %v1948, 2147483648
    %v1961 = vor.u32 1.1754944e-38, %v1960
    %v1962 = vsel %vm1959, %v1961, %v1957
    %v1963 = vmul.f32 1.0, %v1962
    %v1964 = vld [vmem:[#allocation3] sm:$0xff]
    %v1965 = vmul.f32 %v1943, %v1964
    %v1966 = vmul.f32 %v1924, %v1944
    %v1967 = vadd.f32 %v1965, %v1966
    %v1968 = vtanh.pop %v1967
    %v1969 = vmul.f32 %v1963, %v1968
    %1970 = vst [vmem:[#allocation3] sm:$0xff] %v1967
    %1971 = vst [vmem:[#allocation2] sm:$0xff] %v1969
    %v1972 = vpack.c.bf16 %v1969, %v1969
    %s1973 = scalar_lea.vmem %s2, 20
    %1974 = vst [vmem:[%s1973] sm:$0xf] %v1972
    %s1975 = scalar_lea.vmem %s0, 192
    %v1976 = vld [vmem:[%s1975] sm:$0xff]
    %v1977 = vld [vmem:[%s1975 + $0x8] sm:$0xff]
    %v1978 = vld [vmem:[%s1975 + $0x10] sm:$0xff]
    %v1979 = vld [vmem:[%s1975 + $0x18] sm:$0xff]
    %v1980 = vld [vmem:[#allocation2] sm:$0xff]
    %v1981 = vpack.c.bf16 %v1980, %v1980
    %v1982 = vld [vmem:[#allocation4] sm:$0xff]
    %v1983 = vld [vmem:[#allocation4 + $0x8] sm:$0xff]
    %v1984 = vld [vmem:[#allocation4 + $0x10] sm:$0xff]
    %v1985 = vld [vmem:[#allocation4 + $0x18] sm:$0xff]
    %v1986 = vld [vmem:[#allocation4 + $0x20] sm:$0xff]
    %v1987 = vld [vmem:[#allocation4 + $0x28] sm:$0xff]
    %v1988 = vld [vmem:[#allocation4 + $0x30] sm:$0xff]
    %v1989 = vld [vmem:[#allocation4 + $0x38] sm:$0xff]
    %v1990 = vld [vmem:[#allocation4 + $0x40] sm:$0xff]
    %v1991 = vld [vmem:[#allocation4 + $0x48] sm:$0xff]
    %v1992 = vld [vmem:[#allocation4 + $0x50] sm:$0xff]
    %v1993 = vld [vmem:[#allocation4 + $0x58] sm:$0xff]
    %v1994 = vld [vmem:[#allocation4 + $0x60] sm:$0xff]
    %v1995 = vld [vmem:[#allocation4 + $0x68] sm:$0xff]
    %v1996 = vld [vmem:[#allocation4 + $0x70] sm:$0xff]
    %v1997 = vld [vmem:[#allocation4 + $0x78] sm:$0xff]
    %v1998 = vld [vmem:[#allocation4 + $0x80] sm:$0xff]
    %v1999 = vld [vmem:[#allocation4 + $0x88] sm:$0xff]
    %v2000 = vld [vmem:[#allocation4 + $0x90] sm:$0xff]
    %v2001 = vld [vmem:[#allocation4 + $0x98] sm:$0xff]
    %v2002 = vld [vmem:[#allocation4 + $0xa0] sm:$0xff]
    %v2003 = vld [vmem:[#allocation4 + $0xa8] sm:$0xff]
    %v2004 = vld [vmem:[#allocation4 + $0xb0] sm:$0xff]
    %v2005 = vld [vmem:[#allocation4 + $0xb8] sm:$0xff]
    %v2006 = vld [vmem:[#allocation4 + $0xc0] sm:$0xff]
    %v2007 = vld [vmem:[#allocation4 + $0xc8] sm:$0xff]
    %v2008 = vld [vmem:[#allocation4 + $0xd0] sm:$0xff]
    %v2009 = vld [vmem:[#allocation4 + $0xd8] sm:$0xff]
    %v2010 = vld [vmem:[#allocation4 + $0xe0] sm:$0xff]
    %v2011 = vld [vmem:[#allocation4 + $0xe8] sm:$0xff]
    %v2012 = vld [vmem:[#allocation4 + $0xf0] sm:$0xff]
    %v2013 = vld [vmem:[#allocation4 + $0xf8] sm:$0xff]
    %v2046 = vunpack.c.l.b16 %v1982
    %v2047 = vunpack.c.h.b16 %v1982
    %v2048 = vunpack.c.l.b16 %v1983
    %v2049 = vunpack.c.h.b16 %v1983
    %v2050 = vunpack.c.l.b16 %v1984
    %v2051 = vunpack.c.h.b16 %v1984
    %v2052 = vunpack.c.l.b16 %v1985
    %v2053 = vunpack.c.h.b16 %v1985
    %v2054 = vunpack.c.l.b16 %v1986
    %v2055 = vunpack.c.h.b16 %v1986
    %v2056 = vunpack.c.l.b16 %v1987
    %v2057 = vunpack.c.h.b16 %v1987
    %v2058 = vunpack.c.l.b16 %v1988
    %v2059 = vunpack.c.h.b16 %v1988
    %v2060 = vunpack.c.l.b16 %v1989
    %v2061 = vunpack.c.h.b16 %v1989
    %v2062 = vunpack.c.l.b16 %v1990
    %v2063 = vunpack.c.h.b16 %v1990
    %v2064 = vunpack.c.l.b16 %v1991
    %v2065 = vunpack.c.h.b16 %v1991
    %v2066 = vunpack.c.l.b16 %v1992
    %v2067 = vunpack.c.h.b16 %v1992
    %v2068 = vunpack.c.l.b16 %v1993
    %v2069 = vunpack.c.h.b16 %v1993
    %v2070 = vunpack.c.l.b16 %v1994
    %v2071 = vunpack.c.h.b16 %v1994
    %v2072 = vunpack.c.l.b16 %v1995
    %v2073 = vunpack.c.h.b16 %v1995
    %v2074 = vunpack.c.l.b16 %v1996
    %v2075 = vunpack.c.h.b16 %v1996
    %v2076 = vunpack.c.l.b16 %v1997
    %v2077 = vunpack.c.h.b16 %v1997
    %v2078 = vunpack.c.l.b16 %v1998
    %v2079 = vunpack.c.h.b16 %v1998
    %v2080 = vunpack.c.l.b16 %v1999
    %v2081 = vunpack.c.h.b16 %v1999
    %v2082 = vunpack.c.l.b16 %v2000
    %v2083 = vunpack.c.h.b16 %v2000
    %v2084 = vunpack.c.l.b16 %v2001
    %v2085 = vunpack.c.h.b16 %v2001
    %v2086 = vunpack.c.l.b16 %v2002
    %v2087 = vunpack.c.h.b16 %v2002
    %v2088 = vunpack.c.l.b16 %v2003
    %v2089 = vunpack.c.h.b16 %v2003
    %v2090 = vunpack.c.l.b16 %v2004
    %v2091 = vunpack.c.h.b16 %v2004
    %v2092 = vunpack.c.l.b16 %v2005
    %v2093 = vunpack.c.h.b16 %v2005
    %v2094 = vunpack.c.l.b16 %v2006
    %v2095 = vunpack.c.h.b16 %v2006
    %v2096 = vunpack.c.l.b16 %v2007
    %v2097 = vunpack.c.h.b16 %v2007
    %v2098 = vunpack.c.l.b16 %v2008
    %v2099 = vunpack.c.h.b16 %v2008
    %v2100 = vunpack.c.l.b16 %v2009
    %v2101 = vunpack.c.h.b16 %v2009
    %v2102 = vunpack.c.l.b16 %v2010
    %v2103 = vunpack.c.h.b16 %v2010
    %v2104 = vunpack.c.l.b16 %v2011
    %v2105 = vunpack.c.h.b16 %v2011
    %v2106 = vunpack.c.l.b16 %v2012
    %v2107 = vunpack.c.h.b16 %v2012
    %v2108 = vunpack.c.l.b16 %v2013
    %v2109 = vunpack.c.h.b16 %v2013
    %v2110 = vpack.c.b16 %v2050, %v2046
    %v2111 = vpack.c.b16 %v2051, %v2047
    %v2112 = vpack.c.b16 %v2052, %v2048
    %v2113 = vpack.c.b16 %v2053, %v2049
    %v2114 = vpack.c.b16 %v2058, %v2054
    %v2115 = vpack.c.b16 %v2059, %v2055
    %v2116 = vpack.c.b16 %v2060, %v2056
    %v2117 = vpack.c.b16 %v2061, %v2057
    %v2118 = vpack.c.b16 %v2066, %v2062
    %v2119 = vpack.c.b16 %v2067, %v2063
    %v2120 = vpack.c.b16 %v2068, %v2064
    %v2121 = vpack.c.b16 %v2069, %v2065
    %v2122 = vpack.c.b16 %v2074, %v2070
    %v2123 = vpack.c.b16 %v2075, %v2071
    %v2124 = vpack.c.b16 %v2076, %v2072
    %v2125 = vpack.c.b16 %v2077, %v2073
    %v2126 = vpack.c.b16 %v2082, %v2078
    %v2127 = vpack.c.b16 %v2083, %v2079
    %v2128 = vpack.c.b16 %v2084, %v2080
    %v2129 = vpack.c.b16 %v2085, %v2081
    %v2130 = vpack.c.b16 %v2090, %v2086
    %v2131 = vpack.c.b16 %v2091, %v2087
    %v2132 = vpack.c.b16 %v2092, %v2088
    %v2133 = vpack.c.b16 %v2093, %v2089
    %v2134 = vpack.c.b16 %v2098, %v2094
    %v2135 = vpack.c.b16 %v2099, %v2095
    %v2136 = vpack.c.b16 %v2100, %v2096
    %v2137 = vpack.c.b16 %v2101, %v2097
    %v2138 = vpack.c.b16 %v2106, %v2102
    %v2139 = vpack.c.b16 %v2107, %v2103
    %v2140 = vpack.c.b16 %v2108, %v2104
    %v2141 = vpack.c.b16 %v2109, %v2105
    %2174 = vmatpush.bf16.msra.mxu0 %v2138
    %2175 = vmatpush.bf16.msra.mxu0 %v2134
    %2176 = vmatpush.bf16.msra.mxu0 %v2130
    %2177 = vmatpush.bf16.msra.mxu0 %v2126
    %2178 = vmatpush.bf16.msra.mxu0 %v2122
    %2179 = vmatpush.bf16.msra.mxu0 %v2118
    %2180 = vmatpush.bf16.msra.mxu0 %v2114
    %2181 = vmatpush.bf16.msra.mxu0 %v2110
    %2182 = vmatmul.bf16.gmra.mxu0 %v1981
    %v2183 = vpop.f32.mrf.mxu0
    %v2184 = vadd.f32 0.0, %v2183
    %v2185 = vpop.f32.mrf.mxu0
    %2186 = vdwg.mxu0
    %2187 = vmatpush.bf16.msra.mxu0 %v2139
    %2188 = vmatpush.bf16.msra.mxu0 %v2135
    %2189 = vmatpush.bf16.msra.mxu0 %v2131
    %2190 = vmatpush.bf16.msra.mxu0 %v2127
    %2191 = vmatpush.bf16.msra.mxu0 %v2123
    %2192 = vmatpush.bf16.msra.mxu0 %v2119
    %2193 = vmatpush.bf16.msra.mxu0 %v2115
    %2194 = vmatpush.bf16.msra.mxu0 %v2111
    %2195 = vmatmul.bf16.gmra.mxu0 %v1981
    %v2196 = vpop.f32.mrf.mxu0
    %v2197 = vadd.f32 0.0, %v2196
    %v2198 = vpop.f32.mrf.mxu0
    %2199 = vdwg.mxu0
    %2200 = vmatpush.bf16.msra.mxu0 %v2140
    %2201 = vmatpush.bf16.msra.mxu0 %v2136
    %2202 = vmatpush.bf16.msra.mxu0 %v2132
    %2203 = vmatpush.bf16.msra.mxu0 %v2128
    %2204 = vmatpush.bf16.msra.mxu0 %v2124
    %2205 = vmatpush.bf16.msra.mxu0 %v2120
    %2206 = vmatpush.bf16.msra.mxu0 %v2116
    %2207 = vmatpush.bf16.msra.mxu0 %v2112
    %2208 = vmatmul.bf16.gmra.mxu0 %v1981
    %v2209 = vpop.f32.mrf.mxu0
    %v2210 = vadd.f32 0.0, %v2209
    %v2211 = vpop.f32.mrf.mxu0
    %2212 = vdwg.mxu0
    %2213 = vmatpush.bf16.msra.mxu0 %v2141
    %2214 = vmatpush.bf16.msra.mxu0 %v2137
    %2215 = vmatpush.bf16.msra.mxu0 %v2133
    %2216 = vmatpush.bf16.msra.mxu0 %v2129
    %2217 = vmatpush.bf16.msra.mxu0 %v2125
    %2218 = vmatpush.bf16.msra.mxu0 %v2121
    %2219 = vmatpush.bf16.msra.mxu0 %v2117
    %2220 = vmatpush.bf16.msra.mxu0 %v2113
    %2221 = vmatmul.bf16.gmra.mxu0 %v1981
    %v2222 = vpop.f32.mrf.mxu0
    %v2223 = vadd.f32 0.0, %v2222
    %v2224 = vpop.f32.mrf.mxu0
    %2225 = vdwg.mxu0
    %v2226 = vadd.f32 %v1976, %v2184
    %v2227 = vadd.f32 %v1977, %v2197
    %v2228 = vadd.f32 %v1978, %v2210
    %v2229 = vadd.f32 %v1979, %v2223
    %v2230 = vxor.u32 %v2226, 2147483648
    %v2231 = vmul.f32 %v2230, 1.442695
    %v2232 = vpow.pop %v2231
    %v2233 = vadd.f32 %v2232, 1.0
    %v2234 = vrcp.pop %v2233
    %v2235 = vmul.f32 %v2233, %v2234
    %v2236 = vsub.f32 1.0, %v2235
    %v2237 = vmul.f32 %v2234, %v2236
    %v2238 = vadd.f32 %v2234, %v2237
    %vm2239 = vweird.f32 %v2233
    %vm2240 = vweird.f32 %v2234
    %vm2241 = vmor %vm2239, %vm2240
    %v2242 = vsel %vm2241, %v2234, %v2238
    %v2243 = vand.u32 2147483647, %v2233
    %vm2244 = vcmp.eq.f32.partialorder %v2243, 8.507059e+37
    %v2245 = vand.u32 %v2233, 2147483648
    %v2246 = vor.u32 1.1754944e-38, %v2245
    %v2247 = vsel %vm2244, %v2246, %v2242
    %v2248 = vmul.f32 1.0, %v2247
    %v2249 = vxor.u32 %v2227, 2147483648
    %v2250 = vmul.f32 %v2249, 1.442695
    %v2251 = vpow.pop %v2250
    %v2252 = vadd.f32 %v2251, 1.0
    %v2253 = vrcp.pop %v2252
    %v2254 = vmul.f32 %v2252, %v2253
    %v2255 = vsub.f32 1.0, %v2254
    %v2256 = vmul.f32 %v2253, %v2255
    %v2257 = vadd.f32 %v2253, %v2256
    %vm2258 = vweird.f32 %v2252
    %vm2259 = vweird.f32 %v2253
    %vm2260 = vmor %vm2258, %vm2259
    %v2261 = vsel %vm2260, %v2253, %v2257
    %v2262 = vand.u32 2147483647, %v2252
    %vm2263 = vcmp.eq.f32.partialorder %v2262, 8.507059e+37
    %v2264 = vand.u32 %v2252, 2147483648
    %v2265 = vor.u32 1.1754944e-38, %v2264
    %v2266 = vsel %vm2263, %v2265, %v2261
    %v2267 = vmul.f32 1.0, %v2266
    %v2268 = vtanh.pop %v2228
    %v2269 = vxor.u32 %v2229, 2147483648
    %v2270 = vmul.f32 %v2269, 1.442695
    %v2271 = vpow.pop %v2270
    %v2272 = vadd.f32 %v2271, 1.0
    %v2273 = vrcp.pop %v2272
    %v2274 = vmul.f32 %v2272, %v2273
    %v2275 = vsub.f32 1.0, %v2274
    %v2276 = vmul.f32 %v2273, %v2275
    %v2277 = vadd.f32 %v2273, %v2276
    %vm2278 = vweird.f32 %v2272
    %vm2279 = vweird.f32 %v2273
    %vm2280 = vmor %vm2278, %vm2279
    %v2281 = vsel %vm2280, %v2273, %v2277
    %v2282 = vand.u32 2147483647, %v2272
    %vm2283 = vcmp.eq.f32.partialorder %v2282, 8.507059e+37
    %v2284 = vand.u32 %v2272, 2147483648
    %v2285 = vor.u32 1.1754944e-38, %v2284
    %v2286 = vsel %vm2283, %v2285, %v2281
    %v2287 = vmul.f32 1.0, %v2286
    %v2288 = vld [vmem:[#allocation3] sm:$0xff]
    %v2289 = vmul.f32 %v2267, %v2288
    %v2290 = vmul.f32 %v2248, %v2268
    %v2291 = vadd.f32 %v2289, %v2290
    %v2292 = vtanh.pop %v2291
    %v2293 = vmul.f32 %v2287, %v2292
    %2294 = vst [vmem:[#allocation3] sm:$0xff] %v2291
    %2295 = vst [vmem:[#allocation2] sm:$0xff] %v2293
    %v2296 = vpack.c.bf16 %v2293, %v2293
    %s2297 = scalar_lea.vmem %s2, 24
    %2298 = vst [vmem:[%s2297] sm:$0xf] %v2296
    %s2299 = scalar_lea.vmem %s0, 224
    %v2300 = vld [vmem:[%s2299] sm:$0xff]
    %v2301 = vld [vmem:[%s2299 + $0x8] sm:$0xff]
    %v2302 = vld [vmem:[%s2299 + $0x10] sm:$0xff]
    %v2303 = vld [vmem:[%s2299 + $0x18] sm:$0xff]
    %v2304 = vld [vmem:[#allocation2] sm:$0xff]
    %v2305 = vpack.c.bf16 %v2304, %v2304
    %v2306 = vld [vmem:[#allocation4] sm:$0xff]
    %v2307 = vld [vmem:[#allocation4 + $0x8] sm:$0xff]
    %v2308 = vld [vmem:[#allocation4 + $0x10] sm:$0xff]
    %v2309 = vld [vmem:[#allocation4 + $0x18] sm:$0xff]
    %v2310 = vld [vmem:[#allocation4 + $0x20] sm:$0xff]
    %v2311 = vld [vmem:[#allocation4 + $0x28] sm:$0xff]
    %v2312 = vld [vmem:[#allocation4 + $0x30] sm:$0xff]
    %v2313 = vld [vmem:[#allocation4 + $0x38] sm:$0xff]
    %v2314 = vld [vmem:[#allocation4 + $0x40] sm:$0xff]
    %v2315 = vld [vmem:[#allocation4 + $0x48] sm:$0xff]
    %v2316 = vld [vmem:[#allocation4 + $0x50] sm:$0xff]
    %v2317 = vld [vmem:[#allocation4 + $0x58] sm:$0xff]
    %v2318 = vld [vmem:[#allocation4 + $0x60] sm:$0xff]
    %v2319 = vld [vmem:[#allocation4 + $0x68] sm:$0xff]
    %v2320 = vld [vmem:[#allocation4 + $0x70] sm:$0xff]
    %v2321 = vld [vmem:[#allocation4 + $0x78] sm:$0xff]
    %v2322 = vld [vmem:[#allocation4 + $0x80] sm:$0xff]
    %v2323 = vld [vmem:[#allocation4 + $0x88] sm:$0xff]
    %v2324 = vld [vmem:[#allocation4 + $0x90] sm:$0xff]
    %v2325 = vld [vmem:[#allocation4 + $0x98] sm:$0xff]
    %v2326 = vld [vmem:[#allocation4 + $0xa0] sm:$0xff]
    %v2327 = vld [vmem:[#allocation4 + $0xa8] sm:$0xff]
    %v2328 = vld [vmem:[#allocation4 + $0xb0] sm:$0xff]
    %v2329 = vld [vmem:[#allocation4 + $0xb8] sm:$0xff]
    %v2330 = vld [vmem:[#allocation4 + $0xc0] sm:$0xff]
    %v2331 = vld [vmem:[#allocation4 + $0xc8] sm:$0xff]
    %v2332 = vld [vmem:[#allocation4 + $0xd0] sm:$0xff]
    %v2333 = vld [vmem:[#allocation4 + $0xd8] sm:$0xff]
    %v2334 = vld [vmem:[#allocation4 + $0xe0] sm:$0xff]
    %v2335 = vld [vmem:[#allocation4 + $0xe8] sm:$0xff]
    %v2336 = vld [vmem:[#allocation4 + $0xf0] sm:$0xff]
    %v2337 = vld [vmem:[#allocation4 + $0xf8] sm:$0xff]
    %v2370 = vunpack.c.l.b16 %v2306
    %v2371 = vunpack.c.h.b16 %v2306
    %v2372 = vunpack.c.l.b16 %v2307
    %v2373 = vunpack.c.h.b16 %v2307
    %v2374 = vunpack.c.l.b16 %v2308
    %v2375 = vunpack.c.h.b16 %v2308
    %v2376 = vunpack.c.l.b16 %v2309
    %v2377 = vunpack.c.h.b16 %v2309
    %v2378 = vunpack.c.l.b16 %v2310
    %v2379 = vunpack.c.h.b16 %v2310
    %v2380 = vunpack.c.l.b16 %v2311
    %v2381 = vunpack.c.h.b16 %v2311
    %v2382 = vunpack.c.l.b16 %v2312
    %v2383 = vunpack.c.h.b16 %v2312
    %v2384 = vunpack.c.l.b16 %v2313
    %v2385 = vunpack.c.h.b16 %v2313
    %v2386 = vunpack.c.l.b16 %v2314
    %v2387 = vunpack.c.h.b16 %v2314
    %v2388 = vunpack.c.l.b16 %v2315
    %v2389 = vunpack.c.h.b16 %v2315
    %v2390 = vunpack.c.l.b16 %v2316
    %v2391 = vunpack.c.h.b16 %v2316
    %v2392 = vunpack.c.l.b16 %v2317
    %v2393 = vunpack.c.h.b16 %v2317
    %v2394 = vunpack.c.l.b16 %v2318
    %v2395 = vunpack.c.h.b16 %v2318
    %v2396 = vunpack.c.l.b16 %v2319
    %v2397 = vunpack.c.h.b16 %v2319
    %v2398 = vunpack.c.l.b16 %v2320
    %v2399 = vunpack.c.h.b16 %v2320
    %v2400 = vunpack.c.l.b16 %v2321
    %v2401 = vunpack.c.h.b16 %v2321
    %v2402 = vunpack.c.l.b16 %v2322
    %v2403 = vunpack.c.h.b16 %v2322
    %v2404 = vunpack.c.l.b16 %v2323
    %v2405 = vunpack.c.h.b16 %v2323
    %v2406 = vunpack.c.l.b16 %v2324
    %v2407 = vunpack.c.h.b16 %v2324
    %v2408 = vunpack.c.l.b16 %v2325
    %v2409 = vunpack.c.h.b16 %v2325
    %v2410 = vunpack.c.l.b16 %v2326
    %v2411 = vunpack.c.h.b16 %v2326
    %v2412 = vunpack.c.l.b16 %v2327
    %v2413 = vunpack.c.h.b16 %v2327
    %v2414 = vunpack.c.l.b16 %v2328
    %v2415 = vunpack.c.h.b16 %v2328
    %v2416 = vunpack.c.l.b16 %v2329
    %v2417 = vunpack.c.h.b16 %v2329
    %v2418 = vunpack.c.l.b16 %v2330
    %v2419 = vunpack.c.h.b16 %v2330
    %v2420 = vunpack.c.l.b16 %v2331
    %v2421 = vunpack.c.h.b16 %v2331
    %v2422 = vunpack.c.l.b16 %v2332
    %v2423 = vunpack.c.h.b16 %v2332
    %v2424 = vunpack.c.l.b16 %v2333
    %v2425 = vunpack.c.h.b16 %v2333
    %v2426 = vunpack.c.l.b16 %v2334
    %v2427 = vunpack.c.h.b16 %v2334
    %v2428 = vunpack.c.l.b16 %v2335
    %v2429 = vunpack.c.h.b16 %v2335
    %v2430 = vunpack.c.l.b16 %v2336
    %v2431 = vunpack.c.h.b16 %v2336
    %v2432 = vunpack.c.l.b16 %v2337
    %v2433 = vunpack.c.h.b16 %v2337
    %v2434 = vpack.c.b16 %v2374, %v2370
    %v2435 = vpack.c.b16 %v2375, %v2371
    %v2436 = vpack.c.b16 %v2376, %v2372
    %v2437 = vpack.c.b16 %v2377, %v2373
    %v2438 = vpack.c.b16 %v2382, %v2378
    %v2439 = vpack.c.b16 %v2383, %v2379
    %v2440 = vpack.c.b16 %v2384, %v2380
    %v2441 = vpack.c.b16 %v2385, %v2381
    %v2442 = vpack.c.b16 %v2390, %v2386
    %v2443 = vpack.c.b16 %v2391, %v2387
    %v2444 = vpack.c.b16 %v2392, %v2388
    %v2445 = vpack.c.b16 %v2393, %v2389
    %v2446 = vpack.c.b16 %v2398, %v2394
    %v2447 = vpack.c.b16 %v2399, %v2395
    %v2448 = vpack.c.b16 %v2400, %v2396
    %v2449 = vpack.c.b16 %v2401, %v2397
    %v2450 = vpack.c.b16 %v2406, %v2402
    %v2451 = vpack.c.b16 %v2407, %v2403
    %v2452 = vpack.c.b16 %v2408, %v2404
    %v2453 = vpack.c.b16 %v2409, %v2405
    %v2454 = vpack.c.b16 %v2414, %v2410
    %v2455 = vpack.c.b16 %v2415, %v2411
    %v2456 = vpack.c.b16 %v2416, %v2412
    %v2457 = vpack.c.b16 %v2417, %v2413
    %v2458 = vpack.c.b16 %v2422, %v2418
    %v2459 = vpack.c.b16 %v2423, %v2419
    %v2460 = vpack.c.b16 %v2424, %v2420
    %v2461 = vpack.c.b16 %v2425, %v2421
    %v2462 = vpack.c.b16 %v2430, %v2426
    %v2463 = vpack.c.b16 %v2431, %v2427
    %v2464 = vpack.c.b16 %v2432, %v2428
    %v2465 = vpack.c.b16 %v2433, %v2429
    %2498 = vmatpush.bf16.msra.mxu0 %v2462
    %2499 = vmatpush.bf16.msra.mxu0 %v2458
    %2500 = vmatpush.bf16.msra.mxu0 %v2454
    %2501 = vmatpush.bf16.msra.mxu0 %v2450
    %2502 = vmatpush.bf16.msra.mxu0 %v2446
    %2503 = vmatpush.bf16.msra.mxu0 %v2442
    %2504 = vmatpush.bf16.msra.mxu0 %v2438
    %2505 = vmatpush.bf16.msra.mxu0 %v2434
    %2506 = vmatmul.bf16.gmra.mxu0 %v2305
    %v2507 = vpop.f32.mrf.mxu0
    %v2508 = vadd.f32 0.0, %v2507
    %v2509 = vpop.f32.mrf.mxu0
    %2510 = vdwg.mxu0
    %2511 = vmatpush.bf16.msra.mxu0 %v2463
    %2512 = vmatpush.bf16.msra.mxu0 %v2459
    %2513 = vmatpush.bf16.msra.mxu0 %v2455
    %2514 = vmatpush.bf16.msra.mxu0 %v2451
    %2515 = vmatpush.bf16.msra.mxu0 %v2447
    %2516 = vmatpush.bf16.msra.mxu0 %v2443
    %2517 = vmatpush.bf16.msra.mxu0 %v2439
    %2518 = vmatpush.bf16.msra.mxu0 %v2435
    %2519 = vmatmul.bf16.gmra.mxu0 %v2305
    %v2520 = vpop.f32.mrf.mxu0
    %v2521 = vadd.f32 0.0, %v2520
    %v2522 = vpop.f32.mrf.mxu0
    %2523 = vdwg.mxu0
    %2524 = vmatpush.bf16.msra.mxu0 %v2464
    %2525 = vmatpush.bf16.msra.mxu0 %v2460
    %2526 = vmatpush.bf16.msra.mxu0 %v2456
    %2527 = vmatpush.bf16.msra.mxu0 %v2452
    %2528 = vmatpush.bf16.msra.mxu0 %v2448
    %2529 = vmatpush.bf16.msra.mxu0 %v2444
    %2530 = vmatpush.bf16.msra.mxu0 %v2440
    %2531 = vmatpush.bf16.msra.mxu0 %v2436
    %2532 = vmatmul.bf16.gmra.mxu0 %v2305
    %v2533 = vpop.f32.mrf.mxu0
    %v2534 = vadd.f32 0.0, %v2533
    %v2535 = vpop.f32.mrf.mxu0
    %2536 = vdwg.mxu0
    %2537 = vmatpush.bf16.msra.mxu0 %v2465
    %2538 = vmatpush.bf16.msra.mxu0 %v2461
    %2539 = vmatpush.bf16.msra.mxu0 %v2457
    %2540 = vmatpush.bf16.msra.mxu0 %v2453
    %2541 = vmatpush.bf16.msra.mxu0 %v2449
    %2542 = vmatpush.bf16.msra.mxu0 %v2445
    %2543 = vmatpush.bf16.msra.mxu0 %v2441
    %2544 = vmatpush.bf16.msra.mxu0 %v2437
    %2545 = vmatmul.bf16.gmra.mxu0 %v2305
    %v2546 = vpop.f32.mrf.mxu0
    %v2547 = vadd.f32 0.0, %v2546
    %v2548 = vpop.f32.mrf.mxu0
    %2549 = vdwg.mxu0
    %v2550 = vadd.f32 %v2300, %v2508
    %v2551 = vadd.f32 %v2301, %v2521
    %v2552 = vadd.f32 %v2302, %v2534
    %v2553 = vadd.f32 %v2303, %v2547
    %v2554 = vxor.u32 %v2550, 2147483648
    %v2555 = vmul.f32 %v2554, 1.442695
    %v2556 = vpow.pop %v2555
    %v2557 = vadd.f32 %v2556, 1.0
    %v2558 = vrcp.pop %v2557
    %v2559 = vmul.f32 %v2557, %v2558
    %v2560 = vsub.f32 1.0, %v2559
    %v2561 = vmul.f32 %v2558, %v2560
    %v2562 = vadd.f32 %v2558, %v2561
    %vm2563 = vweird.f32 %v2557
    %vm2564 = vweird.f32 %v2558
    %vm2565 = vmor %vm2563, %vm2564
    %v2566 = vsel %vm2565, %v2558, %v2562
    %v2567 = vand.u32 2147483647, %v2557
    %vm2568 = vcmp.eq.f32.partialorder %v2567, 8.507059e+37
    %v2569 = vand.u32 %v2557, 2147483648
    %v2570 = vor.u32 1.1754944e-38, %v2569
    %v2571 = vsel %vm2568, %v2570, %v2566
    %v2572 = vmul.f32 1.0, %v2571
    %v2573 = vxor.u32 %v2551, 2147483648
    %v2574 = vmul.f32 %v2573, 1.442695
    %v2575 = vpow.pop %v2574
    %v2576 = vadd.f32 %v2575, 1.0
    %v2577 = vrcp.pop %v2576
    %v2578 = vmul.f32 %v2576, %v2577
    %v2579 = vsub.f32 1.0, %v2578
    %v2580 = vmul.f32 %v2577, %v2579
    %v2581 = vadd.f32 %v2577, %v2580
    %vm2582 = vweird.f32 %v2576
    %vm2583 = vweird.f32 %v2577
    %vm2584 = vmor %vm2582, %vm2583
    %v2585 = vsel %vm2584, %v2577, %v2581
    %v2586 = vand.u32 2147483647, %v2576
    %vm2587 = vcmp.eq.f32.partialorder %v2586, 8.507059e+37
    %v2588 = vand.u32 %v2576, 2147483648
    %v2589 = vor.u32 1.1754944e-38, %v2588
    %v2590 = vsel %vm2587, %v2589, %v2585
    %v2591 = vmul.f32 1.0, %v2590
    %v2592 = vtanh.pop %v2552
    %v2593 = vxor.u32 %v2553, 2147483648
    %v2594 = vmul.f32 %v2593, 1.442695
    %v2595 = vpow.pop %v2594
    %v2596 = vadd.f32 %v2595, 1.0
    %v2597 = vrcp.pop %v2596
    %v2598 = vmul.f32 %v2596, %v2597
    %v2599 = vsub.f32 1.0, %v2598
    %v2600 = vmul.f32 %v2597, %v2599
    %v2601 = vadd.f32 %v2597, %v2600
    %vm2602 = vweird.f32 %v2596
    %vm2603 = vweird.f32 %v2597
    %vm2604 = vmor %vm2602, %vm2603
    %v2605 = vsel %vm2604, %v2597, %v2601
    %v2606 = vand.u32 2147483647, %v2596
    %vm2607 = vcmp.eq.f32.partialorder %v2606, 8.507059e+37
    %v2608 = vand.u32 %v2596, 2147483648
    %v2609 = vor.u32 1.1754944e-38, %v2608
    %v2610 = vsel %vm2607, %v2609, %v2605
    %v2611 = vmul.f32 1.0, %v2610
    %v2612 = vld [vmem:[#allocation3] sm:$0xff]
    %v2613 = vmul.f32 %v2591, %v2612
    %v2614 = vmul.f32 %v2572, %v2592
    %v2615 = vadd.f32 %v2613, %v2614
    %v2616 = vtanh.pop %v2615
    %v2617 = vmul.f32 %v2611, %v2616
    %2618 = vst [vmem:[#allocation3] sm:$0xff] %v2615
    %2619 = vst [vmem:[#allocation2] sm:$0xff] %v2617
    %v2620 = vpack.c.bf16 %v2617, %v2617
    %s2621 = scalar_lea.vmem %s2, 28
    %2622 = vst [vmem:[%s2621] sm:$0xf] %v2620
    // Predicated region
    $region18: #{rnn_model_forward.10} parent=1 // pred_check
      _
    $region19: #{rnn_model_forward.10} parent=1 // pred_check_branch
      %2624 = sbr.rel (0) target = $region21
    $region20: #{rnn_model_forward.10} parent=1 // pred_region
      _
    $region21: #{rnn_model_forward.10} parent=1 // pred_fallthru
      _
    // Predicated region
    $region22: #{rnn_model_forward.10} parent=1 // pred_check
      _
    $region23: #{rnn_model_forward.10} parent=1 // pred_check_branch
      %2626 = sbr.rel (0) target = $region25
    $region24: #{rnn_model_forward.10} parent=1 // pred_region
      _
    $region25: #{rnn_model_forward.10} parent=1 // pred_fallthru
      _
    %2627 = vsyncpa [#allocation5], 1

</llo_original>
